<compile_context>
chip_gen: v5e
topology: v5e:2x2
jax: 0.10.0
libtpu: 0.0.40
codegen_flags: <defaults>
</compile_context>

<pallas_src>
import functools

import jax
import jax.numpy as jnp
import numpy as np
from jax.experimental import pallas as pl
from jax.experimental.pallas import tpu as pltpu

NUM_CLASSES = 10
NUM_MODELS = 4
NUM_CENTROIDS = 32
NOISE_DIM = 512
HIDDEN_DIM = 512
FEATURE_DIM = 256
LENGTH_SCALE = 0.5          # learnable_length_scale=False -> plain python float
BN_EPS = 1e-5

CONV_NB = 8                 # images per conv grid step (VMEM-safe on v7x too)
HEAD_TM = 256               # row tile for fused fc1+layer_W+head (v5e-safe)


def _round_up(v, m):
    return ((v + m - 1) // m) * m


# ----------------------------------------------------------------------------
# Kernel 1: fused 3x3 conv (BN folded into weights) + bias + ReLU + 2x2 max-pool
#           batch-blocked, taps as shifted row-window MXU matmuls
# ----------------------------------------------------------------------------
def _conv_pool_kernel(x_ref, w_ref, b_ref, o_ref, acc_ref, pool_ref,
                      *, offsets, wp, ho):
    """x_ref : [nb, L, K]   flattened padded images (bf16); for conv1 K=9 taps
    w_ref : [nt, K, Cout] BN-folded weights, tap-major (bf16)
    b_ref : [1, Cout]     BN-folded bias (f32)
    o_ref : [nb, ho2*wph, Cout] pooled output (bf16)
    acc   : VMEM [nb*ho*wp, Cout] f32 pre-activation accumulator
    pool  : VMEM [nb*ho2*wp, Cout] f32 vertical-max staging buffer
    """
    nb = x_ref.shape[0]
    cout = o_ref.shape[-1]
    r = ho * wp

    # --- taps: shifted-window matmuls with f32 accumulation on the MXU -------
    for t, off in enumerate(offsets):
        win = x_ref[:, pl.ds(off, r), :]                 # [nb, r, K]
        win = win.reshape(nb * r, win.shape[-1])         # r multiple of 8
        contrib = jnp.dot(win, w_ref[t], preferred_element_type=jnp.float32)
        if t == 0:
            acc_ref[...] = contrib
        else:
            acc_ref[...] += contrib

    # --- epilogue: 2x2/2 max-pool, then bias + ReLU (commute with the max) ---
    ho2, wph = ho // 2, wp // 2
    hu = 2 * ho2                                         # rows used by the pool
    # (1) vertical pair-max: aligned contiguous reads, one store per image
    for n in range(nb):
        a = acc_ref[pl.ds(n * r, hu * wp), :].reshape(ho2, 2 * wp, cout)
        vmax = jnp.maximum(a[:, :wp, :], a[:, wp:, :])
        pool_ref[pl.ds(n * ho2 * wp, ho2 * wp), :] = vmax.reshape(ho2 * wp, cout)
    # (2) horizontal pair-max: one pair of stride-2 reads over the whole block
    p = nb * ho2 * wp
    h = jnp.maximum(pool_ref[pl.ds(0, p // 2, stride=2), :],
                    pool_ref[pl.ds(1, p // 2, stride=2), :])
    y = jnp.maximum(h + b_ref[...], 0.0)
    o_ref[...] = y.reshape(nb, ho2 * wph, cout).astype(o_ref.dtype)


def _conv_pallas(xf, w_taps, bias, *, offsets, wp, ho):
    """xf: [B, L, K] bf16 -> [B, (ho//2)*(wp//2), Cout] bf16 (cols >= wo//2 garbage)."""
    b, l, kdim = xf.shape
    cout = w_taps.shape[-1]
    nb = min(CONV_NB, b)
    bpad = _round_up(b, nb)
    if bpad != b:
        xf = jnp.pad(xf, ((0, bpad - b), (0, 0), (0, 0)))
    ho2, wph = ho // 2, wp // 2
    out = pl.pallas_call(
        functools.partial(_conv_pool_kernel, offsets=offsets, wp=wp, ho=ho),
        out_shape=jax.ShapeDtypeStruct((bpad, ho2 * wph, cout), jnp.bfloat16),
        grid_spec=pltpu.PrefetchScalarGridSpec(
            num_scalar_prefetch=0,
            grid=(bpad // nb,),
            in_specs=[
                pl.BlockSpec((nb, l, kdim), lambda i: (i, 0, 0)),
                pl.BlockSpec(w_taps.shape, lambda i: (0, 0, 0)),
                pl.BlockSpec((1, cout), lambda i: (0, 0)),
            ],
            out_specs=pl.BlockSpec((nb, ho2 * wph, cout), lambda i: (i, 0, 0)),
            scratch_shapes=[
                pltpu.VMEM((nb * ho * wp, cout), jnp.float32),
                pltpu.VMEM((nb * ho2 * wp, cout), jnp.float32),
            ],
        ),
        compiler_params=pltpu.CompilerParams(dimension_semantics=("parallel",)),
    )(xf, w_taps, bias)
    return out[:b]


def conv1_bn_relu_pool(x_img, w_taps, bias):
    """x_img: [B, H, W] bf16 (single channel) -> pooled NHWC [B, H/2, W/2, 64]."""
    b, hgt, wid = x_img.shape
    pad = 1
    ho, wo = hgt + 2 * pad - 2, wid + 2 * pad - 2
    wp = _round_up(wid + 2 * pad, 8)
    hq = ho + 3
    xp = jnp.pad(x_img, ((0, 0), (pad, hq - hgt - pad), (pad, wp - wid - pad)))
    flat = xp.reshape(b, hq * wp)
    offs = [dy * wp + dx for dy in range(3) for dx in range(3)]
    r = ho * wp
    # 9-wide im2col of the 1-channel image: tiny, lets the kernel use the MXU.
    x9 = jnp.stack([flat[:, o:o + r] for o in offs], axis=-1)     # [B, r, 9]
    out = _conv_pallas(x9, w_taps, bias, offsets=(0,), wp=wp, ho=ho)
    ho2, wph, wo2 = ho // 2, wp // 2, wo // 2
    cout = w_taps.shape[-1]
    return out.reshape(b, ho2, wph, cout)[:, :, :wo2, :]


def conv_bn_relu_pool(x_nhwc, w_taps, bias, *, pad):
    """x: [B, H, W, Cin] bf16 -> pooled [B, Ho//2, Wo//2, Cout] bf16."""
    b, hgt, wid, cin = x_nhwc.shape
    ho, wo = hgt + 2 * pad - 2, wid + 2 * pad - 2
    wp = _round_up(wid + 2 * pad, 8)
    hq = ho + 3
    xp = jnp.pad(x_nhwc,
                 ((0, 0), (pad, hq - hgt - pad), (pad, wp - wid - pad), (0, 0)))
    xf = xp.reshape(b, hq * wp, cin)
    offs = tuple(dy * wp + dx for dy in range(3) for dx in range(3))
    out = _conv_pallas(xf, w_taps, bias, offsets=offs, wp=wp, ho=ho)
    ho2, wph, wo2 = ho // 2, wp // 2, wo // 2
    cout = w_taps.shape[-1]
    return out.reshape(b, ho2, wph, cout)[:, :, :wo2, :]


# ----------------------------------------------------------------------------
# Kernel 2: fused  fc1(+ReLU)  ->  layer_W (no bias)  ->  RBF prototype head
#   dist[b,c] = -mean_{k,f}(z[b,c,f]-p[c,k,f])^2 / (2 sigma^2);  y = exp(dist)
#   using  sum_k|z-p_k|^2 = K|z|^2 - 2<z, sum_k p_k> + sum_k|p_k|^2
# ----------------------------------------------------------------------------
def _head_kernel(x_ref, w1_ref, b1_ref, wl_ref, p1_ref, p2_ref, o_ref,
                 *, k0, coef, nclass, fdim):
    h = jnp.dot(x_ref[...], w1_ref[...], preferred_element_type=jnp.float32)
    h = jnp.maximum(h + b1_ref[...], 0.0).astype(jnp.bfloat16)       # [tm, 256]
    z = jnp.dot(h, wl_ref[...], preferred_element_type=jnp.float32)  # [tm, C*F]
    p1 = p1_ref[...]                                                  # [C, F]
    zsq, cross = [], []
    for c in range(nclass):
        zc = z[:, c * fdim:(c + 1) * fdim]
        zsq.append(jnp.sum(zc * zc, axis=-1, keepdims=True))
        cross.append(jnp.sum(zc * p1[c:c + 1, :], axis=-1, keepdims=True))
    s = (k0 * jnp.concatenate(zsq, axis=-1)
         - 2.0 * jnp.concatenate(cross, axis=-1) + p2_ref[...])
    s = jnp.maximum(s, 0.0)          # expansion can go slightly negative
    o_ref[...] = jnp.exp(-s * coef)


def fused_head(feat, p):
    """feat: [B, 512] bf16 (NHWC-flat conv features) -> [B, num_classes] f32."""
    m, kdim = feat.shape
    tm = min(HEAD_TM, _round_up(m, 8))
    mp = _round_up(m, tm)
    if mp != m:
        feat = jnp.pad(feat, ((0, mp - m), (0, 0)))
    coef = 1.0 / (NUM_CENTROIDS * FEATURE_DIM * 2.0 * LENGTH_SCALE * LENGTH_SCALE)
    out = pl.pallas_call(
        functools.partial(_head_kernel, k0=float(NUM_CENTROIDS), coef=float(coef),
                          nclass=NUM_CLASSES, fdim=FEATURE_DIM),
        out_shape=jax.ShapeDtypeStruct((mp, NUM_CLASSES), jnp.float32),
        grid_spec=pltpu.PrefetchScalarGridSpec(
            num_scalar_prefetch=0,
            grid=(mp // tm,),
            in_specs=[
                pl.BlockSpec((tm, kdim), lambda i: (i, 0)),
                pl.BlockSpec(p['fc1_w'].shape, lambda i: (0, 0)),
                pl.BlockSpec((1, FEATURE_DIM), lambda i: (0, 0)),
                pl.BlockSpec(p['layerW_w'].shape, lambda i: (0, 0)),
                pl.BlockSpec((NUM_CLASSES, FEATURE_DIM), lambda i: (0, 0)),
                pl.BlockSpec((1, NUM_CLASSES), lambda i: (0, 0)),
            ],
            out_specs=pl.BlockSpec((tm, NUM_CLASSES), lambda i: (i, 0)),
        ),
        compiler_params=pltpu.CompilerParams(dimension_semantics=("parallel",)),
    )(feat, p['fc1_w'], p['fc1_b'], p['layerW_w'], p['proto_p1'], p['proto_p2'])
    return out[:m]


# ----------------------------------------------------------------------------
# Kernel 3: fused fc1_p(+ReLU) + fc2_p prototype generator (runs once, at prep)
# ----------------------------------------------------------------------------
def _proto_kernel(x_ref, w1_ref, b1_ref, w2_ref, b2_ref, o_ref):
    h = jnp.dot(x_ref[...], w1_ref[...], preferred_element_type=jnp.float32)
    h = jnp.maximum(h + b1_ref[...], 0.0).astype(jnp.bfloat16)
    o_ref[...] = (jnp.dot(h, w2_ref[...], preferred_element_type=jnp.float32)
                  + b2_ref[...])


def compute_prototype_stats(proto_in, w1, b1, w2, b2):
    rows = proto_in.shape[0]                               # C*K = 320
    proto = pl.pallas_call(
        _proto_kernel,
        out_shape=jax.ShapeDtypeStruct((rows, FEATURE_DIM), jnp.float32),
        grid_spec=pltpu.PrefetchScalarGridSpec(
            num_scalar_prefetch=0,
            grid=(1,),
            in_specs=[
                pl.BlockSpec(proto_in.shape, lambda i: (0, 0)),
                pl.BlockSpec(w1.shape, lambda i: (0, 0)),
                pl.BlockSpec((1, HIDDEN_DIM), lambda i: (0, 0)),
                pl.BlockSpec(w2.shape, lambda i: (0, 0)),
                pl.BlockSpec((1, FEATURE_DIM), lambda i: (0, 0)),
            ],
            out_specs=pl.BlockSpec((rows, FEATURE_DIM), lambda i: (0, 0)),
        ),
    )(proto_in, w1, b1, w2, b2)
    proto = proto.reshape(NUM_CLASSES, NUM_CENTROIDS, FEATURE_DIM)
    p1 = jnp.sum(proto, axis=1)                                     # [C, F]
    p2 = jnp.sum(proto * proto, axis=(1, 2)).reshape(1, NUM_CLASSES)
    return p1, p2


# ----------------------------------------------------------------------------
# Forward (mirrors SNN_BE.forward with y=None)
# ----------------------------------------------------------------------------
def snn_be_forward(x_nchw, p):
    b = x_nchw.shape[0]
    x = x_nchw[:, 0, :, :].astype(jnp.bfloat16)                     # [B, 28, 28]
    # Shared-weight ensemble: one member's features, replicated at the end.
    x = conv1_bn_relu_pool(x, p['c1_w'], p['c1_b'])                 # [B,14,14, 64]
    x = conv_bn_relu_pool(x, p['c2_w'], p['c2_b'], pad=1)           # [B, 7, 7,128]
    x = conv_bn_relu_pool(x, p['c3_w'], p['c3_b'], pad=0)           # [B, 2, 2,128]
    feat = x.reshape(b, -1)       # NHWC flat; fc1_w rows are pre-permuted to match
    y = fused_head(feat, p)                                         # [B, 10]
    return jnp.tile(y, (NUM_MODELS, 1))                             # model-major


# ----------------------------------------------------------------------------
# Parameter init (raw f32) + kernel-ready preparation (BN folding, permutes,
# bf16 casts, hoisted prototype statistics)
# ----------------------------------------------------------------------------
def init_params(key):
    ks = iter(jax.random.split(key, 32))

    def nrm(shape, std):
        return std * jax.random.normal(next(ks), shape, jnp.float32)

    def conv_bn(cin, cout):
        return dict(
            w=nrm((3, 3, cin, cout), (2.0 / (9 * cin)) ** 0.5),     # HWIO
            b=nrm((cout,), 0.02),
            g=1.0 + nrm((cout,), 0.05),
            be=nrm((cout,), 0.05),
            rm=nrm((cout,), 0.05),
            rv=1.0 + 0.1 * jax.random.uniform(next(ks), (cout,), jnp.float32),
        )

    p = dict(c1=conv_bn(1, 64), c2=conv_bn(64, 128), c3=conv_bn(128, 128))
    p['fc1_w'] = nrm((2 * 2 * 128, FEATURE_DIM), (2.0 / 512) ** 0.5)
    p['fc1_b'] = nrm((FEATURE_DIM,), 0.02)
    p['fc1p_w'] = nrm((NOISE_DIM + NUM_CLASSES, HIDDEN_DIM),
                      (2.0 / (NOISE_DIM + NUM_CLASSES)) ** 0.5)
    p['fc1p_b'] = nrm((HIDDEN_DIM,), 0.02)
    p['fc2p_w'] = nrm((HIDDEN_DIM, FEATURE_DIM), 0.02)
    p['fc2p_b'] = nrm((FEATURE_DIM,), 0.02)
    p['layerW_w'] = nrm((FEATURE_DIM, FEATURE_DIM * NUM_CLASSES), 0.02)  # bias=False
    # get_prototype input (one ensemble member; shared weights + identical
    # frozen noise make all members bit-identical).
    noise = jax.random.normal(next(ks), (NUM_CLASSES * NUM_CENTROIDS, NOISE_DIM),
                              jnp.float32)
    onehot = jnp.repeat(jnp.eye(NUM_CLASSES, dtype=jnp.float32),
                        NUM_CENTROIDS, axis=0)
    p['proto_in'] = jnp.concatenate([noise, onehot], axis=1)        # [320, 522]
    return p


def prepare_kernel_params(raw):
    """BN folding, offline permutations, bf16 casts, hoisted prototype stats."""
    kp = {}
    # conv1: single K=9 tap-matrix weight
    c = raw['c1']
    s = c['g'] / jnp.sqrt(c['rv'] + BN_EPS)
    kp['c1_w'] = (c['w'] * s).reshape(1, 9, c['w'].shape[3]).astype(jnp.bfloat16)
    kp['c1_b'] = ((c['b'] - c['rm']) * s + c['be']).reshape(1, -1)
    for name in ('c2', 'c3'):
        c = raw[name]
        s = c['g'] / jnp.sqrt(c['rv'] + BN_EPS)
        cin, cout = c['w'].shape[2], c['w'].shape[3]
        kp[name + '_w'] = (c['w'] * s).reshape(9, cin, cout).astype(jnp.bfloat16)
        kp[name + '_b'] = ((c['b'] - c['rm']) * s + c['be']).reshape(1, cout)
    # fc1: rows permuted from NCHW-flatten order (torch flatten(1)) to the NHWC
    # order the conv kernels produce (removes a runtime feature transpose).
    q = np.arange(2 * 2 * 128)
    row_perm = (q % 128) * 4 + (q // 256) * 2 + ((q // 128) % 2)
    kp['fc1_w'] = raw['fc1_w'][row_perm].astype(jnp.bfloat16)
    kp['fc1_b'] = raw['fc1_b'].reshape(1, -1)
    # layer_W: columns permuted to class-major [c, f] so the head reads
    # contiguous 256-lane blocks per class (torch reshape is [N, F, C]).
    j = np.arange(FEATURE_DIM * NUM_CLASSES)
    col_perm = (j % FEATURE_DIM) * NUM_CLASSES + (j // FEATURE_DIM)
    kp['layerW_w'] = raw['layerW_w'][:, col_perm].astype(jnp.bfloat16)
    # Prototype head statistics, hoisted out of the forward (params + frozen
    # noise only): fused fc1_p + fc2_p Pallas kernel, then p1/p2 reductions.
    p1, p2 = compute_prototype_stats(
        raw['proto_in'].astype(jnp.bfloat16),
        raw['fc1p_w'].astype(jnp.bfloat16), raw['fc1p_b'].reshape(1, -1),
        raw['fc2p_w'].astype(jnp.bfloat16), raw['fc2p_b'].reshape(1, -1))
    kp['proto_p1'] = p1
    kp['proto_p2'] = p2
    return kp


# ----------------------------------------------------------------------------
# Pure-JAX f32 reference (for verification)
# ----------------------------------------------------------------------------
def ref_forward(x_nchw, p):
    x = jnp.transpose(x_nchw, (0, 2, 3, 1)).astype(jnp.float32)
    x = jnp.tile(x, (NUM_MODELS, 1, 1, 1))

    def cbr(x, c, pad):
        y = jax.lax.conv_general_dilated(
            x, c['w'], (1, 1), [(pad, pad), (pad, pad)],
            dimension_numbers=('NHWC', 'HWIO', 'NHWC'))
        y = y + c['b']
        y = (y - c['rm']) / jnp.sqrt(c['rv'] + BN_EPS) * c['g'] + c['be']
        return jnp.maximum(y, 0.0)

    def pool(x):
        b, h, w, ch = x.shape
        ho, wo = h // 2, w // 2
        return x[:, :2 * ho, :2 * wo, :].reshape(b, ho, 2, wo, 2, ch).max(axis=(2, 4))

    x = pool(cbr(x, p['c1'], 1))
    x = pool(cbr(x, p['c2'], 1))
    x = pool(cbr(x, p['c3'], 0))
    bp = x.shape[0]
    feat = jnp.transpose(x, (0, 3, 1, 2)).reshape(bp, -1)
    feat = jnp.maximum(feat @ p['fc1_w'] + p['fc1_b'], 0.0)

    proto_in = jnp.tile(p['proto_in'], (NUM_MODELS, 1))
    h = jnp.maximum(proto_in @ p['fc1p_w'] + p['fc1p_b'], 0.0)
    proto = (h @ p['fc2p_w'] + p['fc2p_b']).reshape(
        NUM_MODELS, NUM_CLASSES, NUM_CENTROIDS, FEATURE_DIM)

    z = (feat @ p['layerW_w']).reshape(bp, FEATURE_DIM, NUM_CLASSES)
    bm = bp // NUM_MODELS
    zz = jnp.transpose(z.reshape(NUM_MODELS, bm, FEATURE_DIM, NUM_CLASSES),
                       (0, 1, 3, 2))                               # [M, B, C, F]
    diff = zz[:, :, :, None, :] - proto[:, None, :, :, :]          # [M, B, C, K, F]
    dist = (-(diff ** 2)).mean(axis=(-1, -2)) / (2.0 * LENGTH_SCALE ** 2)
    return jnp.exp(dist).reshape(bp, NUM_CLASSES)


if __name__ == "__main__":
    key = jax.random.PRNGKey(0)
    k_params, k_x = jax.random.split(key)
    raw = init_params(k_params)
    params = prepare_kernel_params(raw)          # includes prep-time proto kernel

    x = jax.random.normal(k_x, (2, 1, 28, 28), jnp.float32)   # MNIST-sized NCHW

    y_pred = jax.jit(snn_be_forward)(x, params)
    y_pred = jax.block_until_ready(y_pred)

    y_ref = np.asarray(ref_forward(x, raw))
    assert y_pred.shape == (2 * NUM_MODELS, NUM_CLASSES)
    assert np.all(np.isfinite(np.asarray(y_pred)))
    np.testing.assert_allclose(np.asarray(y_pred), y_ref, rtol=0.1, atol=1e-4)
    print("KERNEL_OK")
</pallas_src>

<mosaic_0001>
module attributes {stable_mosaic.version = 11 : i64} {
  func.func @_proto_kernel(%arg0: i32, %arg1: memref<320x522xbf16, #tpu.memory_space<vmem>>, %arg2: memref<522x512xbf16, #tpu.memory_space<vmem>>, %arg3: memref<1x512xf32, #tpu.memory_space<vmem>>, %arg4: memref<512x256xbf16, #tpu.memory_space<vmem>>, %arg5: memref<1x256xf32, #tpu.memory_space<vmem>>, %arg6: memref<320x256xf32, #tpu.memory_space<vmem>>) attributes {dimension_semantics = [#tpu.dimension_semantics<arbitrary>], iteration_bounds = array<i64: 1>, scalar_prefetch = 0 : i64, scratch_operands = 0 : i64, tpu.core_type = #tpu.core_type<tc>, window_params = [{pipeline_mode = #tpu.pipeline_mode<synchronous>, transform_indices = @transform_0, window_bounds = array<i64: 320, 522>}, {pipeline_mode = #tpu.pipeline_mode<synchronous>, transform_indices = @transform_1, window_bounds = array<i64: 522, 512>}, {pipeline_mode = #tpu.pipeline_mode<synchronous>, transform_indices = @transform_2, window_bounds = array<i64: 1, 512>}, {pipeline_mode = #tpu.pipeline_mode<synchronous>, transform_indices = @transform_3, window_bounds = array<i64: 512, 256>}, {pipeline_mode = #tpu.pipeline_mode<synchronous>, transform_indices = @transform_4, window_bounds = array<i64: 1, 256>}, {pipeline_mode = #tpu.pipeline_mode<synchronous>, transform_indices = @transform_5, window_bounds = array<i64: 320, 256>}]} {
    %c0 = arith.constant 0 : index
    %c0_0 = arith.constant 0 : index
    %0 = vector.load %arg1[%c0, %c0_0] : memref<320x522xbf16, #tpu.memory_space<vmem>>, vector<320x522xbf16>
    %c0_1 = arith.constant 0 : index
    %c0_2 = arith.constant 0 : index
    %1 = vector.load %arg2[%c0_1, %c0_2] : memref<522x512xbf16, #tpu.memory_space<vmem>>, vector<522x512xbf16>
    %cst = arith.constant dense<0.000000e+00> : vector<320x512xf32>
    %2 = tpu.matmul %0, %1, %cst {dimension_numbers = #tpu.dot_dimension_numbers<[1], [0], [0], [1], [0, 0, 1, 1], [], []>} : vector<320x522xbf16>, vector<522x512xbf16>, vector<320x512xf32> -> vector<320x512xf32>
    %c0_3 = arith.constant 0 : index
    %c0_4 = arith.constant 0 : index
    %3 = vector.load %arg3[%c0_3, %c0_4] : memref<1x512xf32, #tpu.memory_space<vmem>>, vector<1x512xf32>
    %4 = vector.broadcast %3 : vector<1x512xf32> to vector<320x512xf32>
    %5 = arith.addf %2, %4 : vector<320x512xf32>
    %cst_5 = arith.constant 0.000000e+00 : f32
    %6 = vector.broadcast %cst_5 : f32 to vector<320x512xf32>
    %7 = arith.maximumf %5, %6 : vector<320x512xf32>
    %8 = arith.truncf %7 : vector<320x512xf32> to vector<320x512xbf16>
    %c0_6 = arith.constant 0 : index
    %c0_7 = arith.constant 0 : index
    %9 = vector.load %arg4[%c0_6, %c0_7] : memref<512x256xbf16, #tpu.memory_space<vmem>>, vector<512x256xbf16>
    %cst_8 = arith.constant dense<0.000000e+00> : vector<320x256xf32>
    %10 = tpu.matmul %8, %9, %cst_8 {dimension_numbers = #tpu.dot_dimension_numbers<[1], [0], [0], [1], [0, 0, 1, 1], [], []>} : vector<320x512xbf16>, vector<512x256xbf16>, vector<320x256xf32> -> vector<320x256xf32>
    %c0_9 = arith.constant 0 : index
    %c0_10 = arith.constant 0 : index
    %11 = vector.load %arg5[%c0_9, %c0_10] : memref<1x256xf32, #tpu.memory_space<vmem>>, vector<1x256xf32>
    %12 = vector.broadcast %11 : vector<1x256xf32> to vector<320x256xf32>
    %13 = arith.addf %10, %12 : vector<320x256xf32>
    %c0_11 = arith.constant 0 : index
    %c0_12 = arith.constant 0 : index
    %14 = vector.load %arg6[%c0_11, %c0_12] : memref<320x256xf32, #tpu.memory_space<vmem>>, vector<320x256xf32>
    tpu.vector_store %arg6[%c0_11, %c0_12], %13 {strides = array<i32>} : memref<320x256xf32, #tpu.memory_space<vmem>>, vector<320x256xf32>,
    return
  }
  func.func @transform_0(%arg0: i32) -> (i32, i32) {
    %c0_i32 = arith.constant 0 : i32
    %c0_i32_0 = arith.constant 0 : i32
    %c0_i32_1 = arith.constant 0 : i32
    return %c0_i32, %c0_i32_0 : i32, i32
  }
  func.func @transform_1(%arg0: i32) -> (i32, i32) {
    %c0_i32 = arith.constant 0 : i32
    %c0_i32_0 = arith.constant 0 : i32
    %c0_i32_1 = arith.constant 0 : i32
    return %c0_i32, %c0_i32_0 : i32, i32
  }
  func.func @transform_2(%arg0: i32) -> (i32, i32) {
    %c0_i32 = arith.constant 0 : i32
    %c0_i32_0 = arith.constant 0 : i32
    %c0_i32_1 = arith.constant 0 : i32
    return %c0_i32, %c0_i32_0 : i32, i32
  }
  func.func @transform_3(%arg0: i32) -> (i32, i32) {
    %c0_i32 = arith.constant 0 : i32
    %c0_i32_0 = arith.constant 0 : i32
    %c0_i32_1 = arith.constant 0 : i32
    return %c0_i32, %c0_i32_0 : i32, i32
  }
  func.func @transform_4(%arg0: i32) -> (i32, i32) {
    %c0_i32 = arith.constant 0 : i32
    %c0_i32_0 = arith.constant 0 : i32
    %c0_i32_1 = arith.constant 0 : i32
    return %c0_i32, %c0_i32_0 : i32, i32
  }
  func.func @transform_5(%arg0: i32) -> (i32, i32) {
    %c0_i32 = arith.constant 0 : i32
    %c0_i32_0 = arith.constant 0 : i32
    %c0_i32_1 = arith.constant 0 : i32
    return %c0_i32, %c0_i32_0 : i32, i32
  }
}

</mosaic_0001>

<llo_original>
// kernel: tpu_custom_call.1
$region0: #{tpu_custom_call.1}
  #allocation0 [shape = 'u32[]', space=smem, size = 0x4, offset = 0x4, fixed_abs, tag = 'smem constant byte address 0x4 - core index']
  #allocation1 [shape = 'u32[72,128]{1,0:T(1,128)}', space=vmem, size = 0x9000, scoped, tag = 'internal scratch']
  %s0 = inlined_call_operand.vmem [shape: bf16[320,522], index: 0, kind: input, shape index: {}]
  %s1 = inlined_call_operand.vmem [shape: bf16[522,512], index: 1, kind: input, shape index: {}]
  %s2 = inlined_call_operand.vmem [shape: f32[1,512], index: 2, kind: input, shape index: {}]
  %s3 = inlined_call_operand.vmem [shape: bf16[512,256], index: 3, kind: input, shape index: {}]
  %s4 = inlined_call_operand.vmem [shape: f32[1,256], index: 4, kind: input, shape index: {}]
  %s5 = inlined_call_operand.hbm [shape: f32[320,256], index: 5, kind: output, shape index: {}]
  %s6 = sld [smem:[#allocation0]]
  $region30: #{tpu_custom_call.1} parent=0
    _
  %s8 = ssub.s32 1, %s6
  %s9 = scalar_select 0, %s8, %s6
  $region1: #{tpu_custom_call.1} parent=0
    #allocation2 [shape = 'u8[327680]{0}', space=vmem, size = 0x50000, scoped, tag = 'output window, operand 0, single buffered']
    #allocation3 [shape = 's32[1]{0}', space=sflag, size = 0x4, scoped, tag = 'scoped memory for tpu_custom_call.1']
    %10 = vsyncpa [#allocation3], 0
    // Predicated region
    $region2: #{tpu_custom_call.1} parent=1 // pred_check
      _
    $region3: #{tpu_custom_call.1} parent=1 // pred_check_branch
      %12 = sbr.rel (0) target = $region5
    $region4: #{tpu_custom_call.1} parent=1 // pred_region
      _
    $region5: #{tpu_custom_call.1} parent=1 // pred_fallthru
      _
    // Predicated region
    $region6: #{tpu_custom_call.1} parent=1 // pred_check
      _
    $region7: #{tpu_custom_call.1} parent=1 // pred_check_branch
      %14 = sbr.rel (0) target = $region9
    $region8: #{tpu_custom_call.1} parent=1 // pred_region
      _
    $region9: #{tpu_custom_call.1} parent=1 // pred_fallthru
      _
    // Predicated region
    $region10: #{tpu_custom_call.1} parent=1 // pred_check
      _
    $region11: #{tpu_custom_call.1} parent=1 // pred_check_branch
      %16 = sbr.rel (0) target = $region13
    $region12: #{tpu_custom_call.1} parent=1 // pred_region
      _
    $region13: #{tpu_custom_call.1} parent=1 // pred_fallthru
      _
    // Predicated region
    $region14: #{tpu_custom_call.1} parent=1 // pred_check
      _
    $region15: #{tpu_custom_call.1} parent=1 // pred_check_branch
      %18 = sbr.rel (0) target = $region17
    $region16: #{tpu_custom_call.1} parent=1 // pred_region
      _
    $region17: #{tpu_custom_call.1} parent=1 // pred_fallthru
      _
    // Predicated region
    $region18: #{tpu_custom_call.1} parent=1 // pred_check
      _
    $region19: #{tpu_custom_call.1} parent=1 // pred_check_branch
      %20 = sbr.rel (0) target = $region21
    $region20: #{tpu_custom_call.1} parent=1 // pred_region
      _
    $region21: #{tpu_custom_call.1} parent=1 // pred_fallthru
      _
    %v22 = vld [vmem:[%s0] sm:$0xff]
    %v23 = vld [vmem:[%s0 + $0x8] sm:$0xff]
    %v24 = vld [vmem:[%s0 + $0x10] sm:$0xf]
    %v25 = vld [vmem:[%s0 + $0x14] sm:$0xff]
    %v26 = vld [vmem:[%s0 + $0x1c] sm:$0xff]
    %v27 = vld [vmem:[%s0 + $0x24] sm:$0xf]
    %v28 = vld [vmem:[%s0 + $0x28] sm:$0xff]
    %v29 = vld [vmem:[%s0 + $0x30] sm:$0xff]
    %v30 = vld [vmem:[%s0 + $0x38] sm:$0xf]
    %v31 = vld [vmem:[%s0 + $0x3c] sm:$0xff]
    %v32 = vld [vmem:[%s0 + $0x44] sm:$0xff]
    %v33 = vld [vmem:[%s0 + $0x4c] sm:$0xf]
    %v34 = vld [vmem:[%s0 + $0x50] sm:$0xff]
    %v35 = vld [vmem:[%s0 + $0x58] sm:$0xff]
    %v36 = vld [vmem:[%s0 + $0x60] sm:$0xf]
    %v37 = vld [vmem:[%s0 + $0x64] sm:$0xff]
    %v38 = vld [vmem:[%s0 + $0x6c] sm:$0xff]
    %v39 = vld [vmem:[%s0 + $0x74] sm:$0xf]
    %v40 = vld [vmem:[%s0 + $0x78] sm:$0xff]
    %v41 = vld [vmem:[%s0 + $0x80] sm:$0xff]
    %v42 = vld [vmem:[%s0 + $0x88] sm:$0xf]
    %v43 = vld [vmem:[%s0 + $0x8c] sm:$0xff]
    %v44 = vld [vmem:[%s0 + $0x94] sm:$0xff]
    %v45 = vld [vmem:[%s0 + $0x9c] sm:$0xf]
    %v46 = vld [vmem:[%s0 + $0xa0] sm:$0xff]
    %v47 = vld [vmem:[%s0 + $0xa8] sm:$0xff]
    %v48 = vld [vmem:[%s0 + $0xb0] sm:$0xf]
    %v49 = vld [vmem:[%s0 + $0xb4] sm:$0xff]
    %v50 = vld [vmem:[%s0 + $0xbc] sm:$0xff]
    %v51 = vld [vmem:[%s0 + $0xc4] sm:$0xf]
    %v52 = vld [vmem:[%s0 + $0xc8] sm:$0xff]
    %v53 = vld [vmem:[%s0 + $0xd0] sm:$0xff]
    %v54 = vld [vmem:[%s0 + $0xd8] sm:$0xf]
    %v55 = vld [vmem:[%s0 + $0xdc] sm:$0xff]
    %v56 = vld [vmem:[%s0 + $0xe4] sm:$0xff]
    %v57 = vld [vmem:[%s0 + $0xec] sm:$0xf]
    %v58 = vld [vmem:[%s0 + $0xf0] sm:$0xff]
    %v59 = vld [vmem:[%s0 + $0xf8] sm:$0xff]
    %v60 = vld [vmem:[%s0 + $0x100] sm:$0xf]
    %v61 = vld [vmem:[%s0 + $0x104] sm:$0xff]
    %v62 = vld [vmem:[%s0 + $0x10c] sm:$0xff]
    %v63 = vld [vmem:[%s0 + $0x114] sm:$0xf]
    %v64 = vld [vmem:[%s0 + $0x118] sm:$0xff]
    %v65 = vld [vmem:[%s0 + $0x120] sm:$0xff]
    %v66 = vld [vmem:[%s0 + $0x128] sm:$0xf]
    %v67 = vld [vmem:[%s0 + $0x12c] sm:$0xff]
    %v68 = vld [vmem:[%s0 + $0x134] sm:$0xff]
    %v69 = vld [vmem:[%s0 + $0x13c] sm:$0xf]
    %v70 = vld [vmem:[%s0 + $0x140] sm:$0xff]
    %v71 = vld [vmem:[%s0 + $0x148] sm:$0xff]
    %v72 = vld [vmem:[%s0 + $0x150] sm:$0xf]
    %v73 = vld [vmem:[%s0 + $0x154] sm:$0xff]
    %v74 = vld [vmem:[%s0 + $0x15c] sm:$0xff]
    %v75 = vld [vmem:[%s0 + $0x164] sm:$0xf]
    %v76 = vld [vmem:[%s0 + $0x168] sm:$0xff]
    %v77 = vld [vmem:[%s0 + $0x170] sm:$0xff]
    %v78 = vld [vmem:[%s0 + $0x178] sm:$0xf]
    %v79 = vld [vmem:[%s0 + $0x17c] sm:$0xff]
    %v80 = vld [vmem:[%s0 + $0x184] sm:$0xff]
    %v81 = vld [vmem:[%s0 + $0x18c] sm:$0xf]
    %v82 = vld [vmem:[%s0 + $0x190] sm:$0xff]
    %v83 = vld [vmem:[%s0 + $0x198] sm:$0xff]
    %v84 = vld [vmem:[%s0 + $0x1a0] sm:$0xf]
    %v85 = vld [vmem:[%s0 + $0x1a4] sm:$0xff]
    %v86 = vld [vmem:[%s0 + $0x1ac] sm:$0xff]
    %v87 = vld [vmem:[%s0 + $0x1b4] sm:$0xf]
    %v88 = vld [vmem:[%s0 + $0x1b8] sm:$0xff]
    %v89 = vld [vmem:[%s0 + $0x1c0] sm:$0xff]
    %v90 = vld [vmem:[%s0 + $0x1c8] sm:$0xf]
    %v91 = vld [vmem:[%s0 + $0x1cc] sm:$0xff]
    %v92 = vld [vmem:[%s0 + $0x1d4] sm:$0xff]
    %v93 = vld [vmem:[%s0 + $0x1dc] sm:$0xf]
    %v94 = vld [vmem:[%s0 + $0x1e0] sm:$0xff]
    %v95 = vld [vmem:[%s0 + $0x1e8] sm:$0xff]
    %v96 = vld [vmem:[%s0 + $0x1f0] sm:$0xf]
    %v97 = vld [vmem:[%s0 + $0x1f4] sm:$0xff]
    %v98 = vld [vmem:[%s0 + $0x1fc] sm:$0xff]
    %v99 = vld [vmem:[%s0 + $0x204] sm:$0xf]
    %v100 = vld [vmem:[%s0 + $0x208] sm:$0xff]
    %v101 = vld [vmem:[%s0 + $0x210] sm:$0xff]
    %v102 = vld [vmem:[%s0 + $0x218] sm:$0xf]
    %v103 = vld [vmem:[%s0 + $0x21c] sm:$0xff]
    %v104 = vld [vmem:[%s0 + $0x224] sm:$0xff]
    %v105 = vld [vmem:[%s0 + $0x22c] sm:$0xf]
    %v106 = vld [vmem:[%s0 + $0x230] sm:$0xff]
    %v107 = vld [vmem:[%s0 + $0x238] sm:$0xff]
    %v108 = vld [vmem:[%s0 + $0x240] sm:$0xf]
    %v109 = vld [vmem:[%s0 + $0x244] sm:$0xff]
    %v110 = vld [vmem:[%s0 + $0x24c] sm:$0xff]
    %v111 = vld [vmem:[%s0 + $0x254] sm:$0xf]
    %v112 = vld [vmem:[%s0 + $0x258] sm:$0xff]
    %v113 = vld [vmem:[%s0 + $0x260] sm:$0xff]
    %v114 = vld [vmem:[%s0 + $0x268] sm:$0xf]
    %v115 = vld [vmem:[%s0 + $0x26c] sm:$0xff]
    %v116 = vld [vmem:[%s0 + $0x274] sm:$0xff]
    %v117 = vld [vmem:[%s0 + $0x27c] sm:$0xf]
    %v118 = vld [vmem:[%s0 + $0x280] sm:$0xff]
    %v119 = vld [vmem:[%s0 + $0x288] sm:$0xff]
    %v120 = vld [vmem:[%s0 + $0x290] sm:$0xf]
    %v121 = vld [vmem:[%s0 + $0x294] sm:$0xff]
    %v122 = vld [vmem:[%s0 + $0x29c] sm:$0xff]
    %v123 = vld [vmem:[%s0 + $0x2a4] sm:$0xf]
    %v124 = vld [vmem:[%s0 + $0x2a8] sm:$0xff]
    %v125 = vld [vmem:[%s0 + $0x2b0] sm:$0xff]
    %v126 = vld [vmem:[%s0 + $0x2b8] sm:$0xf]
    %v127 = vld [vmem:[%s0 + $0x2bc] sm:$0xff]
    %v128 = vld [vmem:[%s0 + $0x2c4] sm:$0xff]
    %v129 = vld [vmem:[%s0 + $0x2cc] sm:$0xf]
    %v130 = vld [vmem:[%s0 + $0x2d0] sm:$0xff]
    %v131 = vld [vmem:[%s0 + $0x2d8] sm:$0xff]
    %v132 = vld [vmem:[%s0 + $0x2e0] sm:$0xf]
    %v133 = vld [vmem:[%s0 + $0x2e4] sm:$0xff]
    %v134 = vld [vmem:[%s0 + $0x2ec] sm:$0xff]
    %v135 = vld [vmem:[%s0 + $0x2f4] sm:$0xf]
    %v136 = vld [vmem:[%s0 + $0x2f8] sm:$0xff]
    %v137 = vld [vmem:[%s0 + $0x300] sm:$0xff]
    %v138 = vld [vmem:[%s0 + $0x308] sm:$0xf]
    %v139 = vld [vmem:[%s0 + $0x30c] sm:$0xff]
    %v140 = vld [vmem:[%s0 + $0x314] sm:$0xff]
    %v141 = vld [vmem:[%s0 + $0x31c] sm:$0xf]
    %v142 = vld [vmem:[%s1] sm:$0xff]
    %v143 = vld [vmem:[%s1 + $0x8] sm:$0xff]
    %v144 = vld [vmem:[%s1 + $0x10] sm:$0xff]
    %v145 = vld [vmem:[%s1 + $0x18] sm:$0xff]
    %v146 = vld [vmem:[%s1 + $0x20] sm:$0xff]
    %v147 = vld [vmem:[%s1 + $0x28] sm:$0xff]
    %v148 = vld [vmem:[%s1 + $0x30] sm:$0xff]
    %v149 = vld [vmem:[%s1 + $0x38] sm:$0xff]
    %v150 = vld [vmem:[%s1 + $0x40] sm:$0xff]
    %v151 = vld [vmem:[%s1 + $0x48] sm:$0xff]
    %v152 = vld [vmem:[%s1 + $0x50] sm:$0xff]
    %v153 = vld [vmem:[%s1 + $0x58] sm:$0xff]
    %v154 = vld [vmem:[%s1 + $0x60] sm:$0xff]
    %v155 = vld [vmem:[%s1 + $0x68] sm:$0xff]
    %v156 = vld [vmem:[%s1 + $0x70] sm:$0xff]
    %v157 = vld [vmem:[%s1 + $0x78] sm:$0xff]
    %v158 = vld [vmem:[%s1 + $0x80] sm:$0xff]
    %v159 = vld [vmem:[%s1 + $0x88] sm:$0xff]
    %v160 = vld [vmem:[%s1 + $0x90] sm:$0xff]
    %v161 = vld [vmem:[%s1 + $0x98] sm:$0xff]
    %v162 = vld [vmem:[%s1 + $0xa0] sm:$0xff]
    %v163 = vld [vmem:[%s1 + $0xa8] sm:$0xff]
    %v164 = vld [vmem:[%s1 + $0xb0] sm:$0xff]
    %v165 = vld [vmem:[%s1 + $0xb8] sm:$0xff]
    %v166 = vld [vmem:[%s1 + $0xc0] sm:$0xff]
    %v167 = vld [vmem:[%s1 + $0xc8] sm:$0xff]
    %v168 = vld [vmem:[%s1 + $0xd0] sm:$0xff]
    %v169 = vld [vmem:[%s1 + $0xd8] sm:$0xff]
    %v170 = vld [vmem:[%s1 + $0xe0] sm:$0xff]
    %v171 = vld [vmem:[%s1 + $0xe8] sm:$0xff]
    %v172 = vld [vmem:[%s1 + $0xf0] sm:$0xff]
    %v173 = vld [vmem:[%s1 + $0xf8] sm:$0xff]
    %v174 = vld [vmem:[%s1 + $0x100] sm:$0xff]
    %v175 = vld [vmem:[%s1 + $0x108] sm:$0xff]
    %v176 = vld [vmem:[%s1 + $0x110] sm:$0xff]
    %v177 = vld [vmem:[%s1 + $0x118] sm:$0xff]
    %v178 = vld [vmem:[%s1 + $0x120] sm:$0xff]
    %v179 = vld [vmem:[%s1 + $0x128] sm:$0xff]
    %v180 = vld [vmem:[%s1 + $0x130] sm:$0xff]
    %v181 = vld [vmem:[%s1 + $0x138] sm:$0xff]
    %v182 = vld [vmem:[%s1 + $0x140] sm:$0xff]
    %v183 = vld [vmem:[%s1 + $0x148] sm:$0xff]
    %v184 = vld [vmem:[%s1 + $0x150] sm:$0xff]
    %v185 = vld [vmem:[%s1 + $0x158] sm:$0xff]
    %v186 = vld [vmem:[%s1 + $0x160] sm:$0xff]
    %v187 = vld [vmem:[%s1 + $0x168] sm:$0xff]
    %v188 = vld [vmem:[%s1 + $0x170] sm:$0xff]
    %v189 = vld [vmem:[%s1 + $0x178] sm:$0xff]
    %v190 = vld [vmem:[%s1 + $0x180] sm:$0xff]
    %v191 = vld [vmem:[%s1 + $0x188] sm:$0xff]
    %v192 = vld [vmem:[%s1 + $0x190] sm:$0xff]
    %v193 = vld [vmem:[%s1 + $0x198] sm:$0xff]
    %v194 = vld [vmem:[%s1 + $0x1a0] sm:$0xff]
    %v195 = vld [vmem:[%s1 + $0x1a8] sm:$0xff]
    %v196 = vld [vmem:[%s1 + $0x1b0] sm:$0xff]
    %v197 = vld [vmem:[%s1 + $0x1b8] sm:$0xff]
    %v198 = vld [vmem:[%s1 + $0x1c0] sm:$0xff]
    %v199 = vld [vmem:[%s1 + $0x1c8] sm:$0xff]
    %v200 = vld [vmem:[%s1 + $0x1d0] sm:$0xff]
    %v201 = vld [vmem:[%s1 + $0x1d8] sm:$0xff]
    %v202 = vld [vmem:[%s1 + $0x1e0] sm:$0xff]
    %v203 = vld [vmem:[%s1 + $0x1e8] sm:$0xff]
    %v204 = vld [vmem:[%s1 + $0x1f0] sm:$0xff]
    %v205 = vld [vmem:[%s1 + $0x1f8] sm:$0xff]
    %v206 = vld [vmem:[%s1 + $0x200] sm:$0xff]
    %v207 = vld [vmem:[%s1 + $0x208] sm:$0xff]
    %v208 = vld [vmem:[%s1 + $0x210] sm:$0xff]
    %v209 = vld [vmem:[%s1 + $0x218] sm:$0xff]
    %v210 = vld [vmem:[%s1 + $0x220] sm:$0xff]
    %v211 = vld [vmem:[%s1 + $0x228] sm:$0xff]
    %v212 = vld [vmem:[%s1 + $0x230] sm:$0xff]
    %v213 = vld [vmem:[%s1 + $0x238] sm:$0xff]
    %v214 = vld [vmem:[%s1 + $0x240] sm:$0xff]
    %v215 = vld [vmem:[%s1 + $0x248] sm:$0xff]
    %v216 = vld [vmem:[%s1 + $0x250] sm:$0xff]
    %v217 = vld [vmem:[%s1 + $0x258] sm:$0xff]
    %v218 = vld [vmem:[%s1 + $0x260] sm:$0xff]
    %v219 = vld [vmem:[%s1 + $0x268] sm:$0xff]
    %v220 = vld [vmem:[%s1 + $0x270] sm:$0xff]
    %v221 = vld [vmem:[%s1 + $0x278] sm:$0xff]
    %v222 = vld [vmem:[%s1 + $0x280] sm:$0xff]
    %v223 = vld [vmem:[%s1 + $0x288] sm:$0xff]
    %v224 = vld [vmem:[%s1 + $0x290] sm:$0xff]
    %v225 = vld [vmem:[%s1 + $0x298] sm:$0xff]
    %v226 = vld [vmem:[%s1 + $0x2a0] sm:$0xff]
    %v227 = vld [vmem:[%s1 + $0x2a8] sm:$0xff]
    %v228 = vld [vmem:[%s1 + $0x2b0] sm:$0xff]
    %v229 = vld [vmem:[%s1 + $0x2b8] sm:$0xff]
    %v230 = vld [vmem:[%s1 + $0x2c0] sm:$0xff]
    %v231 = vld [vmem:[%s1 + $0x2c8] sm:$0xff]
    %v232 = vld [vmem:[%s1 + $0x2d0] sm:$0xff]
    %v233 = vld [vmem:[%s1 + $0x2d8] sm:$0xff]
    %v234 = vld [vmem:[%s1 + $0x2e0] sm:$0xff]
    %v235 = vld [vmem:[%s1 + $0x2e8] sm:$0xff]
    %v236 = vld [vmem:[%s1 + $0x2f0] sm:$0xff]
    %v237 = vld [vmem:[%s1 + $0x2f8] sm:$0xff]
    %v238 = vld [vmem:[%s1 + $0x300] sm:$0xff]
    %v239 = vld [vmem:[%s1 + $0x308] sm:$0xff]
    %v240 = vld [vmem:[%s1 + $0x310] sm:$0xff]
    %v241 = vld [vmem:[%s1 + $0x318] sm:$0xff]
    %v242 = vld [vmem:[%s1 + $0x320] sm:$0xff]
    %v243 = vld [vmem:[%s1 + $0x328] sm:$0xff]
    %v244 = vld [vmem:[%s1 + $0x330] sm:$0xff]
    %v245 = vld [vmem:[%s1 + $0x338] sm:$0xff]
    %v246 = vld [vmem:[%s1 + $0x340] sm:$0xff]
    %v247 = vld [vmem:[%s1 + $0x348] sm:$0xff]
    %v248 = vld [vmem:[%s1 + $0x350] sm:$0xff]
    %v249 = vld [vmem:[%s1 + $0x358] sm:$0xff]
    %v250 = vld [vmem:[%s1 + $0x360] sm:$0xff]
    %v251 = vld [vmem:[%s1 + $0x368] sm:$0xff]
    %v252 = vld [vmem:[%s1 + $0x370] sm:$0xff]
    %v253 = vld [vmem:[%s1 + $0x378] sm:$0xff]
    %v254 = vld [vmem:[%s1 + $0x380] sm:$0xff]
    %v255 = vld [vmem:[%s1 + $0x388] sm:$0xff]
    %v256 = vld [vmem:[%s1 + $0x390] sm:$0xff]
    %v257 = vld [vmem:[%s1 + $0x398] sm:$0xff]
    %v258 = vld [vmem:[%s1 + $0x3a0] sm:$0xff]
    %v259 = vld [vmem:[%s1 + $0x3a8] sm:$0xff]
    %v260 = vld [vmem:[%s1 + $0x3b0] sm:$0xff]
    %v261 = vld [vmem:[%s1 + $0x3b8] sm:$0xff]
    %v262 = vld [vmem:[%s1 + $0x3c0] sm:$0xff]
    %v263 = vld [vmem:[%s1 + $0x3c8] sm:$0xff]
    %v264 = vld [vmem:[%s1 + $0x3d0] sm:$0xff]
    %v265 = vld [vmem:[%s1 + $0x3d8] sm:$0xff]
    %v266 = vld [vmem:[%s1 + $0x3e0] sm:$0xff]
    %v267 = vld [vmem:[%s1 + $0x3e8] sm:$0xff]
    %v268 = vld [vmem:[%s1 + $0x3f0] sm:$0xff]
    %v269 = vld [vmem:[%s1 + $0x3f8] sm:$0xff]
    %v270 = vld [vmem:[%s1 + $0x400] sm:$0xff]
    %v271 = vld [vmem:[%s1 + $0x408] sm:$0xff]
    %v272 = vld [vmem:[%s1 + $0x410] sm:$0x11]
    %v273 = vld [vmem:[%s1 + $0x418] sm:$0x11]
    %v274 = vld [vmem:[%s2] sm:$0xf]
    %v276 = vperm.slane %v274, 0
    %v277 = vperm.slane %v274, 1
    %v278 = vperm.slane %v274, 2
    %v279 = vperm.slane %v274, 3
    %v404 = vunpack.c.l.b16 %v22
    %v405 = vunpack.c.h.b16 %v22
    %v406 = vunpack.c.l.b16 %v23
    %v407 = vunpack.c.h.b16 %v23
    %v408 = vunpack.c.l.b16 %v24
    %v409 = vunpack.c.l.b16 %v25
    %v410 = vunpack.c.h.b16 %v25
    %v411 = vunpack.c.l.b16 %v26
    %v412 = vunpack.c.h.b16 %v26
    %v413 = vunpack.c.l.b16 %v27
    %v414 = vunpack.c.l.b16 %v28
    %v415 = vunpack.c.h.b16 %v28
    %v416 = vunpack.c.l.b16 %v29
    %v417 = vunpack.c.h.b16 %v29
    %v418 = vunpack.c.l.b16 %v30
    %v419 = vunpack.c.l.b16 %v31
    %v420 = vunpack.c.h.b16 %v31
    %v421 = vunpack.c.l.b16 %v32
    %v422 = vunpack.c.h.b16 %v32
    %v423 = vunpack.c.l.b16 %v33
    %v424 = vunpack.c.l.b16 %v34
    %v425 = vunpack.c.h.b16 %v34
    %v426 = vunpack.c.l.b16 %v35
    %v427 = vunpack.c.h.b16 %v35
    %v428 = vunpack.c.l.b16 %v36
    %v429 = vunpack.c.l.b16 %v37
    %v430 = vunpack.c.h.b16 %v37
    %v431 = vunpack.c.l.b16 %v38
    %v432 = vunpack.c.h.b16 %v38
    %v433 = vunpack.c.l.b16 %v39
    %v434 = vunpack.c.l.b16 %v40
    %v435 = vunpack.c.h.b16 %v40
    %v436 = vunpack.c.l.b16 %v41
    %v437 = vunpack.c.h.b16 %v41
    %v438 = vunpack.c.l.b16 %v42
    %v439 = vunpack.c.l.b16 %v43
    %v440 = vunpack.c.h.b16 %v43
    %v441 = vunpack.c.l.b16 %v44
    %v442 = vunpack.c.h.b16 %v44
    %v443 = vunpack.c.l.b16 %v45
    %v444 = vunpack.c.l.b16 %v46
    %v445 = vunpack.c.h.b16 %v46
    %v446 = vunpack.c.l.b16 %v47
    %v447 = vunpack.c.h.b16 %v47
    %v448 = vunpack.c.l.b16 %v48
    %v449 = vunpack.c.l.b16 %v49
    %v450 = vunpack.c.h.b16 %v49
    %v451 = vunpack.c.l.b16 %v50
    %v452 = vunpack.c.h.b16 %v50
    %v453 = vunpack.c.l.b16 %v51
    %v454 = vunpack.c.l.b16 %v52
    %v455 = vunpack.c.h.b16 %v52
    %v456 = vunpack.c.l.b16 %v53
    %v457 = vunpack.c.h.b16 %v53
    %v458 = vunpack.c.l.b16 %v54
    %v459 = vunpack.c.l.b16 %v55
    %v460 = vunpack.c.h.b16 %v55
    %v461 = vunpack.c.l.b16 %v56
    %v462 = vunpack.c.h.b16 %v56
    %v463 = vunpack.c.l.b16 %v57
    %v464 = vunpack.c.l.b16 %v58
    %v465 = vunpack.c.h.b16 %v58
    %v466 = vunpack.c.l.b16 %v59
    %v467 = vunpack.c.h.b16 %v59
    %v468 = vunpack.c.l.b16 %v60
    %v469 = vunpack.c.l.b16 %v61
    %v470 = vunpack.c.h.b16 %v61
    %v471 = vunpack.c.l.b16 %v62
    %v472 = vunpack.c.h.b16 %v62
    %v473 = vunpack.c.l.b16 %v63
    %v474 = vunpack.c.l.b16 %v64
    %v475 = vunpack.c.h.b16 %v64
    %v476 = vunpack.c.l.b16 %v65
    %v477 = vunpack.c.h.b16 %v65
    %v478 = vunpack.c.l.b16 %v66
    %v479 = vunpack.c.l.b16 %v67
    %v480 = vunpack.c.h.b16 %v67
    %v481 = vunpack.c.l.b16 %v68
    %v482 = vunpack.c.h.b16 %v68
    %v483 = vunpack.c.l.b16 %v69
    %v484 = vunpack.c.l.b16 %v70
    %v485 = vunpack.c.h.b16 %v70
    %v486 = vunpack.c.l.b16 %v71
    %v487 = vunpack.c.h.b16 %v71
    %v488 = vunpack.c.l.b16 %v72
    %v489 = vunpack.c.l.b16 %v73
    %v490 = vunpack.c.h.b16 %v73
    %v491 = vunpack.c.l.b16 %v74
    %v492 = vunpack.c.h.b16 %v74
    %v493 = vunpack.c.l.b16 %v75
    %v494 = vunpack.c.l.b16 %v76
    %v495 = vunpack.c.h.b16 %v76
    %v496 = vunpack.c.l.b16 %v77
    %v497 = vunpack.c.h.b16 %v77
    %v498 = vunpack.c.l.b16 %v78
    %v499 = vunpack.c.l.b16 %v79
    %v500 = vunpack.c.h.b16 %v79
    %v501 = vunpack.c.l.b16 %v80
    %v502 = vunpack.c.h.b16 %v80
    %v503 = vunpack.c.l.b16 %v81
    %v504 = vunpack.c.l.b16 %v82
    %v505 = vunpack.c.h.b16 %v82
    %v506 = vunpack.c.l.b16 %v83
    %v507 = vunpack.c.h.b16 %v83
    %v508 = vunpack.c.l.b16 %v84
    %v509 = vunpack.c.l.b16 %v85
    %v510 = vunpack.c.h.b16 %v85
    %v511 = vunpack.c.l.b16 %v86
    %v512 = vunpack.c.h.b16 %v86
    %v513 = vunpack.c.l.b16 %v87
    %v514 = vunpack.c.l.b16 %v88
    %v515 = vunpack.c.h.b16 %v88
    %v516 = vunpack.c.l.b16 %v89
    %v517 = vunpack.c.h.b16 %v89
    %v518 = vunpack.c.l.b16 %v90
    %v519 = vunpack.c.l.b16 %v91
    %v520 = vunpack.c.h.b16 %v91
    %v521 = vunpack.c.l.b16 %v92
    %v522 = vunpack.c.h.b16 %v92
    %v523 = vunpack.c.l.b16 %v93
    %v524 = vunpack.c.l.b16 %v94
    %v525 = vunpack.c.h.b16 %v94
    %v526 = vunpack.c.l.b16 %v95
    %v527 = vunpack.c.h.b16 %v95
    %v528 = vunpack.c.l.b16 %v96
    %v529 = vunpack.c.l.b16 %v97
    %v530 = vunpack.c.h.b16 %v97
    %v531 = vunpack.c.l.b16 %v98
    %v532 = vunpack.c.h.b16 %v98
    %v533 = vunpack.c.l.b16 %v99
    %v534 = vunpack.c.l.b16 %v100
    %v535 = vunpack.c.h.b16 %v100
    %v536 = vunpack.c.l.b16 %v101
    %v537 = vunpack.c.h.b16 %v101
    %v538 = vunpack.c.l.b16 %v102
    %v539 = vunpack.c.l.b16 %v103
    %v540 = vunpack.c.h.b16 %v103
    %v541 = vunpack.c.l.b16 %v104
    %v542 = vunpack.c.h.b16 %v104
    %v543 = vunpack.c.l.b16 %v105
    %v544 = vunpack.c.l.b16 %v106
    %v545 = vunpack.c.h.b16 %v106
    %v546 = vunpack.c.l.b16 %v107
    %v547 = vunpack.c.h.b16 %v107
    %v548 = vunpack.c.l.b16 %v108
    %v549 = vunpack.c.l.b16 %v109
    %v550 = vunpack.c.h.b16 %v109
    %v551 = vunpack.c.l.b16 %v110
    %v552 = vunpack.c.h.b16 %v110
    %v553 = vunpack.c.l.b16 %v111
    %v554 = vunpack.c.l.b16 %v112
    %v555 = vunpack.c.h.b16 %v112
    %v556 = vunpack.c.l.b16 %v113
    %v557 = vunpack.c.h.b16 %v113
    %v558 = vunpack.c.l.b16 %v114
    %v559 = vunpack.c.l.b16 %v115
    %v560 = vunpack.c.h.b16 %v115
    %v561 = vunpack.c.l.b16 %v116
    %v562 = vunpack.c.h.b16 %v116
    %v563 = vunpack.c.l.b16 %v117
    %v564 = vunpack.c.l.b16 %v118
    %v565 = vunpack.c.h.b16 %v118
    %v566 = vunpack.c.l.b16 %v119
    %v567 = vunpack.c.h.b16 %v119
    %v568 = vunpack.c.l.b16 %v120
    %v569 = vunpack.c.l.b16 %v121
    %v570 = vunpack.c.h.b16 %v121
    %v571 = vunpack.c.l.b16 %v122
    %v572 = vunpack.c.h.b16 %v122
    %v573 = vunpack.c.l.b16 %v123
    %v574 = vunpack.c.l.b16 %v124
    %v575 = vunpack.c.h.b16 %v124
    %v576 = vunpack.c.l.b16 %v125
    %v577 = vunpack.c.h.b16 %v125
    %v578 = vunpack.c.l.b16 %v126
    %v579 = vunpack.c.l.b16 %v127
    %v580 = vunpack.c.h.b16 %v127
    %v581 = vunpack.c.l.b16 %v128
    %v582 = vunpack.c.h.b16 %v128
    %v583 = vunpack.c.l.b16 %v129
    %v584 = vunpack.c.l.b16 %v130
    %v585 = vunpack.c.h.b16 %v130
    %v586 = vunpack.c.l.b16 %v131
    %v587 = vunpack.c.h.b16 %v131
    %v588 = vunpack.c.l.b16 %v132
    %v589 = vunpack.c.l.b16 %v133
    %v590 = vunpack.c.h.b16 %v133
    %v591 = vunpack.c.l.b16 %v134
    %v592 = vunpack.c.h.b16 %v134
    %v593 = vunpack.c.l.b16 %v135
    %v594 = vunpack.c.l.b16 %v136
    %v595 = vunpack.c.h.b16 %v136
    %v596 = vunpack.c.l.b16 %v137
    %v597 = vunpack.c.h.b16 %v137
    %v598 = vunpack.c.l.b16 %v138
    %v599 = vunpack.c.l.b16 %v139
    %v600 = vunpack.c.h.b16 %v139
    %v601 = vunpack.c.l.b16 %v140
    %v602 = vunpack.c.h.b16 %v140
    %v603 = vunpack.c.l.b16 %v141
    %v604 = vpack.c.b16 %v409, %v404
    %v605 = vpack.c.b16 %v410, %v405
    %v606 = vpack.c.b16 %v411, %v406
    %v607 = vpack.c.b16 %v412, %v407
    %v608 = vpack.c.b16 %v413, %v408
    %v609 = vpack.c.b16 %v419, %v414
    %v610 = vpack.c.b16 %v420, %v415
    %v611 = vpack.c.b16 %v421, %v416
    %v612 = vpack.c.b16 %v422, %v417
    %v613 = vpack.c.b16 %v423, %v418
    %v614 = vpack.c.b16 %v429, %v424
    %v615 = vpack.c.b16 %v430, %v425
    %v616 = vpack.c.b16 %v431, %v426
    %v617 = vpack.c.b16 %v432, %v427
    %v618 = vpack.c.b16 %v433, %v428
    %v619 = vpack.c.b16 %v439, %v434
    %v620 = vpack.c.b16 %v440, %v435
    %v621 = vpack.c.b16 %v441, %v436
    %v622 = vpack.c.b16 %v442, %v437
    %v623 = vpack.c.b16 %v443, %v438
    %v624 = vpack.c.b16 %v449, %v444
    %v625 = vpack.c.b16 %v450, %v445
    %v626 = vpack.c.b16 %v451, %v446
    %v627 = vpack.c.b16 %v452, %v447
    %v628 = vpack.c.b16 %v453, %v448
    %v629 = vpack.c.b16 %v459, %v454
    %v630 = vpack.c.b16 %v460, %v455
    %v631 = vpack.c.b16 %v461, %v456
    %v632 = vpack.c.b16 %v462, %v457
    %v633 = vpack.c.b16 %v463, %v458
    %v634 = vpack.c.b16 %v469, %v464
    %v635 = vpack.c.b16 %v470, %v465
    %v636 = vpack.c.b16 %v471, %v466
    %v637 = vpack.c.b16 %v472, %v467
    %v638 = vpack.c.b16 %v473, %v468
    %v639 = vpack.c.b16 %v479, %v474
    %v640 = vpack.c.b16 %v480, %v475
    %v641 = vpack.c.b16 %v481, %v476
    %v642 = vpack.c.b16 %v482, %v477
    %v643 = vpack.c.b16 %v483, %v478
    %v644 = vpack.c.b16 %v489, %v484
    %v645 = vpack.c.b16 %v490, %v485
    %v646 = vpack.c.b16 %v491, %v486
    %v647 = vpack.c.b16 %v492, %v487
    %v648 = vpack.c.b16 %v493, %v488
    %v649 = vpack.c.b16 %v499, %v494
    %v650 = vpack.c.b16 %v500, %v495
    %v651 = vpack.c.b16 %v501, %v496
    %v652 = vpack.c.b16 %v502, %v497
    %v653 = vpack.c.b16 %v503, %v498
    %v654 = vpack.c.b16 %v509, %v504
    %v655 = vpack.c.b16 %v510, %v505
    %v656 = vpack.c.b16 %v511, %v506
    %v657 = vpack.c.b16 %v512, %v507
    %v658 = vpack.c.b16 %v513, %v508
    %v659 = vpack.c.b16 %v519, %v514
    %v660 = vpack.c.b16 %v520, %v515
    %v661 = vpack.c.b16 %v521, %v516
    %v662 = vpack.c.b16 %v522, %v517
    %v663 = vpack.c.b16 %v523, %v518
    %v664 = vpack.c.b16 %v529, %v524
    %v665 = vpack.c.b16 %v530, %v525
    %v666 = vpack.c.b16 %v531, %v526
    %v667 = vpack.c.b16 %v532, %v527
    %v668 = vpack.c.b16 %v533, %v528
    %v669 = vpack.c.b16 %v539, %v534
    %v670 = vpack.c.b16 %v540, %v535
    %v671 = vpack.c.b16 %v541, %v536
    %v672 = vpack.c.b16 %v542, %v537
    %v673 = vpack.c.b16 %v543, %v538
    %v674 = vpack.c.b16 %v549, %v544
    %v675 = vpack.c.b16 %v550, %v545
    %v676 = vpack.c.b16 %v551, %v546
    %v677 = vpack.c.b16 %v552, %v547
    %v678 = vpack.c.b16 %v553, %v548
    %v679 = vpack.c.b16 %v559, %v554
    %v680 = vpack.c.b16 %v560, %v555
    %v681 = vpack.c.b16 %v561, %v556
    %v682 = vpack.c.b16 %v562, %v557
    %v683 = vpack.c.b16 %v563, %v558
    %v684 = vpack.c.b16 %v569, %v564
    %v685 = vpack.c.b16 %v570, %v565
    %v686 = vpack.c.b16 %v571, %v566
    %v687 = vpack.c.b16 %v572, %v567
    %v688 = vpack.c.b16 %v573, %v568
    %v689 = vpack.c.b16 %v579, %v574
    %v690 = vpack.c.b16 %v580, %v575
    %v691 = vpack.c.b16 %v581, %v576
    %v692 = vpack.c.b16 %v582, %v577
    %v693 = vpack.c.b16 %v583, %v578
    %v694 = vpack.c.b16 %v589, %v584
    %v695 = vpack.c.b16 %v590, %v585
    %v696 = vpack.c.b16 %v591, %v586
    %v697 = vpack.c.b16 %v592, %v587
    %v698 = vpack.c.b16 %v593, %v588
    %v699 = vpack.c.b16 %v599, %v594
    %v700 = vpack.c.b16 %v600, %v595
    %v701 = vpack.c.b16 %v601, %v596
    %v702 = vpack.c.b16 %v602, %v597
    %v703 = vpack.c.b16 %v603, %v598
    %v916 = vunpack.c.l.b16 %v142
    %v917 = vunpack.c.h.b16 %v142
    %v918 = vunpack.c.l.b16 %v143
    %v919 = vunpack.c.h.b16 %v143
    %v920 = vunpack.c.l.b16 %v144
    %v921 = vunpack.c.h.b16 %v144
    %v922 = vunpack.c.l.b16 %v145
    %v923 = vunpack.c.h.b16 %v145
    %v924 = vunpack.c.l.b16 %v146
    %v925 = vunpack.c.h.b16 %v146
    %v926 = vunpack.c.l.b16 %v147
    %v927 = vunpack.c.h.b16 %v147
    %v928 = vunpack.c.l.b16 %v148
    %v929 = vunpack.c.h.b16 %v148
    %v930 = vunpack.c.l.b16 %v149
    %v931 = vunpack.c.h.b16 %v149
    %v932 = vunpack.c.l.b16 %v150
    %v933 = vunpack.c.h.b16 %v150
    %v934 = vunpack.c.l.b16 %v151
    %v935 = vunpack.c.h.b16 %v151
    %v936 = vunpack.c.l.b16 %v152
    %v937 = vunpack.c.h.b16 %v152
    %v938 = vunpack.c.l.b16 %v153
    %v939 = vunpack.c.h.b16 %v153
    %v940 = vunpack.c.l.b16 %v154
    %v941 = vunpack.c.h.b16 %v154
    %v942 = vunpack.c.l.b16 %v155
    %v943 = vunpack.c.h.b16 %v155
    %v944 = vunpack.c.l.b16 %v156
    %v945 = vunpack.c.h.b16 %v156
    %v946 = vunpack.c.l.b16 %v157
    %v947 = vunpack.c.h.b16 %v157
    %v948 = vunpack.c.l.b16 %v158
    %v949 = vunpack.c.h.b16 %v158
    %v950 = vunpack.c.l.b16 %v159
    %v951 = vunpack.c.h.b16 %v159
    %v952 = vunpack.c.l.b16 %v160
    %v953 = vunpack.c.h.b16 %v160
    %v954 = vunpack.c.l.b16 %v161
    %v955 = vunpack.c.h.b16 %v161
    %v956 = vunpack.c.l.b16 %v162
    %v957 = vunpack.c.h.b16 %v162
    %v958 = vunpack.c.l.b16 %v163
    %v959 = vunpack.c.h.b16 %v163
    %v960 = vunpack.c.l.b16 %v164
    %v961 = vunpack.c.h.b16 %v164
    %v962 = vunpack.c.l.b16 %v165
    %v963 = vunpack.c.h.b16 %v165
    %v964 = vunpack.c.l.b16 %v166
    %v965 = vunpack.c.h.b16 %v166
    %v966 = vunpack.c.l.b16 %v167
    %v967 = vunpack.c.h.b16 %v167
    %v968 = vunpack.c.l.b16 %v168
    %v969 = vunpack.c.h.b16 %v168
    %v970 = vunpack.c.l.b16 %v169
    %v971 = vunpack.c.h.b16 %v169
    %v972 = vunpack.c.l.b16 %v170
    %v973 = vunpack.c.h.b16 %v170
    %v974 = vunpack.c.l.b16 %v171
    %v975 = vunpack.c.h.b16 %v171
    %v976 = vunpack.c.l.b16 %v172
    %v977 = vunpack.c.h.b16 %v172
    %v978 = vunpack.c.l.b16 %v173
    %v979 = vunpack.c.h.b16 %v173
    %v980 = vunpack.c.l.b16 %v174
    %v981 = vunpack.c.h.b16 %v174
    %v982 = vunpack.c.l.b16 %v175
    %v983 = vunpack.c.h.b16 %v175
    %v984 = vunpack.c.l.b16 %v176
    %v985 = vunpack.c.h.b16 %v176
    %v986 = vunpack.c.l.b16 %v177
    %v987 = vunpack.c.h.b16 %v177
    %v988 = vunpack.c.l.b16 %v178
    %v989 = vunpack.c.h.b16 %v178
    %v990 = vunpack.c.l.b16 %v179
    %v991 = vunpack.c.h.b16 %v179
    %v992 = vunpack.c.l.b16 %v180
    %v993 = vunpack.c.h.b16 %v180
    %v994 = vunpack.c.l.b16 %v181
    %v995 = vunpack.c.h.b16 %v181
    %v996 = vunpack.c.l.b16 %v182
    %v997 = vunpack.c.h.b16 %v182
    %v998 = vunpack.c.l.b16 %v183
    %v999 = vunpack.c.h.b16 %v183
    %v1000 = vunpack.c.l.b16 %v184
    %v1001 = vunpack.c.h.b16 %v184
    %v1002 = vunpack.c.l.b16 %v185
    %v1003 = vunpack.c.h.b16 %v185
    %v1004 = vunpack.c.l.b16 %v186
    %v1005 = vunpack.c.h.b16 %v186
    %v1006 = vunpack.c.l.b16 %v187
    %v1007 = vunpack.c.h.b16 %v187
    %v1008 = vunpack.c.l.b16 %v188
    %v1009 = vunpack.c.h.b16 %v188
    %v1010 = vunpack.c.l.b16 %v189
    %v1011 = vunpack.c.h.b16 %v189
    %v1012 = vunpack.c.l.b16 %v190
    %v1013 = vunpack.c.h.b16 %v190
    %v1014 = vunpack.c.l.b16 %v191
    %v1015 = vunpack.c.h.b16 %v191
    %v1016 = vunpack.c.l.b16 %v192
    %v1017 = vunpack.c.h.b16 %v192
    %v1018 = vunpack.c.l.b16 %v193
    %v1019 = vunpack.c.h.b16 %v193
    %v1020 = vunpack.c.l.b16 %v194
    %v1021 = vunpack.c.h.b16 %v194
    %v1022 = vunpack.c.l.b16 %v195
    %v1023 = vunpack.c.h.b16 %v195
    %v1024 = vunpack.c.l.b16 %v196
    %v1025 = vunpack.c.h.b16 %v196
    %v1026 = vunpack.c.l.b16 %v197
    %v1027 = vunpack.c.h.b16 %v197
    %v1028 = vunpack.c.l.b16 %v198
    %v1029 = vunpack.c.h.b16 %v198
    %v1030 = vunpack.c.l.b16 %v199
    %v1031 = vunpack.c.h.b16 %v199
    %v1032 = vunpack.c.l.b16 %v200
    %v1033 = vunpack.c.h.b16 %v200
    %v1034 = vunpack.c.l.b16 %v201
    %v1035 = vunpack.c.h.b16 %v201
    %v1036 = vunpack.c.l.b16 %v202
    %v1037 = vunpack.c.h.b16 %v202
    %v1038 = vunpack.c.l.b16 %v203
    %v1039 = vunpack.c.h.b16 %v203
    %v1040 = vunpack.c.l.b16 %v204
    %v1041 = vunpack.c.h.b16 %v204
    %v1042 = vunpack.c.l.b16 %v205
    %v1043 = vunpack.c.h.b16 %v205
    %v1044 = vunpack.c.l.b16 %v206
    %v1045 = vunpack.c.h.b16 %v206
    %v1046 = vunpack.c.l.b16 %v207
    %v1047 = vunpack.c.h.b16 %v207
    %v1048 = vunpack.c.l.b16 %v208
    %v1049 = vunpack.c.h.b16 %v208
    %v1050 = vunpack.c.l.b16 %v209
    %v1051 = vunpack.c.h.b16 %v209
    %v1052 = vunpack.c.l.b16 %v210
    %v1053 = vunpack.c.h.b16 %v210
    %v1054 = vunpack.c.l.b16 %v211
    %v1055 = vunpack.c.h.b16 %v211
    %v1056 = vunpack.c.l.b16 %v212
    %v1057 = vunpack.c.h.b16 %v212
    %v1058 = vunpack.c.l.b16 %v213
    %v1059 = vunpack.c.h.b16 %v213
    %v1060 = vunpack.c.l.b16 %v214
    %v1061 = vunpack.c.h.b16 %v214
    %v1062 = vunpack.c.l.b16 %v215
    %v1063 = vunpack.c.h.b16 %v215
    %v1064 = vunpack.c.l.b16 %v216
    %v1065 = vunpack.c.h.b16 %v216
    %v1066 = vunpack.c.l.b16 %v217
    %v1067 = vunpack.c.h.b16 %v217
    %v1068 = vunpack.c.l.b16 %v218
    %v1069 = vunpack.c.h.b16 %v218
    %v1070 = vunpack.c.l.b16 %v219
    %v1071 = vunpack.c.h.b16 %v219
    %v1072 = vunpack.c.l.b16 %v220
    %v1073 = vunpack.c.h.b16 %v220
    %v1074 = vunpack.c.l.b16 %v221
    %v1075 = vunpack.c.h.b16 %v221
    %v1076 = vunpack.c.l.b16 %v222
    %v1077 = vunpack.c.h.b16 %v222
    %v1078 = vunpack.c.l.b16 %v223
    %v1079 = vunpack.c.h.b16 %v223
    %v1080 = vunpack.c.l.b16 %v224
    %v1081 = vunpack.c.h.b16 %v224
    %v1082 = vunpack.c.l.b16 %v225
    %v1083 = vunpack.c.h.b16 %v225
    %v1084 = vunpack.c.l.b16 %v226
    %v1085 = vunpack.c.h.b16 %v226
    %v1086 = vunpack.c.l.b16 %v227
    %v1087 = vunpack.c.h.b16 %v227
    %v1088 = vunpack.c.l.b16 %v228
    %v1089 = vunpack.c.h.b16 %v228
    %v1090 = vunpack.c.l.b16 %v229
    %v1091 = vunpack.c.h.b16 %v229
    %v1092 = vunpack.c.l.b16 %v230
    %v1093 = vunpack.c.h.b16 %v230
    %v1094 = vunpack.c.l.b16 %v231
    %v1095 = vunpack.c.h.b16 %v231
    %v1096 = vunpack.c.l.b16 %v232
    %v1097 = vunpack.c.h.b16 %v232
    %v1098 = vunpack.c.l.b16 %v233
    %v1099 = vunpack.c.h.b16 %v233
    %v1100 = vunpack.c.l.b16 %v234
    %v1101 = vunpack.c.h.b16 %v234
    %v1102 = vunpack.c.l.b16 %v235
    %v1103 = vunpack.c.h.b16 %v235
    %v1104 = vunpack.c.l.b16 %v236
    %v1105 = vunpack.c.h.b16 %v236
    %v1106 = vunpack.c.l.b16 %v237
    %v1107 = vunpack.c.h.b16 %v237
    %v1108 = vunpack.c.l.b16 %v238
    %v1109 = vunpack.c.h.b16 %v238
    %v1110 = vunpack.c.l.b16 %v239
    %v1111 = vunpack.c.h.b16 %v239
    %v1112 = vunpack.c.l.b16 %v240
    %v1113 = vunpack.c.h.b16 %v240
    %v1114 = vunpack.c.l.b16 %v241
    %v1115 = vunpack.c.h.b16 %v241
    %v1116 = vunpack.c.l.b16 %v242
    %v1117 = vunpack.c.h.b16 %v242
    %v1118 = vunpack.c.l.b16 %v243
    %v1119 = vunpack.c.h.b16 %v243
    %v1120 = vunpack.c.l.b16 %v244
    %v1121 = vunpack.c.h.b16 %v244
    %v1122 = vunpack.c.l.b16 %v245
    %v1123 = vunpack.c.h.b16 %v245
    %v1124 = vunpack.c.l.b16 %v246
    %v1125 = vunpack.c.h.b16 %v246
    %v1126 = vunpack.c.l.b16 %v247
    %v1127 = vunpack.c.h.b16 %v247
    %v1128 = vunpack.c.l.b16 %v248
    %v1129 = vunpack.c.h.b16 %v248
    %v1130 = vunpack.c.l.b16 %v249
    %v1131 = vunpack.c.h.b16 %v249
    %v1132 = vunpack.c.l.b16 %v250
    %v1133 = vunpack.c.h.b16 %v250
    %v1134 = vunpack.c.l.b16 %v251
    %v1135 = vunpack.c.h.b16 %v251
    %v1136 = vunpack.c.l.b16 %v252
    %v1137 = vunpack.c.h.b16 %v252
    %v1138 = vunpack.c.l.b16 %v253
    %v1139 = vunpack.c.h.b16 %v253
    %v1140 = vunpack.c.l.b16 %v254
    %v1141 = vunpack.c.h.b16 %v254
    %v1142 = vunpack.c.l.b16 %v255
    %v1143 = vunpack.c.h.b16 %v255
    %v1144 = vunpack.c.l.b16 %v256
    %v1145 = vunpack.c.h.b16 %v256
    %v1146 = vunpack.c.l.b16 %v257
    %v1147 = vunpack.c.h.b16 %v257
    %v1148 = vunpack.c.l.b16 %v258
    %v1149 = vunpack.c.h.b16 %v258
    %v1150 = vunpack.c.l.b16 %v259
    %v1151 = vunpack.c.h.b16 %v259
    %v1152 = vunpack.c.l.b16 %v260
    %v1153 = vunpack.c.h.b16 %v260
    %v1154 = vunpack.c.l.b16 %v261
    %v1155 = vunpack.c.h.b16 %v261
    %v1156 = vunpack.c.l.b16 %v262
    %v1157 = vunpack.c.h.b16 %v262
    %v1158 = vunpack.c.l.b16 %v263
    %v1159 = vunpack.c.h.b16 %v263
    %v1160 = vunpack.c.l.b16 %v264
    %v1161 = vunpack.c.h.b16 %v264
    %v1162 = vunpack.c.l.b16 %v265
    %v1163 = vunpack.c.h.b16 %v265
    %v1164 = vunpack.c.l.b16 %v266
    %v1165 = vunpack.c.h.b16 %v266
    %v1166 = vunpack.c.l.b16 %v267
    %v1167 = vunpack.c.h.b16 %v267
    %v1168 = vunpack.c.l.b16 %v268
    %v1169 = vunpack.c.h.b16 %v268
    %v1170 = vunpack.c.l.b16 %v269
    %v1171 = vunpack.c.h.b16 %v269
    %v1172 = vunpack.c.l.b16 %v270
    %v1173 = vunpack.c.h.b16 %v270
    %v1174 = vunpack.c.l.b16 %v271
    %v1175 = vunpack.c.h.b16 %v271
    %v1176 = vunpack.c.l.b16 %v272
    %v1177 = vunpack.c.h.b16 %v272
    %v1178 = vunpack.c.l.b16 %v273
    %v1179 = vunpack.c.h.b16 %v273
    %v1180 = vpack.c.b16 %v920, %v916
    %v1181 = vpack.c.b16 %v921, %v917
    %v1182 = vpack.c.b16 %v922, %v918
    %v1183 = vpack.c.b16 %v923, %v919
    %v1184 = vpack.c.b16 %v928, %v924
    %v1185 = vpack.c.b16 %v929, %v925
    %v1186 = vpack.c.b16 %v930, %v926
    %v1187 = vpack.c.b16 %v931, %v927
    %v1188 = vpack.c.b16 %v936, %v932
    %v1189 = vpack.c.b16 %v937, %v933
    %v1190 = vpack.c.b16 %v938, %v934
    %v1191 = vpack.c.b16 %v939, %v935
    %v1192 = vpack.c.b16 %v944, %v940
    %v1193 = vpack.c.b16 %v945, %v941
    %v1194 = vpack.c.b16 %v946, %v942
    %v1195 = vpack.c.b16 %v947, %v943
    %v1196 = vpack.c.b16 %v952, %v948
    %v1197 = vpack.c.b16 %v953, %v949
    %v1198 = vpack.c.b16 %v954, %v950
    %v1199 = vpack.c.b16 %v955, %v951
    %v1200 = vpack.c.b16 %v960, %v956
    %v1201 = vpack.c.b16 %v961, %v957
    %v1202 = vpack.c.b16 %v962, %v958
    %v1203 = vpack.c.b16 %v963, %v959
    %v1204 = vpack.c.b16 %v968, %v964
    %v1205 = vpack.c.b16 %v969, %v965
    %v1206 = vpack.c.b16 %v970, %v966
    %v1207 = vpack.c.b16 %v971, %v967
    %v1208 = vpack.c.b16 %v976, %v972
    %v1209 = vpack.c.b16 %v977, %v973
    %v1210 = vpack.c.b16 %v978, %v974
    %v1211 = vpack.c.b16 %v979, %v975
    %v1212 = vpack.c.b16 %v984, %v980
    %v1213 = vpack.c.b16 %v985, %v981
    %v1214 = vpack.c.b16 %v986, %v982
    %v1215 = vpack.c.b16 %v987, %v983
    %v1216 = vpack.c.b16 %v992, %v988
    %v1217 = vpack.c.b16 %v993, %v989
    %v1218 = vpack.c.b16 %v994, %v990
    %v1219 = vpack.c.b16 %v995, %v991
    %v1220 = vpack.c.b16 %v1000, %v996
    %v1221 = vpack.c.b16 %v1001, %v997
    %v1222 = vpack.c.b16 %v1002, %v998
    %v1223 = vpack.c.b16 %v1003, %v999
    %v1224 = vpack.c.b16 %v1008, %v1004
    %v1225 = vpack.c.b16 %v1009, %v1005
    %v1226 = vpack.c.b16 %v1010, %v1006
    %v1227 = vpack.c.b16 %v1011, %v1007
    %v1228 = vpack.c.b16 %v1016, %v1012
    %v1229 = vpack.c.b16 %v1017, %v1013
    %v1230 = vpack.c.b16 %v1018, %v1014
    %v1231 = vpack.c.b16 %v1019, %v1015
    %v1232 = vpack.c.b16 %v1024, %v1020
    %v1233 = vpack.c.b16 %v1025, %v1021
    %v1234 = vpack.c.b16 %v1026, %v1022
    %v1235 = vpack.c.b16 %v1027, %v1023
    %v1236 = vpack.c.b16 %v1032, %v1028
    %v1237 = vpack.c.b16 %v1033, %v1029
    %v1238 = vpack.c.b16 %v1034, %v1030
    %v1239 = vpack.c.b16 %v1035, %v1031
    %v1240 = vpack.c.b16 %v1040, %v1036
    %v1241 = vpack.c.b16 %v1041, %v1037
    %v1242 = vpack.c.b16 %v1042, %v1038
    %v1243 = vpack.c.b16 %v1043, %v1039
    %v1244 = vpack.c.b16 %v1048, %v1044
    %v1245 = vpack.c.b16 %v1049, %v1045
    %v1246 = vpack.c.b16 %v1050, %v1046
    %v1247 = vpack.c.b16 %v1051, %v1047
    %v1248 = vpack.c.b16 %v1056, %v1052
    %v1249 = vpack.c.b16 %v1057, %v1053
    %v1250 = vpack.c.b16 %v1058, %v1054
    %v1251 = vpack.c.b16 %v1059, %v1055
    %v1252 = vpack.c.b16 %v1064, %v1060
    %v1253 = vpack.c.b16 %v1065, %v1061
    %v1254 = vpack.c.b16 %v1066, %v1062
    %v1255 = vpack.c.b16 %v1067, %v1063
    %v1256 = vpack.c.b16 %v1072, %v1068
    %v1257 = vpack.c.b16 %v1073, %v1069
    %v1258 = vpack.c.b16 %v1074, %v1070
    %v1259 = vpack.c.b16 %v1075, %v1071
    %v1260 = vpack.c.b16 %v1080, %v1076
    %v1261 = vpack.c.b16 %v1081, %v1077
    %v1262 = vpack.c.b16 %v1082, %v1078
    %v1263 = vpack.c.b16 %v1083, %v1079
    %v1264 = vpack.c.b16 %v1088, %v1084
    %v1265 = vpack.c.b16 %v1089, %v1085
    %v1266 = vpack.c.b16 %v1090, %v1086
    %v1267 = vpack.c.b16 %v1091, %v1087
    %v1268 = vpack.c.b16 %v1096, %v1092
    %v1269 = vpack.c.b16 %v1097, %v1093
    %v1270 = vpack.c.b16 %v1098, %v1094
    %v1271 = vpack.c.b16 %v1099, %v1095
    %v1272 = vpack.c.b16 %v1104, %v1100
    %v1273 = vpack.c.b16 %v1105, %v1101
    %v1274 = vpack.c.b16 %v1106, %v1102
    %v1275 = vpack.c.b16 %v1107, %v1103
    %v1276 = vpack.c.b16 %v1112, %v1108
    %v1277 = vpack.c.b16 %v1113, %v1109
    %v1278 = vpack.c.b16 %v1114, %v1110
    %v1279 = vpack.c.b16 %v1115, %v1111
    %v1280 = vpack.c.b16 %v1120, %v1116
    %v1281 = vpack.c.b16 %v1121, %v1117
    %v1282 = vpack.c.b16 %v1122, %v1118
    %v1283 = vpack.c.b16 %v1123, %v1119
    %v1284 = vpack.c.b16 %v1128, %v1124
    %v1285 = vpack.c.b16 %v1129, %v1125
    %v1286 = vpack.c.b16 %v1130, %v1126
    %v1287 = vpack.c.b16 %v1131, %v1127
    %v1288 = vpack.c.b16 %v1136, %v1132
    %v1289 = vpack.c.b16 %v1137, %v1133
    %v1290 = vpack.c.b16 %v1138, %v1134
    %v1291 = vpack.c.b16 %v1139, %v1135
    %v1292 = vpack.c.b16 %v1144, %v1140
    %v1293 = vpack.c.b16 %v1145, %v1141
    %v1294 = vpack.c.b16 %v1146, %v1142
    %v1295 = vpack.c.b16 %v1147, %v1143
    %v1296 = vpack.c.b16 %v1152, %v1148
    %v1297 = vpack.c.b16 %v1153, %v1149
    %v1298 = vpack.c.b16 %v1154, %v1150
    %v1299 = vpack.c.b16 %v1155, %v1151
    %v1300 = vpack.c.b16 %v1160, %v1156
    %v1301 = vpack.c.b16 %v1161, %v1157
    %v1302 = vpack.c.b16 %v1162, %v1158
    %v1303 = vpack.c.b16 %v1163, %v1159
    %v1304 = vpack.c.b16 %v1168, %v1164
    %v1305 = vpack.c.b16 %v1169, %v1165
    %v1306 = vpack.c.b16 %v1170, %v1166
    %v1307 = vpack.c.b16 %v1171, %v1167
    %v1308 = vpack.c.b16 %v1176, %v1172
    %v1309 = vpack.c.b16 %v1177, %v1173
    %v1310 = vpack.c.b16 %v1178, %v1174
    %v1311 = vpack.c.b16 %v1179, %v1175
    %vm1440 = vcmask 80896
    %v1442 = vsel %vm1440, %v608, 0
    %v1445 = vsel %vm1440, %v613, 0
    %v1448 = vsel %vm1440, %v618, 0
    %v1451 = vsel %vm1440, %v623, 0
    %v1454 = vsel %vm1440, %v628, 0
    %v1457 = vsel %vm1440, %v633, 0
    %v1460 = vsel %vm1440, %v638, 0
    %v1463 = vsel %vm1440, %v643, 0
    %v1466 = vsel %vm1440, %v648, 0
    %v1469 = vsel %vm1440, %v653, 0
    %v1472 = vsel %vm1440, %v658, 0
    %v1475 = vsel %vm1440, %v663, 0
    %v1478 = vsel %vm1440, %v668, 0
    %v1481 = vsel %vm1440, %v673, 0
    %v1484 = vsel %vm1440, %v678, 0
    %v1487 = vsel %vm1440, %v683, 0
    %v1490 = vsel %vm1440, %v688, 0
    %v1493 = vsel %vm1440, %v693, 0
    %v1496 = vsel %vm1440, %v698, 0
    %v1499 = vsel %vm1440, %v703, 0
    %vm1501 = vcmask 1044480
    %v1503 = vsel %vm1501, %v1308, 0
    %v1506 = vsel %vm1501, %v1309, 0
    %v1509 = vsel %vm1501, %v1310, 0
    %v1512 = vsel %vm1501, %v1311, 0
    %1514 = vmatpush.bf16.msra.mxu0 %v1208
    %1515 = vmatpush.bf16.msra.mxu0 %v1204
    %1516 = vmatpush.bf16.msra.mxu0 %v1200
    %1517 = vmatpush.bf16.msra.mxu0 %v1196
    %1518 = vmatpush.bf16.msra.mxu0 %v1192
    %1519 = vmatpush.bf16.msra.mxu0 %v1188
    %1520 = vmatpush.bf16.msra.mxu0 %v1184
    %1521 = vmatpush.bf16.msra.mxu0 %v1180
    %1522 = vmatmul.bf16.gmra.mxu0 %v604
    %v1523 = vpop.f32.mrf.mxu0
    %v1524 = vadd.f32 %v276, %v1523
    %v1525 = vpop.f32.mrf.mxu0
    %v1526 = vadd.f32 %v276, %v1525
    %1527 = vmatmul.bf16.gmra.mxu0 %v609
    %v1528 = vpop.f32.mrf.mxu0
    %v1529 = vadd.f32 %v276, %v1528
    %v1530 = vpop.f32.mrf.mxu0
    %v1531 = vadd.f32 %v276, %v1530
    %1532 = vmatmul.bf16.gmra.mxu0 %v614
    %v1533 = vpop.f32.mrf.mxu0
    %v1534 = vadd.f32 %v276, %v1533
    %v1535 = vpop.f32.mrf.mxu0
    %v1536 = vadd.f32 %v276, %v1535
    %1537 = vmatmul.bf16.gmra.mxu0 %v619
    %v1538 = vpop.f32.mrf.mxu0
    %v1539 = vadd.f32 %v276, %v1538
    %v1540 = vpop.f32.mrf.mxu0
    %v1541 = vadd.f32 %v276, %v1540
    %1542 = vmatmul.bf16.gmra.mxu0 %v624
    %v1543 = vpop.f32.mrf.mxu0
    %v1544 = vadd.f32 %v276, %v1543
    %v1545 = vpop.f32.mrf.mxu0
    %v1546 = vadd.f32 %v276, %v1545
    %1547 = vmatmul.bf16.gmra.mxu0 %v629
    %v1548 = vpop.f32.mrf.mxu0
    %v1549 = vadd.f32 %v276, %v1548
    %v1550 = vpop.f32.mrf.mxu0
    %v1551 = vadd.f32 %v276, %v1550
    %1552 = vmatmul.bf16.gmra.mxu0 %v634
    %v1553 = vpop.f32.mrf.mxu0
    %v1554 = vadd.f32 %v276, %v1553
    %v1555 = vpop.f32.mrf.mxu0
    %v1556 = vadd.f32 %v276, %v1555
    %1557 = vmatmul.bf16.gmra.mxu0 %v639
    %v1558 = vpop.f32.mrf.mxu0
    %v1559 = vadd.f32 %v276, %v1558
    %v1560 = vpop.f32.mrf.mxu0
    %v1561 = vadd.f32 %v276, %v1560
    %1562 = vmatmul.bf16.gmra.mxu0 %v644
    %v1563 = vpop.f32.mrf.mxu0
    %v1564 = vadd.f32 %v276, %v1563
    %v1565 = vpop.f32.mrf.mxu0
    %v1566 = vadd.f32 %v276, %v1565
    %1567 = vmatmul.bf16.gmra.mxu0 %v649
    %v1568 = vpop.f32.mrf.mxu0
    %v1569 = vadd.f32 %v276, %v1568
    %v1570 = vpop.f32.mrf.mxu0
    %v1571 = vadd.f32 %v276, %v1570
    %1572 = vmatmul.bf16.gmra.mxu0 %v654
    %v1573 = vpop.f32.mrf.mxu0
    %v1574 = vadd.f32 %v276, %v1573
    %v1575 = vpop.f32.mrf.mxu0
    %v1576 = vadd.f32 %v276, %v1575
    %1577 = vmatmul.bf16.gmra.mxu0 %v659
    %v1578 = vpop.f32.mrf.mxu0
    %v1579 = vadd.f32 %v276, %v1578
    %v1580 = vpop.f32.mrf.mxu0
    %v1581 = vadd.f32 %v276, %v1580
    %1582 = vmatmul.bf16.gmra.mxu0 %v664
    %v1583 = vpop.f32.mrf.mxu0
    %v1584 = vadd.f32 %v276, %v1583
    %v1585 = vpop.f32.mrf.mxu0
    %v1586 = vadd.f32 %v276, %v1585
    %1587 = vmatmul.bf16.gmra.mxu0 %v669
    %v1588 = vpop.f32.mrf.mxu0
    %v1589 = vadd.f32 %v276, %v1588
    %v1590 = vpop.f32.mrf.mxu0
    %v1591 = vadd.f32 %v276, %v1590
    %1592 = vmatmul.bf16.gmra.mxu0 %v674
    %v1593 = vpop.f32.mrf.mxu0
    %v1594 = vadd.f32 %v276, %v1593
    %v1595 = vpop.f32.mrf.mxu0
    %v1596 = vadd.f32 %v276, %v1595
    %1597 = vmatmul.bf16.gmra.mxu0 %v679
    %v1598 = vpop.f32.mrf.mxu0
    %v1599 = vadd.f32 %v276, %v1598
    %v1600 = vpop.f32.mrf.mxu0
    %v1601 = vadd.f32 %v276, %v1600
    %1602 = vmatmul.bf16.gmra.mxu0 %v684
    %v1603 = vpop.f32.mrf.mxu0
    %v1604 = vadd.f32 %v276, %v1603
    %v1605 = vpop.f32.mrf.mxu0
    %v1606 = vadd.f32 %v276, %v1605
    %1607 = vmatmul.bf16.gmra.mxu0 %v689
    %v1608 = vpop.f32.mrf.mxu0
    %v1609 = vadd.f32 %v276, %v1608
    %v1610 = vpop.f32.mrf.mxu0
    %v1611 = vadd.f32 %v276, %v1610
    %1612 = vmatmul.bf16.gmra.mxu0 %v694
    %v1613 = vpop.f32.mrf.mxu0
    %v1614 = vadd.f32 %v276, %v1613
    %v1615 = vpop.f32.mrf.mxu0
    %v1616 = vadd.f32 %v276, %v1615
    %1617 = vmatmul.bf16.gmra.mxu0 %v699
    %v1618 = vpop.f32.mrf.mxu0
    %v1619 = vadd.f32 %v276, %v1618
    %v1620 = vpop.f32.mrf.mxu0
    %v1621 = vadd.f32 %v276, %v1620
    %1622 = vdwg.mxu0
    %1623 = vmatpush.bf16.msra.mxu0 %v1240
    %1624 = vmatpush.bf16.msra.mxu0 %v1236
    %1625 = vmatpush.bf16.msra.mxu0 %v1232
    %1626 = vmatpush.bf16.msra.mxu0 %v1228
    %1627 = vmatpush.bf16.msra.mxu0 %v1224
    %1628 = vmatpush.bf16.msra.mxu0 %v1220
    %1629 = vmatpush.bf16.msra.mxu0 %v1216
    %1630 = vmatpush.bf16.msra.mxu0 %v1212
    %1631 = vmatmul.bf16.gmra.mxu0 %v605
    %v1632 = vpop.f32.mrf.mxu0
    %v1633 = vadd.f32 %v1524, %v1632
    %v1634 = vpop.f32.mrf.mxu0
    %v1635 = vadd.f32 %v1526, %v1634
    %1636 = vmatmul.bf16.gmra.mxu0 %v610
    %v1637 = vpop.f32.mrf.mxu0
    %v1638 = vadd.f32 %v1529, %v1637
    %v1639 = vpop.f32.mrf.mxu0
    %v1640 = vadd.f32 %v1531, %v1639
    %1641 = vmatmul.bf16.gmra.mxu0 %v615
    %v1642 = vpop.f32.mrf.mxu0
    %v1643 = vadd.f32 %v1534, %v1642
    %v1644 = vpop.f32.mrf.mxu0
    %v1645 = vadd.f32 %v1536, %v1644
    %1646 = vmatmul.bf16.gmra.mxu0 %v620
    %v1647 = vpop.f32.mrf.mxu0
    %v1648 = vadd.f32 %v1539, %v1647
    %v1649 = vpop.f32.mrf.mxu0
    %v1650 = vadd.f32 %v1541, %v1649
    %1651 = vmatmul.bf16.gmra.mxu0 %v625
    %v1652 = vpop.f32.mrf.mxu0
    %v1653 = vadd.f32 %v1544, %v1652
    %v1654 = vpop.f32.mrf.mxu0
    %v1655 = vadd.f32 %v1546, %v1654
    %1656 = vmatmul.bf16.gmra.mxu0 %v630
    %v1657 = vpop.f32.mrf.mxu0
    %v1658 = vadd.f32 %v1549, %v1657
    %v1659 = vpop.f32.mrf.mxu0
    %v1660 = vadd.f32 %v1551, %v1659
    %1661 = vmatmul.bf16.gmra.mxu0 %v635
    %v1662 = vpop.f32.mrf.mxu0
    %v1663 = vadd.f32 %v1554, %v1662
    %v1664 = vpop.f32.mrf.mxu0
    %v1665 = vadd.f32 %v1556, %v1664
    %1666 = vmatmul.bf16.gmra.mxu0 %v640
    %v1667 = vpop.f32.mrf.mxu0
    %v1668 = vadd.f32 %v1559, %v1667
    %v1669 = vpop.f32.mrf.mxu0
    %v1670 = vadd.f32 %v1561, %v1669
    %1671 = vmatmul.bf16.gmra.mxu0 %v645
    %v1672 = vpop.f32.mrf.mxu0
    %v1673 = vadd.f32 %v1564, %v1672
    %v1674 = vpop.f32.mrf.mxu0
    %v1675 = vadd.f32 %v1566, %v1674
    %1676 = vmatmul.bf16.gmra.mxu0 %v650
    %v1677 = vpop.f32.mrf.mxu0
    %v1678 = vadd.f32 %v1569, %v1677
    %v1679 = vpop.f32.mrf.mxu0
    %v1680 = vadd.f32 %v1571, %v1679
    %1681 = vmatmul.bf16.gmra.mxu0 %v655
    %v1682 = vpop.f32.mrf.mxu0
    %v1683 = vadd.f32 %v1574, %v1682
    %v1684 = vpop.f32.mrf.mxu0
    %v1685 = vadd.f32 %v1576, %v1684
    %1686 = vmatmul.bf16.gmra.mxu0 %v660
    %v1687 = vpop.f32.mrf.mxu0
    %v1688 = vadd.f32 %v1579, %v1687
    %v1689 = vpop.f32.mrf.mxu0
    %v1690 = vadd.f32 %v1581, %v1689
    %1691 = vmatmul.bf16.gmra.mxu0 %v665
    %v1692 = vpop.f32.mrf.mxu0
    %v1693 = vadd.f32 %v1584, %v1692
    %v1694 = vpop.f32.mrf.mxu0
    %v1695 = vadd.f32 %v1586, %v1694
    %1696 = vmatmul.bf16.gmra.mxu0 %v670
    %v1697 = vpop.f32.mrf.mxu0
    %v1698 = vadd.f32 %v1589, %v1697
    %v1699 = vpop.f32.mrf.mxu0
    %v1700 = vadd.f32 %v1591, %v1699
    %1701 = vmatmul.bf16.gmra.mxu0 %v675
    %v1702 = vpop.f32.mrf.mxu0
    %v1703 = vadd.f32 %v1594, %v1702
    %v1704 = vpop.f32.mrf.mxu0
    %v1705 = vadd.f32 %v1596, %v1704
    %1706 = vmatmul.bf16.gmra.mxu0 %v680
    %v1707 = vpop.f32.mrf.mxu0
    %v1708 = vadd.f32 %v1599, %v1707
    %v1709 = vpop.f32.mrf.mxu0
    %v1710 = vadd.f32 %v1601, %v1709
    %1711 = vmatmul.bf16.gmra.mxu0 %v685
    %v1712 = vpop.f32.mrf.mxu0
    %v1713 = vadd.f32 %v1604, %v1712
    %v1714 = vpop.f32.mrf.mxu0
    %v1715 = vadd.f32 %v1606, %v1714
    %1716 = vmatmul.bf16.gmra.mxu0 %v690
    %v1717 = vpop.f32.mrf.mxu0
    %v1718 = vadd.f32 %v1609, %v1717
    %v1719 = vpop.f32.mrf.mxu0
    %v1720 = vadd.f32 %v1611, %v1719
    %1721 = vmatmul.bf16.gmra.mxu0 %v695
    %v1722 = vpop.f32.mrf.mxu0
    %v1723 = vadd.f32 %v1614, %v1722
    %v1724 = vpop.f32.mrf.mxu0
    %v1725 = vadd.f32 %v1616, %v1724
    %1726 = vmatmul.bf16.gmra.mxu0 %v700
    %v1727 = vpop.f32.mrf.mxu0
    %v1728 = vadd.f32 %v1619, %v1727
    %v1729 = vpop.f32.mrf.mxu0
    %v1730 = vadd.f32 %v1621, %v1729
    %1731 = vdwg.mxu0
    %1732 = vmatpush.bf16.msra.mxu0 %v1272
    %1733 = vmatpush.bf16.msra.mxu0 %v1268
    %1734 = vmatpush.bf16.msra.mxu0 %v1264
    %1735 = vmatpush.bf16.msra.mxu0 %v1260
    %1736 = vmatpush.bf16.msra.mxu0 %v1256
    %1737 = vmatpush.bf16.msra.mxu0 %v1252
    %1738 = vmatpush.bf16.msra.mxu0 %v1248
    %1739 = vmatpush.bf16.msra.mxu0 %v1244
    %1740 = vmatmul.bf16.gmra.mxu0 %v606
    %v1741 = vpop.f32.mrf.mxu0
    %v1742 = vadd.f32 %v1633, %v1741
    %v1743 = vpop.f32.mrf.mxu0
    %v1744 = vadd.f32 %v1635, %v1743
    %1745 = vmatmul.bf16.gmra.mxu0 %v611
    %v1746 = vpop.f32.mrf.mxu0
    %v1747 = vadd.f32 %v1638, %v1746
    %v1748 = vpop.f32.mrf.mxu0
    %v1749 = vadd.f32 %v1640, %v1748
    %1750 = vmatmul.bf16.gmra.mxu0 %v616
    %v1751 = vpop.f32.mrf.mxu0
    %v1752 = vadd.f32 %v1643, %v1751
    %v1753 = vpop.f32.mrf.mxu0
    %v1754 = vadd.f32 %v1645, %v1753
    %1755 = vmatmul.bf16.gmra.mxu0 %v621
    %v1756 = vpop.f32.mrf.mxu0
    %v1757 = vadd.f32 %v1648, %v1756
    %v1758 = vpop.f32.mrf.mxu0
    %v1759 = vadd.f32 %v1650, %v1758
    %1760 = vmatmul.bf16.gmra.mxu0 %v626
    %v1761 = vpop.f32.mrf.mxu0
    %v1762 = vadd.f32 %v1653, %v1761
    %v1763 = vpop.f32.mrf.mxu0
    %v1764 = vadd.f32 %v1655, %v1763
    %1765 = vmatmul.bf16.gmra.mxu0 %v631
    %v1766 = vpop.f32.mrf.mxu0
    %v1767 = vadd.f32 %v1658, %v1766
    %v1768 = vpop.f32.mrf.mxu0
    %v1769 = vadd.f32 %v1660, %v1768
    %1770 = vmatmul.bf16.gmra.mxu0 %v636
    %v1771 = vpop.f32.mrf.mxu0
    %v1772 = vadd.f32 %v1663, %v1771
    %v1773 = vpop.f32.mrf.mxu0
    %v1774 = vadd.f32 %v1665, %v1773
    %1775 = vmatmul.bf16.gmra.mxu0 %v641
    %v1776 = vpop.f32.mrf.mxu0
    %v1777 = vadd.f32 %v1668, %v1776
    %v1778 = vpop.f32.mrf.mxu0
    %v1779 = vadd.f32 %v1670, %v1778
    %1780 = vmatmul.bf16.gmra.mxu0 %v646
    %v1781 = vpop.f32.mrf.mxu0
    %v1782 = vadd.f32 %v1673, %v1781
    %v1783 = vpop.f32.mrf.mxu0
    %v1784 = vadd.f32 %v1675, %v1783
    %1785 = vmatmul.bf16.gmra.mxu0 %v651
    %v1786 = vpop.f32.mrf.mxu0
    %v1787 = vadd.f32 %v1678, %v1786
    %v1788 = vpop.f32.mrf.mxu0
    %v1789 = vadd.f32 %v1680, %v1788
    %1790 = vmatmul.bf16.gmra.mxu0 %v656
    %v1791 = vpop.f32.mrf.mxu0
    %v1792 = vadd.f32 %v1683, %v1791
    %v1793 = vpop.f32.mrf.mxu0
    %v1794 = vadd.f32 %v1685, %v1793
    %1795 = vmatmul.bf16.gmra.mxu0 %v661
    %v1796 = vpop.f32.mrf.mxu0
    %v1797 = vadd.f32 %v1688, %v1796
    %v1798 = vpop.f32.mrf.mxu0
    %v1799 = vadd.f32 %v1690, %v1798
    %1800 = vmatmul.bf16.gmra.mxu0 %v666
    %v1801 = vpop.f32.mrf.mxu0
    %v1802 = vadd.f32 %v1693, %v1801
    %v1803 = vpop.f32.mrf.mxu0
    %v1804 = vadd.f32 %v1695, %v1803
    %1805 = vmatmul.bf16.gmra.mxu0 %v671
    %v1806 = vpop.f32.mrf.mxu0
    %v1807 = vadd.f32 %v1698, %v1806
    %v1808 = vpop.f32.mrf.mxu0
    %v1809 = vadd.f32 %v1700, %v1808
    %1810 = vmatmul.bf16.gmra.mxu0 %v676
    %v1811 = vpop.f32.mrf.mxu0
    %v1812 = vadd.f32 %v1703, %v1811
    %v1813 = vpop.f32.mrf.mxu0
    %v1814 = vadd.f32 %v1705, %v1813
    %1815 = vmatmul.bf16.gmra.mxu0 %v681
    %v1816 = vpop.f32.mrf.mxu0
    %v1817 = vadd.f32 %v1708, %v1816
    %v1818 = vpop.f32.mrf.mxu0
    %v1819 = vadd.f32 %v1710, %v1818
    %1820 = vmatmul.bf16.gmra.mxu0 %v686
    %v1821 = vpop.f32.mrf.mxu0
    %v1822 = vadd.f32 %v1713, %v1821
    %v1823 = vpop.f32.mrf.mxu0
    %v1824 = vadd.f32 %v1715, %v1823
    %1825 = vmatmul.bf16.gmra.mxu0 %v691
    %v1826 = vpop.f32.mrf.mxu0
    %v1827 = vadd.f32 %v1718, %v1826
    %v1828 = vpop.f32.mrf.mxu0
    %v1829 = vadd.f32 %v1720, %v1828
    %1830 = vmatmul.bf16.gmra.mxu0 %v696
    %v1831 = vpop.f32.mrf.mxu0
    %v1832 = vadd.f32 %v1723, %v1831
    %v1833 = vpop.f32.mrf.mxu0
    %v1834 = vadd.f32 %v1725, %v1833
    %1835 = vmatmul.bf16.gmra.mxu0 %v701
    %v1836 = vpop.f32.mrf.mxu0
    %v1837 = vadd.f32 %v1728, %v1836
    %v1838 = vpop.f32.mrf.mxu0
    %v1839 = vadd.f32 %v1730, %v1838
    %1840 = vdwg.mxu0
    %1841 = vmatpush.bf16.msra.mxu0 %v1304
    %1842 = vmatpush.bf16.msra.mxu0 %v1300
    %1843 = vmatpush.bf16.msra.mxu0 %v1296
    %1844 = vmatpush.bf16.msra.mxu0 %v1292
    %1845 = vmatpush.bf16.msra.mxu0 %v1288
    %1846 = vmatpush.bf16.msra.mxu0 %v1284
    %1847 = vmatpush.bf16.msra.mxu0 %v1280
    %1848 = vmatpush.bf16.msra.mxu0 %v1276
    %1849 = vmatmul.bf16.gmra.mxu0 %v607
    %v1850 = vpop.f32.mrf.mxu0
    %v1851 = vadd.f32 %v1742, %v1850
    %v1852 = vpop.f32.mrf.mxu0
    %v1853 = vadd.f32 %v1744, %v1852
    %1854 = vmatmul.bf16.gmra.mxu0 %v612
    %v1855 = vpop.f32.mrf.mxu0
    %v1856 = vadd.f32 %v1747, %v1855
    %v1857 = vpop.f32.mrf.mxu0
    %v1858 = vadd.f32 %v1749, %v1857
    %1859 = vmatmul.bf16.gmra.mxu0 %v617
    %v1860 = vpop.f32.mrf.mxu0
    %v1861 = vadd.f32 %v1752, %v1860
    %v1862 = vpop.f32.mrf.mxu0
    %v1863 = vadd.f32 %v1754, %v1862
    %1864 = vmatmul.bf16.gmra.mxu0 %v622
    %v1865 = vpop.f32.mrf.mxu0
    %v1866 = vadd.f32 %v1757, %v1865
    %v1867 = vpop.f32.mrf.mxu0
    %v1868 = vadd.f32 %v1759, %v1867
    %1869 = vmatmul.bf16.gmra.mxu0 %v627
    %v1870 = vpop.f32.mrf.mxu0
    %v1871 = vadd.f32 %v1762, %v1870
    %v1872 = vpop.f32.mrf.mxu0
    %v1873 = vadd.f32 %v1764, %v1872
    %1874 = vmatmul.bf16.gmra.mxu0 %v632
    %v1875 = vpop.f32.mrf.mxu0
    %v1876 = vadd.f32 %v1767, %v1875
    %v1877 = vpop.f32.mrf.mxu0
    %v1878 = vadd.f32 %v1769, %v1877
    %1879 = vmatmul.bf16.gmra.mxu0 %v637
    %v1880 = vpop.f32.mrf.mxu0
    %v1881 = vadd.f32 %v1772, %v1880
    %v1882 = vpop.f32.mrf.mxu0
    %v1883 = vadd.f32 %v1774, %v1882
    %1884 = vmatmul.bf16.gmra.mxu0 %v642
    %v1885 = vpop.f32.mrf.mxu0
    %v1886 = vadd.f32 %v1777, %v1885
    %v1887 = vpop.f32.mrf.mxu0
    %v1888 = vadd.f32 %v1779, %v1887
    %1889 = vmatmul.bf16.gmra.mxu0 %v647
    %v1890 = vpop.f32.mrf.mxu0
    %v1891 = vadd.f32 %v1782, %v1890
    %v1892 = vpop.f32.mrf.mxu0
    %v1893 = vadd.f32 %v1784, %v1892
    %1894 = vmatmul.bf16.gmra.mxu0 %v652
    %v1895 = vpop.f32.mrf.mxu0
    %v1896 = vadd.f32 %v1787, %v1895
    %v1897 = vpop.f32.mrf.mxu0
    %v1898 = vadd.f32 %v1789, %v1897
    %1899 = vmatmul.bf16.gmra.mxu0 %v657
    %v1900 = vpop.f32.mrf.mxu0
    %v1901 = vadd.f32 %v1792, %v1900
    %v1902 = vpop.f32.mrf.mxu0
    %v1903 = vadd.f32 %v1794, %v1902
    %1904 = vmatmul.bf16.gmra.mxu0 %v662
    %v1905 = vpop.f32.mrf.mxu0
    %v1906 = vadd.f32 %v1797, %v1905
    %v1907 = vpop.f32.mrf.mxu0
    %v1908 = vadd.f32 %v1799, %v1907
    %1909 = vmatmul.bf16.gmra.mxu0 %v667
    %v1910 = vpop.f32.mrf.mxu0
    %v1911 = vadd.f32 %v1802, %v1910
    %v1912 = vpop.f32.mrf.mxu0
    %v1913 = vadd.f32 %v1804, %v1912
    %1914 = vmatmul.bf16.gmra.mxu0 %v672
    %v1915 = vpop.f32.mrf.mxu0
    %v1916 = vadd.f32 %v1807, %v1915
    %v1917 = vpop.f32.mrf.mxu0
    %v1918 = vadd.f32 %v1809, %v1917
    %1919 = vmatmul.bf16.gmra.mxu0 %v677
    %v1920 = vpop.f32.mrf.mxu0
    %v1921 = vadd.f32 %v1812, %v1920
    %v1922 = vpop.f32.mrf.mxu0
    %v1923 = vadd.f32 %v1814, %v1922
    %1924 = vmatmul.bf16.gmra.mxu0 %v682
    %v1925 = vpop.f32.mrf.mxu0
    %v1926 = vadd.f32 %v1817, %v1925
    %v1927 = vpop.f32.mrf.mxu0
    %v1928 = vadd.f32 %v1819, %v1927
    %1929 = vmatmul.bf16.gmra.mxu0 %v687
    %v1930 = vpop.f32.mrf.mxu0
    %v1931 = vadd.f32 %v1822, %v1930
    %v1932 = vpop.f32.mrf.mxu0
    %v1933 = vadd.f32 %v1824, %v1932
    %1934 = vmatmul.bf16.gmra.mxu0 %v692
    %v1935 = vpop.f32.mrf.mxu0
    %v1936 = vadd.f32 %v1827, %v1935
    %v1937 = vpop.f32.mrf.mxu0
    %v1938 = vadd.f32 %v1829, %v1937
    %1939 = vmatmul.bf16.gmra.mxu0 %v697
    %v1940 = vpop.f32.mrf.mxu0
    %v1941 = vadd.f32 %v1832, %v1940
    %v1942 = vpop.f32.mrf.mxu0
    %v1943 = vadd.f32 %v1834, %v1942
    %1944 = vmatmul.bf16.gmra.mxu0 %v702
    %v1945 = vpop.f32.mrf.mxu0
    %v1946 = vadd.f32 %v1837, %v1945
    %v1947 = vpop.f32.mrf.mxu0
    %v1948 = vadd.f32 %v1839, %v1947
    %1949 = vdwg.mxu0
    %1950 = vmatpush.bf16.msra.mxu0 0
    %1951 = vmatpush.bf16.msra.mxu0 0
    %1952 = vmatpush.bf16.msra.mxu0 0
    %1953 = vmatpush.bf16.msra.mxu0 0
    %1954 = vmatpush.bf16.msra.mxu0 0
    %1955 = vmatpush.bf16.msra.mxu0 0
    %1956 = vmatpush.bf16.msra.mxu0 0
    %1957 = vmatpush.bf16.msra.mxu0 %v1503
    %1958 = vmatmul.bf16.gmra.mxu0 %v1442
    %v1959 = vpop.f32.mrf.mxu0
    %v1960 = vadd.f32 %v1851, %v1959
    %v1961 = vpop.f32.mrf.mxu0
    %v1962 = vadd.f32 %v1853, %v1961
    %1963 = vmatmul.bf16.gmra.mxu0 %v1445
    %v1964 = vpop.f32.mrf.mxu0
    %v1965 = vadd.f32 %v1856, %v1964
    %v1966 = vpop.f32.mrf.mxu0
    %v1967 = vadd.f32 %v1858, %v1966
    %1968 = vmatmul.bf16.gmra.mxu0 %v1448
    %v1969 = vpop.f32.mrf.mxu0
    %v1970 = vadd.f32 %v1861, %v1969
    %v1971 = vpop.f32.mrf.mxu0
    %v1972 = vadd.f32 %v1863, %v1971
    %1973 = vmatmul.bf16.gmra.mxu0 %v1451
    %v1974 = vpop.f32.mrf.mxu0
    %v1975 = vadd.f32 %v1866, %v1974
    %v1976 = vpop.f32.mrf.mxu0
    %v1977 = vadd.f32 %v1868, %v1976
    %1978 = vmatmul.bf16.gmra.mxu0 %v1454
    %v1979 = vpop.f32.mrf.mxu0
    %v1980 = vadd.f32 %v1871, %v1979
    %v1981 = vpop.f32.mrf.mxu0
    %v1982 = vadd.f32 %v1873, %v1981
    %1983 = vmatmul.bf16.gmra.mxu0 %v1457
    %v1984 = vpop.f32.mrf.mxu0
    %v1985 = vadd.f32 %v1876, %v1984
    %v1986 = vpop.f32.mrf.mxu0
    %v1987 = vadd.f32 %v1878, %v1986
    %1988 = vmatmul.bf16.gmra.mxu0 %v1460
    %v1989 = vpop.f32.mrf.mxu0
    %v1990 = vadd.f32 %v1881, %v1989
    %v1991 = vpop.f32.mrf.mxu0
    %v1992 = vadd.f32 %v1883, %v1991
    %1993 = vmatmul.bf16.gmra.mxu0 %v1463
    %v1994 = vpop.f32.mrf.mxu0
    %v1995 = vadd.f32 %v1886, %v1994
    %v1996 = vpop.f32.mrf.mxu0
    %v1997 = vadd.f32 %v1888, %v1996
    %1998 = vmatmul.bf16.gmra.mxu0 %v1466
    %v1999 = vpop.f32.mrf.mxu0
    %v2000 = vadd.f32 %v1891, %v1999
    %v2001 = vpop.f32.mrf.mxu0
    %v2002 = vadd.f32 %v1893, %v2001
    %2003 = vmatmul.bf16.gmra.mxu0 %v1469
    %v2004 = vpop.f32.mrf.mxu0
    %v2005 = vadd.f32 %v1896, %v2004
    %v2006 = vpop.f32.mrf.mxu0
    %v2007 = vadd.f32 %v1898, %v2006
    %2008 = vmatmul.bf16.gmra.mxu0 %v1472
    %v2009 = vpop.f32.mrf.mxu0
    %v2010 = vadd.f32 %v1901, %v2009
    %v2011 = vpop.f32.mrf.mxu0
    %v2012 = vadd.f32 %v1903, %v2011
    %2013 = vmatmul.bf16.gmra.mxu0 %v1475
    %v2014 = vpop.f32.mrf.mxu0
    %v2015 = vadd.f32 %v1906, %v2014
    %v2016 = vpop.f32.mrf.mxu0
    %v2017 = vadd.f32 %v1908, %v2016
    %2018 = vmatmul.bf16.gmra.mxu0 %v1478
    %v2019 = vpop.f32.mrf.mxu0
    %v2020 = vadd.f32 %v1911, %v2019
    %v2021 = vpop.f32.mrf.mxu0
    %v2022 = vadd.f32 %v1913, %v2021
    %2023 = vmatmul.bf16.gmra.mxu0 %v1481
    %v2024 = vpop.f32.mrf.mxu0
    %v2025 = vadd.f32 %v1916, %v2024
    %v2026 = vpop.f32.mrf.mxu0
    %v2027 = vadd.f32 %v1918, %v2026
    %2028 = vmatmul.bf16.gmra.mxu0 %v1484
    %v2029 = vpop.f32.mrf.mxu0
    %v2030 = vadd.f32 %v1921, %v2029
    %v2031 = vpop.f32.mrf.mxu0
    %v2032 = vadd.f32 %v1923, %v2031
    %2033 = vmatmul.bf16.gmra.mxu0 %v1487
    %v2034 = vpop.f32.mrf.mxu0
    %v2035 = vadd.f32 %v1926, %v2034
    %v2036 = vpop.f32.mrf.mxu0
    %v2037 = vadd.f32 %v1928, %v2036
    %2038 = vmatmul.bf16.gmra.mxu0 %v1490
    %v2039 = vpop.f32.mrf.mxu0
    %v2040 = vadd.f32 %v1931, %v2039
    %v2041 = vpop.f32.mrf.mxu0
    %v2042 = vadd.f32 %v1933, %v2041
    %2043 = vmatmul.bf16.gmra.mxu0 %v1493
    %v2044 = vpop.f32.mrf.mxu0
    %v2045 = vadd.f32 %v1936, %v2044
    %v2046 = vpop.f32.mrf.mxu0
    %v2047 = vadd.f32 %v1938, %v2046
    %2048 = vmatmul.bf16.gmra.mxu0 %v1496
    %v2049 = vpop.f32.mrf.mxu0
    %v2050 = vadd.f32 %v1941, %v2049
    %v2051 = vpop.f32.mrf.mxu0
    %v2052 = vadd.f32 %v1943, %v2051
    %2053 = vmatmul.bf16.gmra.mxu0 %v1499
    %v2054 = vpop.f32.mrf.mxu0
    %v2055 = vadd.f32 %v1946, %v2054
    %v2056 = vpop.f32.mrf.mxu0
    %v2057 = vadd.f32 %v1948, %v2056
    %2058 = vdwg.mxu0
    %2059 = vmatpush.bf16.msra.mxu0 %v1209
    %2060 = vmatpush.bf16.msra.mxu0 %v1205
    %2061 = vmatpush.bf16.msra.mxu0 %v1201
    %2062 = vmatpush.bf16.msra.mxu0 %v1197
    %2063 = vmatpush.bf16.msra.mxu0 %v1193
    %2064 = vmatpush.bf16.msra.mxu0 %v1189
    %2065 = vmatpush.bf16.msra.mxu0 %v1185
    %2066 = vmatpush.bf16.msra.mxu0 %v1181
    %2067 = vmatmul.bf16.gmra.mxu0 %v604
    %v2068 = vpop.f32.mrf.mxu0
    %v2069 = vadd.f32 %v277, %v2068
    %v2070 = vpop.f32.mrf.mxu0
    %v2071 = vadd.f32 %v277, %v2070
    %2072 = vmatmul.bf16.gmra.mxu0 %v609
    %v2073 = vpop.f32.mrf.mxu0
    %v2074 = vadd.f32 %v277, %v2073
    %v2075 = vpop.f32.mrf.mxu0
    %v2076 = vadd.f32 %v277, %v2075
    %2077 = vmatmul.bf16.gmra.mxu0 %v614
    %v2078 = vpop.f32.mrf.mxu0
    %v2079 = vadd.f32 %v277, %v2078
    %v2080 = vpop.f32.mrf.mxu0
    %v2081 = vadd.f32 %v277, %v2080
    %2082 = vmatmul.bf16.gmra.mxu0 %v619
    %v2083 = vpop.f32.mrf.mxu0
    %v2084 = vadd.f32 %v277, %v2083
    %v2085 = vpop.f32.mrf.mxu0
    %v2086 = vadd.f32 %v277, %v2085
    %2087 = vmatmul.bf16.gmra.mxu0 %v624
    %v2088 = vpop.f32.mrf.mxu0
    %v2089 = vadd.f32 %v277, %v2088
    %v2090 = vpop.f32.mrf.mxu0
    %v2091 = vadd.f32 %v277, %v2090
    %2092 = vmatmul.bf16.gmra.mxu0 %v629
    %v2093 = vpop.f32.mrf.mxu0
    %v2094 = vadd.f32 %v277, %v2093
    %v2095 = vpop.f32.mrf.mxu0
    %v2096 = vadd.f32 %v277, %v2095
    %2097 = vmatmul.bf16.gmra.mxu0 %v634
    %v2098 = vpop.f32.mrf.mxu0
    %v2099 = vadd.f32 %v277, %v2098
    %v2100 = vpop.f32.mrf.mxu0
    %v2101 = vadd.f32 %v277, %v2100
    %2102 = vmatmul.bf16.gmra.mxu0 %v639
    %v2103 = vpop.f32.mrf.mxu0
    %v2104 = vadd.f32 %v277, %v2103
    %v2105 = vpop.f32.mrf.mxu0
    %v2106 = vadd.f32 %v277, %v2105
    %2107 = vmatmul.bf16.gmra.mxu0 %v644
    %v2108 = vpop.f32.mrf.mxu0
    %v2109 = vadd.f32 %v277, %v2108
    %v2110 = vpop.f32.mrf.mxu0
    %v2111 = vadd.f32 %v277, %v2110
    %2112 = vmatmul.bf16.gmra.mxu0 %v649
    %v2113 = vpop.f32.mrf.mxu0
    %v2114 = vadd.f32 %v277, %v2113
    %v2115 = vpop.f32.mrf.mxu0
    %v2116 = vadd.f32 %v277, %v2115
    %2117 = vmatmul.bf16.gmra.mxu0 %v654
    %v2118 = vpop.f32.mrf.mxu0
    %v2119 = vadd.f32 %v277, %v2118
    %v2120 = vpop.f32.mrf.mxu0
    %v2121 = vadd.f32 %v277, %v2120
    %2122 = vmatmul.bf16.gmra.mxu0 %v659
    %v2123 = vpop.f32.mrf.mxu0
    %v2124 = vadd.f32 %v277, %v2123
    %v2125 = vpop.f32.mrf.mxu0
    %v2126 = vadd.f32 %v277, %v2125
    %2127 = vmatmul.bf16.gmra.mxu0 %v664
    %v2128 = vpop.f32.mrf.mxu0
    %v2129 = vadd.f32 %v277, %v2128
    %v2130 = vpop.f32.mrf.mxu0
    %v2131 = vadd.f32 %v277, %v2130
    %2132 = vmatmul.bf16.gmra.mxu0 %v669
    %v2133 = vpop.f32.mrf.mxu0
    %v2134 = vadd.f32 %v277, %v2133
    %v2135 = vpop.f32.mrf.mxu0
    %v2136 = vadd.f32 %v277, %v2135
    %2137 = vmatmul.bf16.gmra.mxu0 %v674
    %v2138 = vpop.f32.mrf.mxu0
    %v2139 = vadd.f32 %v277, %v2138
    %v2140 = vpop.f32.mrf.mxu0
    %v2141 = vadd.f32 %v277, %v2140
    %2142 = vmatmul.bf16.gmra.mxu0 %v679
    %v2143 = vpop.f32.mrf.mxu0
    %v2144 = vadd.f32 %v277, %v2143
    %v2145 = vpop.f32.mrf.mxu0
    %v2146 = vadd.f32 %v277, %v2145
    %2147 = vmatmul.bf16.gmra.mxu0 %v684
    %v2148 = vpop.f32.mrf.mxu0
    %v2149 = vadd.f32 %v277, %v2148
    %v2150 = vpop.f32.mrf.mxu0
    %v2151 = vadd.f32 %v277, %v2150
    %2152 = vmatmul.bf16.gmra.mxu0 %v689
    %v2153 = vpop.f32.mrf.mxu0
    %v2154 = vadd.f32 %v277, %v2153
    %v2155 = vpop.f32.mrf.mxu0
    %v2156 = vadd.f32 %v277, %v2155
    %2157 = vmatmul.bf16.gmra.mxu0 %v694
    %v2158 = vpop.f32.mrf.mxu0
    %v2159 = vadd.f32 %v277, %v2158
    %v2160 = vpop.f32.mrf.mxu0
    %v2161 = vadd.f32 %v277, %v2160
    %2162 = vmatmul.bf16.gmra.mxu0 %v699
    %v2163 = vpop.f32.mrf.mxu0
    %v2164 = vadd.f32 %v277, %v2163
    %v2165 = vpop.f32.mrf.mxu0
    %v2166 = vadd.f32 %v277, %v2165
    %2167 = vdwg.mxu0
    %2168 = vmatpush.bf16.msra.mxu0 %v1241
    %2169 = vmatpush.bf16.msra.mxu0 %v1237
    %2170 = vmatpush.bf16.msra.mxu0 %v1233
    %2171 = vmatpush.bf16.msra.mxu0 %v1229
    %2172 = vmatpush.bf16.msra.mxu0 %v1225
    %2173 = vmatpush.bf16.msra.mxu0 %v1221
    %2174 = vmatpush.bf16.msra.mxu0 %v1217
    %2175 = vmatpush.bf16.msra.mxu0 %v1213
    %2176 = vmatmul.bf16.gmra.mxu0 %v605
    %v2177 = vpop.f32.mrf.mxu0
    %v2178 = vadd.f32 %v2069, %v2177
    %v2179 = vpop.f32.mrf.mxu0
    %v2180 = vadd.f32 %v2071, %v2179
    %2181 = vmatmul.bf16.gmra.mxu0 %v610
    %v2182 = vpop.f32.mrf.mxu0
    %v2183 = vadd.f32 %v2074, %v2182
    %v2184 = vpop.f32.mrf.mxu0
    %v2185 = vadd.f32 %v2076, %v2184
    %2186 = vmatmul.bf16.gmra.mxu0 %v615
    %v2187 = vpop.f32.mrf.mxu0
    %v2188 = vadd.f32 %v2079, %v2187
    %v2189 = vpop.f32.mrf.mxu0
    %v2190 = vadd.f32 %v2081, %v2189
    %2191 = vmatmul.bf16.gmra.mxu0 %v620
    %v2192 = vpop.f32.mrf.mxu0
    %v2193 = vadd.f32 %v2084, %v2192
    %v2194 = vpop.f32.mrf.mxu0
    %v2195 = vadd.f32 %v2086, %v2194
    %2196 = vmatmul.bf16.gmra.mxu0 %v625
    %v2197 = vpop.f32.mrf.mxu0
    %v2198 = vadd.f32 %v2089, %v2197
    %v2199 = vpop.f32.mrf.mxu0
    %v2200 = vadd.f32 %v2091, %v2199
    %2201 = vmatmul.bf16.gmra.mxu0 %v630
    %v2202 = vpop.f32.mrf.mxu0
    %v2203 = vadd.f32 %v2094, %v2202
    %v2204 = vpop.f32.mrf.mxu0
    %v2205 = vadd.f32 %v2096, %v2204
    %2206 = vmatmul.bf16.gmra.mxu0 %v635
    %v2207 = vpop.f32.mrf.mxu0
    %v2208 = vadd.f32 %v2099, %v2207
    %v2209 = vpop.f32.mrf.mxu0
    %v2210 = vadd.f32 %v2101, %v2209
    %2211 = vmatmul.bf16.gmra.mxu0 %v640
    %v2212 = vpop.f32.mrf.mxu0
    %v2213 = vadd.f32 %v2104, %v2212
    %v2214 = vpop.f32.mrf.mxu0
    %v2215 = vadd.f32 %v2106, %v2214
    %2216 = vmatmul.bf16.gmra.mxu0 %v645
    %v2217 = vpop.f32.mrf.mxu0
    %v2218 = vadd.f32 %v2109, %v2217
    %v2219 = vpop.f32.mrf.mxu0
    %v2220 = vadd.f32 %v2111, %v2219
    %2221 = vmatmul.bf16.gmra.mxu0 %v650
    %v2222 = vpop.f32.mrf.mxu0
    %v2223 = vadd.f32 %v2114, %v2222
    %v2224 = vpop.f32.mrf.mxu0
    %v2225 = vadd.f32 %v2116, %v2224
    %2226 = vmatmul.bf16.gmra.mxu0 %v655
    %v2227 = vpop.f32.mrf.mxu0
    %v2228 = vadd.f32 %v2119, %v2227
    %v2229 = vpop.f32.mrf.mxu0
    %v2230 = vadd.f32 %v2121, %v2229
    %2231 = vmatmul.bf16.gmra.mxu0 %v660
    %v2232 = vpop.f32.mrf.mxu0
    %v2233 = vadd.f32 %v2124, %v2232
    %v2234 = vpop.f32.mrf.mxu0
    %v2235 = vadd.f32 %v2126, %v2234
    %2236 = vmatmul.bf16.gmra.mxu0 %v665
    %v2237 = vpop.f32.mrf.mxu0
    %v2238 = vadd.f32 %v2129, %v2237
    %v2239 = vpop.f32.mrf.mxu0
    %v2240 = vadd.f32 %v2131, %v2239
    %2241 = vmatmul.bf16.gmra.mxu0 %v670
    %v2242 = vpop.f32.mrf.mxu0
    %v2243 = vadd.f32 %v2134, %v2242
    %v2244 = vpop.f32.mrf.mxu0
    %v2245 = vadd.f32 %v2136, %v2244
    %2246 = vmatmul.bf16.gmra.mxu0 %v675
    %v2247 = vpop.f32.mrf.mxu0
    %v2248 = vadd.f32 %v2139, %v2247
    %v2249 = vpop.f32.mrf.mxu0
    %v2250 = vadd.f32 %v2141, %v2249
    %2251 = vmatmul.bf16.gmra.mxu0 %v680
    %v2252 = vpop.f32.mrf.mxu0
    %v2253 = vadd.f32 %v2144, %v2252
    %v2254 = vpop.f32.mrf.mxu0
    %v2255 = vadd.f32 %v2146, %v2254
    %2256 = vmatmul.bf16.gmra.mxu0 %v685
    %v2257 = vpop.f32.mrf.mxu0
    %v2258 = vadd.f32 %v2149, %v2257
    %v2259 = vpop.f32.mrf.mxu0
    %v2260 = vadd.f32 %v2151, %v2259
    %2261 = vmatmul.bf16.gmra.mxu0 %v690
    %v2262 = vpop.f32.mrf.mxu0
    %v2263 = vadd.f32 %v2154, %v2262
    %v2264 = vpop.f32.mrf.mxu0
    %v2265 = vadd.f32 %v2156, %v2264
    %2266 = vmatmul.bf16.gmra.mxu0 %v695
    %v2267 = vpop.f32.mrf.mxu0
    %v2268 = vadd.f32 %v2159, %v2267
    %v2269 = vpop.f32.mrf.mxu0
    %v2270 = vadd.f32 %v2161, %v2269
    %2271 = vmatmul.bf16.gmra.mxu0 %v700
    %v2272 = vpop.f32.mrf.mxu0
    %v2273 = vadd.f32 %v2164, %v2272
    %v2274 = vpop.f32.mrf.mxu0
    %v2275 = vadd.f32 %v2166, %v2274
    %2276 = vdwg.mxu0
    %2277 = vmatpush.bf16.msra.mxu0 %v1273
    %2278 = vmatpush.bf16.msra.mxu0 %v1269
    %2279 = vmatpush.bf16.msra.mxu0 %v1265
    %2280 = vmatpush.bf16.msra.mxu0 %v1261
    %2281 = vmatpush.bf16.msra.mxu0 %v1257
    %2282 = vmatpush.bf16.msra.mxu0 %v1253
    %2283 = vmatpush.bf16.msra.mxu0 %v1249
    %2284 = vmatpush.bf16.msra.mxu0 %v1245
    %2285 = vmatmul.bf16.gmra.mxu0 %v606
    %v2286 = vpop.f32.mrf.mxu0
    %v2287 = vadd.f32 %v2178, %v2286
    %v2288 = vpop.f32.mrf.mxu0
    %v2289 = vadd.f32 %v2180, %v2288
    %2290 = vmatmul.bf16.gmra.mxu0 %v611
    %v2291 = vpop.f32.mrf.mxu0
    %v2292 = vadd.f32 %v2183, %v2291
    %v2293 = vpop.f32.mrf.mxu0
    %v2294 = vadd.f32 %v2185, %v2293
    %2295 = vmatmul.bf16.gmra.mxu0 %v616
    %v2296 = vpop.f32.mrf.mxu0
    %v2297 = vadd.f32 %v2188, %v2296
    %v2298 = vpop.f32.mrf.mxu0
    %v2299 = vadd.f32 %v2190, %v2298
    %2300 = vmatmul.bf16.gmra.mxu0 %v621
    %v2301 = vpop.f32.mrf.mxu0
    %v2302 = vadd.f32 %v2193, %v2301
    %v2303 = vpop.f32.mrf.mxu0
    %v2304 = vadd.f32 %v2195, %v2303
    %2305 = vmatmul.bf16.gmra.mxu0 %v626
    %v2306 = vpop.f32.mrf.mxu0
    %v2307 = vadd.f32 %v2198, %v2306
    %v2308 = vpop.f32.mrf.mxu0
    %v2309 = vadd.f32 %v2200, %v2308
    %2310 = vmatmul.bf16.gmra.mxu0 %v631
    %v2311 = vpop.f32.mrf.mxu0
    %v2312 = vadd.f32 %v2203, %v2311
    %v2313 = vpop.f32.mrf.mxu0
    %v2314 = vadd.f32 %v2205, %v2313
    %2315 = vmatmul.bf16.gmra.mxu0 %v636
    %v2316 = vpop.f32.mrf.mxu0
    %v2317 = vadd.f32 %v2208, %v2316
    %v2318 = vpop.f32.mrf.mxu0
    %v2319 = vadd.f32 %v2210, %v2318
    %2320 = vmatmul.bf16.gmra.mxu0 %v641
    %v2321 = vpop.f32.mrf.mxu0
    %v2322 = vadd.f32 %v2213, %v2321
    %v2323 = vpop.f32.mrf.mxu0
    %v2324 = vadd.f32 %v2215, %v2323
    %2325 = vmatmul.bf16.gmra.mxu0 %v646
    %v2326 = vpop.f32.mrf.mxu0
    %v2327 = vadd.f32 %v2218, %v2326
    %v2328 = vpop.f32.mrf.mxu0
    %v2329 = vadd.f32 %v2220, %v2328
    %2330 = vmatmul.bf16.gmra.mxu0 %v651
    %v2331 = vpop.f32.mrf.mxu0
    %v2332 = vadd.f32 %v2223, %v2331
    %v2333 = vpop.f32.mrf.mxu0
    %v2334 = vadd.f32 %v2225, %v2333
    %2335 = vmatmul.bf16.gmra.mxu0 %v656
    %v2336 = vpop.f32.mrf.mxu0
    %v2337 = vadd.f32 %v2228, %v2336
    %v2338 = vpop.f32.mrf.mxu0
    %v2339 = vadd.f32 %v2230, %v2338
    %2340 = vmatmul.bf16.gmra.mxu0 %v661
    %v2341 = vpop.f32.mrf.mxu0
    %v2342 = vadd.f32 %v2233, %v2341
    %v2343 = vpop.f32.mrf.mxu0
    %v2344 = vadd.f32 %v2235, %v2343
    %2345 = vmatmul.bf16.gmra.mxu0 %v666
    %v2346 = vpop.f32.mrf.mxu0
    %v2347 = vadd.f32 %v2238, %v2346
    %v2348 = vpop.f32.mrf.mxu0
    %v2349 = vadd.f32 %v2240, %v2348
    %2350 = vmatmul.bf16.gmra.mxu0 %v671
    %v2351 = vpop.f32.mrf.mxu0
    %v2352 = vadd.f32 %v2243, %v2351
    %v2353 = vpop.f32.mrf.mxu0
    %v2354 = vadd.f32 %v2245, %v2353
    %2355 = vmatmul.bf16.gmra.mxu0 %v676
    %v2356 = vpop.f32.mrf.mxu0
    %v2357 = vadd.f32 %v2248, %v2356
    %v2358 = vpop.f32.mrf.mxu0
    %v2359 = vadd.f32 %v2250, %v2358
    %2360 = vmatmul.bf16.gmra.mxu0 %v681
    %v2361 = vpop.f32.mrf.mxu0
    %v2362 = vadd.f32 %v2253, %v2361
    %v2363 = vpop.f32.mrf.mxu0
    %v2364 = vadd.f32 %v2255, %v2363
    %2365 = vmatmul.bf16.gmra.mxu0 %v686
    %v2366 = vpop.f32.mrf.mxu0
    %v2367 = vadd.f32 %v2258, %v2366
    %v2368 = vpop.f32.mrf.mxu0
    %v2369 = vadd.f32 %v2260, %v2368
    %2370 = vmatmul.bf16.gmra.mxu0 %v691
    %v2371 = vpop.f32.mrf.mxu0
    %v2372 = vadd.f32 %v2263, %v2371
    %v2373 = vpop.f32.mrf.mxu0
    %v2374 = vadd.f32 %v2265, %v2373
    %2375 = vmatmul.bf16.gmra.mxu0 %v696
    %v2376 = vpop.f32.mrf.mxu0
    %v2377 = vadd.f32 %v2268, %v2376
    %v2378 = vpop.f32.mrf.mxu0
    %v2379 = vadd.f32 %v2270, %v2378
    %2380 = vmatmul.bf16.gmra.mxu0 %v701
    %v2381 = vpop.f32.mrf.mxu0
    %v2382 = vadd.f32 %v2273, %v2381
    %v2383 = vpop.f32.mrf.mxu0
    %v2384 = vadd.f32 %v2275, %v2383
    %2385 = vdwg.mxu0
    %2386 = vmatpush.bf16.msra.mxu0 %v1305
    %2387 = vmatpush.bf16.msra.mxu0 %v1301
    %2388 = vmatpush.bf16.msra.mxu0 %v1297
    %2389 = vmatpush.bf16.msra.mxu0 %v1293
    %2390 = vmatpush.bf16.msra.mxu0 %v1289
    %2391 = vmatpush.bf16.msra.mxu0 %v1285
    %2392 = vmatpush.bf16.msra.mxu0 %v1281
    %2393 = vmatpush.bf16.msra.mxu0 %v1277
    %2394 = vmatmul.bf16.gmra.mxu0 %v607
    %v2395 = vpop.f32.mrf.mxu0
    %v2396 = vadd.f32 %v2287, %v2395
    %v2397 = vpop.f32.mrf.mxu0
    %v2398 = vadd.f32 %v2289, %v2397
    %2399 = vmatmul.bf16.gmra.mxu0 %v612
    %v2400 = vpop.f32.mrf.mxu0
    %v2401 = vadd.f32 %v2292, %v2400
    %v2402 = vpop.f32.mrf.mxu0
    %v2403 = vadd.f32 %v2294, %v2402
    %2404 = vmatmul.bf16.gmra.mxu0 %v617
    %v2405 = vpop.f32.mrf.mxu0
    %v2406 = vadd.f32 %v2297, %v2405
    %v2407 = vpop.f32.mrf.mxu0
    %v2408 = vadd.f32 %v2299, %v2407
    %2409 = vmatmul.bf16.gmra.mxu0 %v622
    %v2410 = vpop.f32.mrf.mxu0
    %v2411 = vadd.f32 %v2302, %v2410
    %v2412 = vpop.f32.mrf.mxu0
    %v2413 = vadd.f32 %v2304, %v2412
    %2414 = vmatmul.bf16.gmra.mxu0 %v627
    %v2415 = vpop.f32.mrf.mxu0
    %v2416 = vadd.f32 %v2307, %v2415
    %v2417 = vpop.f32.mrf.mxu0
    %v2418 = vadd.f32 %v2309, %v2417
    %2419 = vmatmul.bf16.gmra.mxu0 %v632
    %v2420 = vpop.f32.mrf.mxu0
    %v2421 = vadd.f32 %v2312, %v2420
    %v2422 = vpop.f32.mrf.mxu0
    %v2423 = vadd.f32 %v2314, %v2422
    %2424 = vmatmul.bf16.gmra.mxu0 %v637
    %v2425 = vpop.f32.mrf.mxu0
    %v2426 = vadd.f32 %v2317, %v2425
    %v2427 = vpop.f32.mrf.mxu0
    %v2428 = vadd.f32 %v2319, %v2427
    %2429 = vmatmul.bf16.gmra.mxu0 %v642
    %v2430 = vpop.f32.mrf.mxu0
    %v2431 = vadd.f32 %v2322, %v2430
    %v2432 = vpop.f32.mrf.mxu0
    %v2433 = vadd.f32 %v2324, %v2432
    %2434 = vmatmul.bf16.gmra.mxu0 %v647
    %v2435 = vpop.f32.mrf.mxu0
    %v2436 = vadd.f32 %v2327, %v2435
    %v2437 = vpop.f32.mrf.mxu0
    %v2438 = vadd.f32 %v2329, %v2437
    %2439 = vmatmul.bf16.gmra.mxu0 %v652
    %v2440 = vpop.f32.mrf.mxu0
    %v2441 = vadd.f32 %v2332, %v2440
    %v2442 = vpop.f32.mrf.mxu0
    %v2443 = vadd.f32 %v2334, %v2442
    %2444 = vmatmul.bf16.gmra.mxu0 %v657
    %v2445 = vpop.f32.mrf.mxu0
    %v2446 = vadd.f32 %v2337, %v2445
    %v2447 = vpop.f32.mrf.mxu0
    %v2448 = vadd.f32 %v2339, %v2447
    %2449 = vmatmul.bf16.gmra.mxu0 %v662
    %v2450 = vpop.f32.mrf.mxu0
    %v2451 = vadd.f32 %v2342, %v2450
    %v2452 = vpop.f32.mrf.mxu0
    %v2453 = vadd.f32 %v2344, %v2452
    %2454 = vmatmul.bf16.gmra.mxu0 %v667
    %v2455 = vpop.f32.mrf.mxu0
    %v2456 = vadd.f32 %v2347, %v2455
    %v2457 = vpop.f32.mrf.mxu0
    %v2458 = vadd.f32 %v2349, %v2457
    %2459 = vmatmul.bf16.gmra.mxu0 %v672
    %v2460 = vpop.f32.mrf.mxu0
    %v2461 = vadd.f32 %v2352, %v2460
    %v2462 = vpop.f32.mrf.mxu0
    %v2463 = vadd.f32 %v2354, %v2462
    %2464 = vmatmul.bf16.gmra.mxu0 %v677
    %v2465 = vpop.f32.mrf.mxu0
    %v2466 = vadd.f32 %v2357, %v2465
    %v2467 = vpop.f32.mrf.mxu0
    %v2468 = vadd.f32 %v2359, %v2467
    %2469 = vmatmul.bf16.gmra.mxu0 %v682
    %v2470 = vpop.f32.mrf.mxu0
    %v2471 = vadd.f32 %v2362, %v2470
    %v2472 = vpop.f32.mrf.mxu0
    %v2473 = vadd.f32 %v2364, %v2472
    %2474 = vmatmul.bf16.gmra.mxu0 %v687
    %v2475 = vpop.f32.mrf.mxu0
    %v2476 = vadd.f32 %v2367, %v2475
    %v2477 = vpop.f32.mrf.mxu0
    %v2478 = vadd.f32 %v2369, %v2477
    %2479 = vmatmul.bf16.gmra.mxu0 %v692
    %v2480 = vpop.f32.mrf.mxu0
    %v2481 = vadd.f32 %v2372, %v2480
    %v2482 = vpop.f32.mrf.mxu0
    %v2483 = vadd.f32 %v2374, %v2482
    %2484 = vmatmul.bf16.gmra.mxu0 %v697
    %v2485 = vpop.f32.mrf.mxu0
    %v2486 = vadd.f32 %v2377, %v2485
    %v2487 = vpop.f32.mrf.mxu0
    %v2488 = vadd.f32 %v2379, %v2487
    %2489 = vmatmul.bf16.gmra.mxu0 %v702
    %v2490 = vpop.f32.mrf.mxu0
    %v2491 = vadd.f32 %v2382, %v2490
    %v2492 = vpop.f32.mrf.mxu0
    %v2493 = vadd.f32 %v2384, %v2492
    %2494 = vdwg.mxu0
    %2495 = vmatpush.bf16.msra.mxu0 0
    %2496 = vmatpush.bf16.msra.mxu0 0
    %2497 = vmatpush.bf16.msra.mxu0 0
    %2498 = vmatpush.bf16.msra.mxu0 0
    %2499 = vmatpush.bf16.msra.mxu0 0
    %2500 = vmatpush.bf16.msra.mxu0 0
    %2501 = vmatpush.bf16.msra.mxu0 0
    %2502 = vmatpush.bf16.msra.mxu0 %v1506
    %2503 = vmatmul.bf16.gmra.mxu0 %v1442
    %v2504 = vpop.f32.mrf.mxu0
    %v2505 = vadd.f32 %v2396, %v2504
    %v2506 = vpop.f32.mrf.mxu0
    %v2507 = vadd.f32 %v2398, %v2506
    %2508 = vmatmul.bf16.gmra.mxu0 %v1445
    %v2509 = vpop.f32.mrf.mxu0
    %v2510 = vadd.f32 %v2401, %v2509
    %v2511 = vpop.f32.mrf.mxu0
    %v2512 = vadd.f32 %v2403, %v2511
    %2513 = vmatmul.bf16.gmra.mxu0 %v1448
    %v2514 = vpop.f32.mrf.mxu0
    %v2515 = vadd.f32 %v2406, %v2514
    %v2516 = vpop.f32.mrf.mxu0
    %v2517 = vadd.f32 %v2408, %v2516
    %2518 = vmatmul.bf16.gmra.mxu0 %v1451
    %v2519 = vpop.f32.mrf.mxu0
    %v2520 = vadd.f32 %v2411, %v2519
    %v2521 = vpop.f32.mrf.mxu0
    %v2522 = vadd.f32 %v2413, %v2521
    %2523 = vmatmul.bf16.gmra.mxu0 %v1454
    %v2524 = vpop.f32.mrf.mxu0
    %v2525 = vadd.f32 %v2416, %v2524
    %v2526 = vpop.f32.mrf.mxu0
    %v2527 = vadd.f32 %v2418, %v2526
    %2528 = vmatmul.bf16.gmra.mxu0 %v1457
    %v2529 = vpop.f32.mrf.mxu0
    %v2530 = vadd.f32 %v2421, %v2529
    %v2531 = vpop.f32.mrf.mxu0
    %v2532 = vadd.f32 %v2423, %v2531
    %2533 = vmatmul.bf16.gmra.mxu0 %v1460
    %v2534 = vpop.f32.mrf.mxu0
    %v2535 = vadd.f32 %v2426, %v2534
    %v2536 = vpop.f32.mrf.mxu0
    %v2537 = vadd.f32 %v2428, %v2536
    %2538 = vmatmul.bf16.gmra.mxu0 %v1463
    %v2539 = vpop.f32.mrf.mxu0
    %v2540 = vadd.f32 %v2431, %v2539
    %v2541 = vpop.f32.mrf.mxu0
    %v2542 = vadd.f32 %v2433, %v2541
    %2543 = vmatmul.bf16.gmra.mxu0 %v1466
    %v2544 = vpop.f32.mrf.mxu0
    %v2545 = vadd.f32 %v2436, %v2544
    %v2546 = vpop.f32.mrf.mxu0
    %v2547 = vadd.f32 %v2438, %v2546
    %2548 = vmatmul.bf16.gmra.mxu0 %v1469
    %v2549 = vpop.f32.mrf.mxu0
    %v2550 = vadd.f32 %v2441, %v2549
    %v2551 = vpop.f32.mrf.mxu0
    %v2552 = vadd.f32 %v2443, %v2551
    %2553 = vmatmul.bf16.gmra.mxu0 %v1472
    %v2554 = vpop.f32.mrf.mxu0
    %v2555 = vadd.f32 %v2446, %v2554
    %v2556 = vpop.f32.mrf.mxu0
    %v2557 = vadd.f32 %v2448, %v2556
    %2558 = vmatmul.bf16.gmra.mxu0 %v1475
    %v2559 = vpop.f32.mrf.mxu0
    %v2560 = vadd.f32 %v2451, %v2559
    %v2561 = vpop.f32.mrf.mxu0
    %v2562 = vadd.f32 %v2453, %v2561
    %2563 = vmatmul.bf16.gmra.mxu0 %v1478
    %v2564 = vpop.f32.mrf.mxu0
    %v2565 = vadd.f32 %v2456, %v2564
    %v2566 = vpop.f32.mrf.mxu0
    %v2567 = vadd.f32 %v2458, %v2566
    %2568 = vmatmul.bf16.gmra.mxu0 %v1481
    %v2569 = vpop.f32.mrf.mxu0
    %v2570 = vadd.f32 %v2461, %v2569
    %v2571 = vpop.f32.mrf.mxu0
    %v2572 = vadd.f32 %v2463, %v2571
    %2573 = vmatmul.bf16.gmra.mxu0 %v1484
    %v2574 = vpop.f32.mrf.mxu0
    %v2575 = vadd.f32 %v2466, %v2574
    %v2576 = vpop.f32.mrf.mxu0
    %v2577 = vadd.f32 %v2468, %v2576
    %2578 = vmatmul.bf16.gmra.mxu0 %v1487
    %v2579 = vpop.f32.mrf.mxu0
    %v2580 = vadd.f32 %v2471, %v2579
    %v2581 = vpop.f32.mrf.mxu0
    %v2582 = vadd.f32 %v2473, %v2581
    %2583 = vmatmul.bf16.gmra.mxu0 %v1490
    %v2584 = vpop.f32.mrf.mxu0
    %v2585 = vadd.f32 %v2476, %v2584
    %v2586 = vpop.f32.mrf.mxu0
    %v2587 = vadd.f32 %v2478, %v2586
    %2588 = vmatmul.bf16.gmra.mxu0 %v1493
    %v2589 = vpop.f32.mrf.mxu0
    %v2590 = vadd.f32 %v2481, %v2589
    %v2591 = vpop.f32.mrf.mxu0
    %v2592 = vadd.f32 %v2483, %v2591
    %2593 = vmatmul.bf16.gmra.mxu0 %v1496
    %v2594 = vpop.f32.mrf.mxu0
    %v2595 = vadd.f32 %v2486, %v2594
    %v2596 = vpop.f32.mrf.mxu0
    %v2597 = vadd.f32 %v2488, %v2596
    %2598 = vmatmul.bf16.gmra.mxu0 %v1499
    %v2599 = vpop.f32.mrf.mxu0
    %v2600 = vadd.f32 %v2491, %v2599
    %v2601 = vpop.f32.mrf.mxu0
    %v2602 = vadd.f32 %v2493, %v2601
    %2603 = vdwg.mxu0
    %2604 = vmatpush.bf16.msra.mxu0 %v1210
    %2605 = vmatpush.bf16.msra.mxu0 %v1206
    %2606 = vmatpush.bf16.msra.mxu0 %v1202
    %2607 = vmatpush.bf16.msra.mxu0 %v1198
    %2608 = vmatpush.bf16.msra.mxu0 %v1194
    %2609 = vmatpush.bf16.msra.mxu0 %v1190
    %2610 = vmatpush.bf16.msra.mxu0 %v1186
    %2611 = vmatpush.bf16.msra.mxu0 %v1182
    %2612 = vmatmul.bf16.gmra.mxu0 %v604
    %v2613 = vpop.f32.mrf.mxu0
    %v2614 = vadd.f32 %v278, %v2613
    %v2615 = vpop.f32.mrf.mxu0
    %v2616 = vadd.f32 %v278, %v2615
    %2617 = vmatmul.bf16.gmra.mxu0 %v609
    %v2618 = vpop.f32.mrf.mxu0
    %v2619 = vadd.f32 %v278, %v2618
    %v2620 = vpop.f32.mrf.mxu0
    %v2621 = vadd.f32 %v278, %v2620
    %2622 = vmatmul.bf16.gmra.mxu0 %v614
    %v2623 = vpop.f32.mrf.mxu0
    %v2624 = vadd.f32 %v278, %v2623
    %v2625 = vpop.f32.mrf.mxu0
    %v2626 = vadd.f32 %v278, %v2625
    %2627 = vmatmul.bf16.gmra.mxu0 %v619
    %v2628 = vpop.f32.mrf.mxu0
    %v2629 = vadd.f32 %v278, %v2628
    %v2630 = vpop.f32.mrf.mxu0
    %v2631 = vadd.f32 %v278, %v2630
    %2632 = vmatmul.bf16.gmra.mxu0 %v624
    %v2633 = vpop.f32.mrf.mxu0
    %v2634 = vadd.f32 %v278, %v2633
    %v2635 = vpop.f32.mrf.mxu0
    %v2636 = vadd.f32 %v278, %v2635
    %2637 = vmatmul.bf16.gmra.mxu0 %v629
    %v2638 = vpop.f32.mrf.mxu0
    %v2639 = vadd.f32 %v278, %v2638
    %v2640 = vpop.f32.mrf.mxu0
    %v2641 = vadd.f32 %v278, %v2640
    %2642 = vmatmul.bf16.gmra.mxu0 %v634
    %v2643 = vpop.f32.mrf.mxu0
    %v2644 = vadd.f32 %v278, %v2643
    %v2645 = vpop.f32.mrf.mxu0
    %v2646 = vadd.f32 %v278, %v2645
    %2647 = vmatmul.bf16.gmra.mxu0 %v639
    %v2648 = vpop.f32.mrf.mxu0
    %v2649 = vadd.f32 %v278, %v2648
    %v2650 = vpop.f32.mrf.mxu0
    %v2651 = vadd.f32 %v278, %v2650
    %2652 = vmatmul.bf16.gmra.mxu0 %v644
    %v2653 = vpop.f32.mrf.mxu0
    %v2654 = vadd.f32 %v278, %v2653
    %v2655 = vpop.f32.mrf.mxu0
    %v2656 = vadd.f32 %v278, %v2655
    %2657 = vmatmul.bf16.gmra.mxu0 %v649
    %v2658 = vpop.f32.mrf.mxu0
    %v2659 = vadd.f32 %v278, %v2658
    %v2660 = vpop.f32.mrf.mxu0
    %v2661 = vadd.f32 %v278, %v2660
    %2662 = vmatmul.bf16.gmra.mxu0 %v654
    %v2663 = vpop.f32.mrf.mxu0
    %v2664 = vadd.f32 %v278, %v2663
    %v2665 = vpop.f32.mrf.mxu0
    %v2666 = vadd.f32 %v278, %v2665
    %2667 = vmatmul.bf16.gmra.mxu0 %v659
    %v2668 = vpop.f32.mrf.mxu0
    %v2669 = vadd.f32 %v278, %v2668
    %v2670 = vpop.f32.mrf.mxu0
    %v2671 = vadd.f32 %v278, %v2670
    %2672 = vmatmul.bf16.gmra.mxu0 %v664
    %v2673 = vpop.f32.mrf.mxu0
    %v2674 = vadd.f32 %v278, %v2673
    %v2675 = vpop.f32.mrf.mxu0
    %v2676 = vadd.f32 %v278, %v2675
    %2677 = vmatmul.bf16.gmra.mxu0 %v669
    %v2678 = vpop.f32.mrf.mxu0
    %v2679 = vadd.f32 %v278, %v2678
    %v2680 = vpop.f32.mrf.mxu0
    %v2681 = vadd.f32 %v278, %v2680
    %2682 = vmatmul.bf16.gmra.mxu0 %v674
    %v2683 = vpop.f32.mrf.mxu0
    %v2684 = vadd.f32 %v278, %v2683
    %v2685 = vpop.f32.mrf.mxu0
    %v2686 = vadd.f32 %v278, %v2685
    %2687 = vmatmul.bf16.gmra.mxu0 %v679
    %v2688 = vpop.f32.mrf.mxu0
    %v2689 = vadd.f32 %v278, %v2688
    %v2690 = vpop.f32.mrf.mxu0
    %v2691 = vadd.f32 %v278, %v2690
    %2692 = vmatmul.bf16.gmra.mxu0 %v684
    %v2693 = vpop.f32.mrf.mxu0
    %v2694 = vadd.f32 %v278, %v2693
    %v2695 = vpop.f32.mrf.mxu0
    %v2696 = vadd.f32 %v278, %v2695
    %2697 = vmatmul.bf16.gmra.mxu0 %v689
    %v2698 = vpop.f32.mrf.mxu0
    %v2699 = vadd.f32 %v278, %v2698
    %v2700 = vpop.f32.mrf.mxu0
    %v2701 = vadd.f32 %v278, %v2700
    %2702 = vmatmul.bf16.gmra.mxu0 %v694
    %v2703 = vpop.f32.mrf.mxu0
    %v2704 = vadd.f32 %v278, %v2703
    %v2705 = vpop.f32.mrf.mxu0
    %v2706 = vadd.f32 %v278, %v2705
    %2707 = vmatmul.bf16.gmra.mxu0 %v699
    %v2708 = vpop.f32.mrf.mxu0
    %v2709 = vadd.f32 %v278, %v2708
    %v2710 = vpop.f32.mrf.mxu0
    %v2711 = vadd.f32 %v278, %v2710
    %2712 = vdwg.mxu0
    %2713 = vmatpush.bf16.msra.mxu0 %v1242
    %2714 = vmatpush.bf16.msra.mxu0 %v1238
    %2715 = vmatpush.bf16.msra.mxu0 %v1234
    %2716 = vmatpush.bf16.msra.mxu0 %v1230
    %2717 = vmatpush.bf16.msra.mxu0 %v1226
    %2718 = vmatpush.bf16.msra.mxu0 %v1222
    %2719 = vmatpush.bf16.msra.mxu0 %v1218
    %2720 = vmatpush.bf16.msra.mxu0 %v1214
    %2721 = vmatmul.bf16.gmra.mxu0 %v605
    %v2722 = vpop.f32.mrf.mxu0
    %v2723 = vadd.f32 %v2614, %v2722
    %v2724 = vpop.f32.mrf.mxu0
    %v2725 = vadd.f32 %v2616, %v2724
    %2726 = vmatmul.bf16.gmra.mxu0 %v610
    %v2727 = vpop.f32.mrf.mxu0
    %v2728 = vadd.f32 %v2619, %v2727
    %v2729 = vpop.f32.mrf.mxu0
    %v2730 = vadd.f32 %v2621, %v2729
    %2731 = vmatmul.bf16.gmra.mxu0 %v615
    %v2732 = vpop.f32.mrf.mxu0
    %v2733 = vadd.f32 %v2624, %v2732
    %v2734 = vpop.f32.mrf.mxu0
    %v2735 = vadd.f32 %v2626, %v2734
    %2736 = vmatmul.bf16.gmra.mxu0 %v620
    %v2737 = vpop.f32.mrf.mxu0
    %v2738 = vadd.f32 %v2629, %v2737
    %v2739 = vpop.f32.mrf.mxu0
    %v2740 = vadd.f32 %v2631, %v2739
    %2741 = vmatmul.bf16.gmra.mxu0 %v625
    %v2742 = vpop.f32.mrf.mxu0
    %v2743 = vadd.f32 %v2634, %v2742
    %v2744 = vpop.f32.mrf.mxu0
    %v2745 = vadd.f32 %v2636, %v2744
    %2746 = vmatmul.bf16.gmra.mxu0 %v630
    %v2747 = vpop.f32.mrf.mxu0
    %v2748 = vadd.f32 %v2639, %v2747
    %v2749 = vpop.f32.mrf.mxu0
    %v2750 = vadd.f32 %v2641, %v2749
    %2751 = vmatmul.bf16.gmra.mxu0 %v635
    %v2752 = vpop.f32.mrf.mxu0
    %v2753 = vadd.f32 %v2644, %v2752
    %v2754 = vpop.f32.mrf.mxu0
    %v2755 = vadd.f32 %v2646, %v2754
    %2756 = vmatmul.bf16.gmra.mxu0 %v640
    %v2757 = vpop.f32.mrf.mxu0
    %v2758 = vadd.f32 %v2649, %v2757
    %v2759 = vpop.f32.mrf.mxu0
    %v2760 = vadd.f32 %v2651, %v2759
    %2761 = vmatmul.bf16.gmra.mxu0 %v645
    %v2762 = vpop.f32.mrf.mxu0
    %v2763 = vadd.f32 %v2654, %v2762
    %v2764 = vpop.f32.mrf.mxu0
    %v2765 = vadd.f32 %v2656, %v2764
    %2766 = vmatmul.bf16.gmra.mxu0 %v650
    %v2767 = vpop.f32.mrf.mxu0
    %v2768 = vadd.f32 %v2659, %v2767
    %v2769 = vpop.f32.mrf.mxu0
    %v2770 = vadd.f32 %v2661, %v2769
    %2771 = vmatmul.bf16.gmra.mxu0 %v655
    %v2772 = vpop.f32.mrf.mxu0
    %v2773 = vadd.f32 %v2664, %v2772
    %v2774 = vpop.f32.mrf.mxu0
    %v2775 = vadd.f32 %v2666, %v2774
    %2776 = vmatmul.bf16.gmra.mxu0 %v660
    %v2777 = vpop.f32.mrf.mxu0
    %v2778 = vadd.f32 %v2669, %v2777
    %v2779 = vpop.f32.mrf.mxu0
    %v2780 = vadd.f32 %v2671, %v2779
    %2781 = vmatmul.bf16.gmra.mxu0 %v665
    %v2782 = vpop.f32.mrf.mxu0
    %v2783 = vadd.f32 %v2674, %v2782
    %v2784 = vpop.f32.mrf.mxu0
    %v2785 = vadd.f32 %v2676, %v2784
    %2786 = vmatmul.bf16.gmra.mxu0 %v670
    %v2787 = vpop.f32.mrf.mxu0
    %v2788 = vadd.f32 %v2679, %v2787
    %v2789 = vpop.f32.mrf.mxu0
    %v2790 = vadd.f32 %v2681, %v2789
    %2791 = vmatmul.bf16.gmra.mxu0 %v675
    %v2792 = vpop.f32.mrf.mxu0
    %v2793 = vadd.f32 %v2684, %v2792
    %v2794 = vpop.f32.mrf.mxu0
    %v2795 = vadd.f32 %v2686, %v2794
    %2796 = vmatmul.bf16.gmra.mxu0 %v680
    %v2797 = vpop.f32.mrf.mxu0
    %v2798 = vadd.f32 %v2689, %v2797
    %v2799 = vpop.f32.mrf.mxu0
    %v2800 = vadd.f32 %v2691, %v2799
    %2801 = vmatmul.bf16.gmra.mxu0 %v685
    %v2802 = vpop.f32.mrf.mxu0
    %v2803 = vadd.f32 %v2694, %v2802
    %v2804 = vpop.f32.mrf.mxu0
    %v2805 = vadd.f32 %v2696, %v2804
    %2806 = vmatmul.bf16.gmra.mxu0 %v690
    %v2807 = vpop.f32.mrf.mxu0
    %v2808 = vadd.f32 %v2699, %v2807
    %v2809 = vpop.f32.mrf.mxu0
    %v2810 = vadd.f32 %v2701, %v2809
    %2811 = vmatmul.bf16.gmra.mxu0 %v695
    %v2812 = vpop.f32.mrf.mxu0
    %v2813 = vadd.f32 %v2704, %v2812
    %v2814 = vpop.f32.mrf.mxu0
    %v2815 = vadd.f32 %v2706, %v2814
    %2816 = vmatmul.bf16.gmra.mxu0 %v700
    %v2817 = vpop.f32.mrf.mxu0
    %v2818 = vadd.f32 %v2709, %v2817
    %v2819 = vpop.f32.mrf.mxu0
    %v2820 = vadd.f32 %v2711, %v2819
    %2821 = vdwg.mxu0
    %2822 = vmatpush.bf16.msra.mxu0 %v1274
    %2823 = vmatpush.bf16.msra.mxu0 %v1270
    %2824 = vmatpush.bf16.msra.mxu0 %v1266
    %2825 = vmatpush.bf16.msra.mxu0 %v1262
    %2826 = vmatpush.bf16.msra.mxu0 %v1258
    %2827 = vmatpush.bf16.msra.mxu0 %v1254
    %2828 = vmatpush.bf16.msra.mxu0 %v1250
    %2829 = vmatpush.bf16.msra.mxu0 %v1246
    %2830 = vmatmul.bf16.gmra.mxu0 %v606
    %v2831 = vpop.f32.mrf.mxu0
    %v2832 = vadd.f32 %v2723, %v2831
    %v2833 = vpop.f32.mrf.mxu0
    %v2834 = vadd.f32 %v2725, %v2833
    %2835 = vmatmul.bf16.gmra.mxu0 %v611
    %v2836 = vpop.f32.mrf.mxu0
    %v2837 = vadd.f32 %v2728, %v2836
    %v2838 = vpop.f32.mrf.mxu0
    %v2839 = vadd.f32 %v2730, %v2838
    %2840 = vmatmul.bf16.gmra.mxu0 %v616
    %v2841 = vpop.f32.mrf.mxu0
    %v2842 = vadd.f32 %v2733, %v2841
    %v2843 = vpop.f32.mrf.mxu0
    %v2844 = vadd.f32 %v2735, %v2843
    %2845 = vmatmul.bf16.gmra.mxu0 %v621
    %v2846 = vpop.f32.mrf.mxu0
    %v2847 = vadd.f32 %v2738, %v2846
    %v2848 = vpop.f32.mrf.mxu0
    %v2849 = vadd.f32 %v2740, %v2848
    %2850 = vmatmul.bf16.gmra.mxu0 %v626
    %v2851 = vpop.f32.mrf.mxu0
    %v2852 = vadd.f32 %v2743, %v2851
    %v2853 = vpop.f32.mrf.mxu0
    %v2854 = vadd.f32 %v2745, %v2853
    %2855 = vmatmul.bf16.gmra.mxu0 %v631
    %v2856 = vpop.f32.mrf.mxu0
    %v2857 = vadd.f32 %v2748, %v2856
    %v2858 = vpop.f32.mrf.mxu0
    %v2859 = vadd.f32 %v2750, %v2858
    %2860 = vmatmul.bf16.gmra.mxu0 %v636
    %v2861 = vpop.f32.mrf.mxu0
    %v2862 = vadd.f32 %v2753, %v2861
    %v2863 = vpop.f32.mrf.mxu0
    %v2864 = vadd.f32 %v2755, %v2863
    %2865 = vmatmul.bf16.gmra.mxu0 %v641
    %v2866 = vpop.f32.mrf.mxu0
    %v2867 = vadd.f32 %v2758, %v2866
    %v2868 = vpop.f32.mrf.mxu0
    %v2869 = vadd.f32 %v2760, %v2868
    %2870 = vmatmul.bf16.gmra.mxu0 %v646
    %v2871 = vpop.f32.mrf.mxu0
    %v2872 = vadd.f32 %v2763, %v2871
    %v2873 = vpop.f32.mrf.mxu0
    %v2874 = vadd.f32 %v2765, %v2873
    %2875 = vmatmul.bf16.gmra.mxu0 %v651
    %v2876 = vpop.f32.mrf.mxu0
    %v2877 = vadd.f32 %v2768, %v2876
    %v2878 = vpop.f32.mrf.mxu0
    %v2879 = vadd.f32 %v2770, %v2878
    %2880 = vmatmul.bf16.gmra.mxu0 %v656
    %v2881 = vpop.f32.mrf.mxu0
    %v2882 = vadd.f32 %v2773, %v2881
    %v2883 = vpop.f32.mrf.mxu0
    %v2884 = vadd.f32 %v2775, %v2883
    %2885 = vmatmul.bf16.gmra.mxu0 %v661
    %v2886 = vpop.f32.mrf.mxu0
    %v2887 = vadd.f32 %v2778, %v2886
    %v2888 = vpop.f32.mrf.mxu0
    %v2889 = vadd.f32 %v2780, %v2888
    %2890 = vmatmul.bf16.gmra.mxu0 %v666
    %v2891 = vpop.f32.mrf.mxu0
    %v2892 = vadd.f32 %v2783, %v2891
    %v2893 = vpop.f32.mrf.mxu0
    %v2894 = vadd.f32 %v2785, %v2893
    %2895 = vmatmul.bf16.gmra.mxu0 %v671
    %v2896 = vpop.f32.mrf.mxu0
    %v2897 = vadd.f32 %v2788, %v2896
    %v2898 = vpop.f32.mrf.mxu0
    %v2899 = vadd.f32 %v2790, %v2898
    %2900 = vmatmul.bf16.gmra.mxu0 %v676
    %v2901 = vpop.f32.mrf.mxu0
    %v2902 = vadd.f32 %v2793, %v2901
    %v2903 = vpop.f32.mrf.mxu0
    %v2904 = vadd.f32 %v2795, %v2903
    %2905 = vmatmul.bf16.gmra.mxu0 %v681
    %v2906 = vpop.f32.mrf.mxu0
    %v2907 = vadd.f32 %v2798, %v2906
    %v2908 = vpop.f32.mrf.mxu0
    %v2909 = vadd.f32 %v2800, %v2908
    %2910 = vmatmul.bf16.gmra.mxu0 %v686
    %v2911 = vpop.f32.mrf.mxu0
    %v2912 = vadd.f32 %v2803, %v2911
    %v2913 = vpop.f32.mrf.mxu0
    %v2914 = vadd.f32 %v2805, %v2913
    %2915 = vmatmul.bf16.gmra.mxu0 %v691
    %v2916 = vpop.f32.mrf.mxu0
    %v2917 = vadd.f32 %v2808, %v2916
    %v2918 = vpop.f32.mrf.mxu0
    %v2919 = vadd.f32 %v2810, %v2918
    %2920 = vmatmul.bf16.gmra.mxu0 %v696
    %v2921 = vpop.f32.mrf.mxu0
    %v2922 = vadd.f32 %v2813, %v2921
    %v2923 = vpop.f32.mrf.mxu0
    %v2924 = vadd.f32 %v2815, %v2923
    %2925 = vmatmul.bf16.gmra.mxu0 %v701
    %v2926 = vpop.f32.mrf.mxu0
    %v2927 = vadd.f32 %v2818, %v2926
    %v2928 = vpop.f32.mrf.mxu0
    %v2929 = vadd.f32 %v2820, %v2928
    %2930 = vdwg.mxu0
    %2931 = vmatpush.bf16.msra.mxu0 %v1306
    %2932 = vmatpush.bf16.msra.mxu0 %v1302
    %2933 = vmatpush.bf16.msra.mxu0 %v1298
    %2934 = vmatpush.bf16.msra.mxu0 %v1294
    %2935 = vmatpush.bf16.msra.mxu0 %v1290
    %2936 = vmatpush.bf16.msra.mxu0 %v1286
    %2937 = vmatpush.bf16.msra.mxu0 %v1282
    %2938 = vmatpush.bf16.msra.mxu0 %v1278
    %2939 = vmatmul.bf16.gmra.mxu0 %v607
    %v2940 = vpop.f32.mrf.mxu0
    %v2941 = vadd.f32 %v2832, %v2940
    %v2942 = vpop.f32.mrf.mxu0
    %v2943 = vadd.f32 %v2834, %v2942
    %2944 = vmatmul.bf16.gmra.mxu0 %v612
    %v2945 = vpop.f32.mrf.mxu0
    %v2946 = vadd.f32 %v2837, %v2945
    %v2947 = vpop.f32.mrf.mxu0
    %v2948 = vadd.f32 %v2839, %v2947
    %2949 = vmatmul.bf16.gmra.mxu0 %v617
    %v2950 = vpop.f32.mrf.mxu0
    %v2951 = vadd.f32 %v2842, %v2950
    %v2952 = vpop.f32.mrf.mxu0
    %v2953 = vadd.f32 %v2844, %v2952
    %2954 = vmatmul.bf16.gmra.mxu0 %v622
    %v2955 = vpop.f32.mrf.mxu0
    %v2956 = vadd.f32 %v2847, %v2955
    %v2957 = vpop.f32.mrf.mxu0
    %v2958 = vadd.f32 %v2849, %v2957
    %2959 = vmatmul.bf16.gmra.mxu0 %v627
    %v2960 = vpop.f32.mrf.mxu0
    %v2961 = vadd.f32 %v2852, %v2960
    %v2962 = vpop.f32.mrf.mxu0
    %v2963 = vadd.f32 %v2854, %v2962
    %2964 = vmatmul.bf16.gmra.mxu0 %v632
    %v2965 = vpop.f32.mrf.mxu0
    %v2966 = vadd.f32 %v2857, %v2965
    %v2967 = vpop.f32.mrf.mxu0
    %v2968 = vadd.f32 %v2859, %v2967
    %2969 = vmatmul.bf16.gmra.mxu0 %v637
    %v2970 = vpop.f32.mrf.mxu0
    %v2971 = vadd.f32 %v2862, %v2970
    %v2972 = vpop.f32.mrf.mxu0
    %v2973 = vadd.f32 %v2864, %v2972
    %2974 = vmatmul.bf16.gmra.mxu0 %v642
    %v2975 = vpop.f32.mrf.mxu0
    %v2976 = vadd.f32 %v2867, %v2975
    %v2977 = vpop.f32.mrf.mxu0
    %v2978 = vadd.f32 %v2869, %v2977
    %2979 = vmatmul.bf16.gmra.mxu0 %v647
    %v2980 = vpop.f32.mrf.mxu0
    %v2981 = vadd.f32 %v2872, %v2980
    %v2982 = vpop.f32.mrf.mxu0
    %v2983 = vadd.f32 %v2874, %v2982
    %2984 = vmatmul.bf16.gmra.mxu0 %v652
    %v2985 = vpop.f32.mrf.mxu0
    %v2986 = vadd.f32 %v2877, %v2985
    %v2987 = vpop.f32.mrf.mxu0
    %v2988 = vadd.f32 %v2879, %v2987
    %2989 = vmatmul.bf16.gmra.mxu0 %v657
    %v2990 = vpop.f32.mrf.mxu0
    %v2991 = vadd.f32 %v2882, %v2990
    %v2992 = vpop.f32.mrf.mxu0
    %v2993 = vadd.f32 %v2884, %v2992
    %2994 = vmatmul.bf16.gmra.mxu0 %v662
    %v2995 = vpop.f32.mrf.mxu0
    %v2996 = vadd.f32 %v2887, %v2995
    %v2997 = vpop.f32.mrf.mxu0
    %v2998 = vadd.f32 %v2889, %v2997
    %2999 = vmatmul.bf16.gmra.mxu0 %v667
    %v3000 = vpop.f32.mrf.mxu0
    %v3001 = vadd.f32 %v2892, %v3000
    %v3002 = vpop.f32.mrf.mxu0
    %v3003 = vadd.f32 %v2894, %v3002
    %3004 = vmatmul.bf16.gmra.mxu0 %v672
    %v3005 = vpop.f32.mrf.mxu0
    %v3006 = vadd.f32 %v2897, %v3005
    %v3007 = vpop.f32.mrf.mxu0
    %v3008 = vadd.f32 %v2899, %v3007
    %3009 = vmatmul.bf16.gmra.mxu0 %v677
    %v3010 = vpop.f32.mrf.mxu0
    %v3011 = vadd.f32 %v2902, %v3010
    %v3012 = vpop.f32.mrf.mxu0
    %v3013 = vadd.f32 %v2904, %v3012
    %3014 = vmatmul.bf16.gmra.mxu0 %v682
    %v3015 = vpop.f32.mrf.mxu0
    %v3016 = vadd.f32 %v2907, %v3015
    %v3017 = vpop.f32.mrf.mxu0
    %v3018 = vadd.f32 %v2909, %v3017
    %3019 = vmatmul.bf16.gmra.mxu0 %v687
    %v3020 = vpop.f32.mrf.mxu0
    %v3021 = vadd.f32 %v2912, %v3020
    %v3022 = vpop.f32.mrf.mxu0
    %v3023 = vadd.f32 %v2914, %v3022
    %3024 = vmatmul.bf16.gmra.mxu0 %v692
    %v3025 = vpop.f32.mrf.mxu0
    %v3026 = vadd.f32 %v2917, %v3025
    %v3027 = vpop.f32.mrf.mxu0
    %v3028 = vadd.f32 %v2919, %v3027
    %3029 = vmatmul.bf16.gmra.mxu0 %v697
    %v3030 = vpop.f32.mrf.mxu0
    %v3031 = vadd.f32 %v2922, %v3030
    %v3032 = vpop.f32.mrf.mxu0
    %v3033 = vadd.f32 %v2924, %v3032
    %3034 = vmatmul.bf16.gmra.mxu0 %v702
    %v3035 = vpop.f32.mrf.mxu0
    %v3036 = vadd.f32 %v2927, %v3035
    %v3037 = vpop.f32.mrf.mxu0
    %v3038 = vadd.f32 %v2929, %v3037
    %3039 = vdwg.mxu0
    %3040 = vmatpush.bf16.msra.mxu0 0
    %3041 = vmatpush.bf16.msra.mxu0 0
    %3042 = vmatpush.bf16.msra.mxu0 0
    %3043 = vmatpush.bf16.msra.mxu0 0
    %3044 = vmatpush.bf16.msra.mxu0 0
    %3045 = vmatpush.bf16.msra.mxu0 0
    %3046 = vmatpush.bf16.msra.mxu0 0
    %3047 = vmatpush.bf16.msra.mxu0 %v1509
    %3048 = vmatmul.bf16.gmra.mxu0 %v1442
    %v3049 = vpop.f32.mrf.mxu0
    %v3050 = vadd.f32 %v2941, %v3049
    %v3051 = vpop.f32.mrf.mxu0
    %v3052 = vadd.f32 %v2943, %v3051
    %3053 = vmatmul.bf16.gmra.mxu0 %v1445
    %v3054 = vpop.f32.mrf.mxu0
    %v3055 = vadd.f32 %v2946, %v3054
    %v3056 = vpop.f32.mrf.mxu0
    %v3057 = vadd.f32 %v2948, %v3056
    %3058 = vmatmul.bf16.gmra.mxu0 %v1448
    %v3059 = vpop.f32.mrf.mxu0
    %v3060 = vadd.f32 %v2951, %v3059
    %v3061 = vpop.f32.mrf.mxu0
    %v3062 = vadd.f32 %v2953, %v3061
    %3063 = vmatmul.bf16.gmra.mxu0 %v1451
    %v3064 = vpop.f32.mrf.mxu0
    %v3065 = vadd.f32 %v2956, %v3064
    %v3066 = vpop.f32.mrf.mxu0
    %v3067 = vadd.f32 %v2958, %v3066
    %3068 = vmatmul.bf16.gmra.mxu0 %v1454
    %v3069 = vpop.f32.mrf.mxu0
    %v3070 = vadd.f32 %v2961, %v3069
    %v3071 = vpop.f32.mrf.mxu0
    %v3072 = vadd.f32 %v2963, %v3071
    %3073 = vmatmul.bf16.gmra.mxu0 %v1457
    %v3074 = vpop.f32.mrf.mxu0
    %v3075 = vadd.f32 %v2966, %v3074
    %v3076 = vpop.f32.mrf.mxu0
    %v3077 = vadd.f32 %v2968, %v3076
    %3078 = vmatmul.bf16.gmra.mxu0 %v1460
    %v3079 = vpop.f32.mrf.mxu0
    %v3080 = vadd.f32 %v2971, %v3079
    %v3081 = vpop.f32.mrf.mxu0
    %v3082 = vadd.f32 %v2973, %v3081
    %3083 = vmatmul.bf16.gmra.mxu0 %v1463
    %v3084 = vpop.f32.mrf.mxu0
    %v3085 = vadd.f32 %v2976, %v3084
    %v3086 = vpop.f32.mrf.mxu0
    %v3087 = vadd.f32 %v2978, %v3086
    %3088 = vmatmul.bf16.gmra.mxu0 %v1466
    %v3089 = vpop.f32.mrf.mxu0
    %v3090 = vadd.f32 %v2981, %v3089
    %v3091 = vpop.f32.mrf.mxu0
    %v3092 = vadd.f32 %v2983, %v3091
    %3093 = vmatmul.bf16.gmra.mxu0 %v1469
    %v3094 = vpop.f32.mrf.mxu0
    %v3095 = vadd.f32 %v2986, %v3094
    %v3096 = vpop.f32.mrf.mxu0
    %v3097 = vadd.f32 %v2988, %v3096
    %3098 = vmatmul.bf16.gmra.mxu0 %v1472
    %v3099 = vpop.f32.mrf.mxu0
    %v3100 = vadd.f32 %v2991, %v3099
    %v3101 = vpop.f32.mrf.mxu0
    %v3102 = vadd.f32 %v2993, %v3101
    %3103 = vmatmul.bf16.gmra.mxu0 %v1475
    %v3104 = vpop.f32.mrf.mxu0
    %v3105 = vadd.f32 %v2996, %v3104
    %v3106 = vpop.f32.mrf.mxu0
    %v3107 = vadd.f32 %v2998, %v3106
    %3108 = vmatmul.bf16.gmra.mxu0 %v1478
    %v3109 = vpop.f32.mrf.mxu0
    %v3110 = vadd.f32 %v3001, %v3109
    %v3111 = vpop.f32.mrf.mxu0
    %v3112 = vadd.f32 %v3003, %v3111
    %3113 = vmatmul.bf16.gmra.mxu0 %v1481
    %v3114 = vpop.f32.mrf.mxu0
    %v3115 = vadd.f32 %v3006, %v3114
    %v3116 = vpop.f32.mrf.mxu0
    %v3117 = vadd.f32 %v3008, %v3116
    %3118 = vmatmul.bf16.gmra.mxu0 %v1484
    %v3119 = vpop.f32.mrf.mxu0
    %v3120 = vadd.f32 %v3011, %v3119
    %v3121 = vpop.f32.mrf.mxu0
    %v3122 = vadd.f32 %v3013, %v3121
    %3123 = vmatmul.bf16.gmra.mxu0 %v1487
    %v3124 = vpop.f32.mrf.mxu0
    %v3125 = vadd.f32 %v3016, %v3124
    %v3126 = vpop.f32.mrf.mxu0
    %v3127 = vadd.f32 %v3018, %v3126
    %3128 = vmatmul.bf16.gmra.mxu0 %v1490
    %v3129 = vpop.f32.mrf.mxu0
    %v3130 = vadd.f32 %v3021, %v3129
    %v3131 = vpop.f32.mrf.mxu0
    %v3132 = vadd.f32 %v3023, %v3131
    %3133 = vmatmul.bf16.gmra.mxu0 %v1493
    %v3134 = vpop.f32.mrf.mxu0
    %v3135 = vadd.f32 %v3026, %v3134
    %v3136 = vpop.f32.mrf.mxu0
    %v3137 = vadd.f32 %v3028, %v3136
    %3138 = vmatmul.bf16.gmra.mxu0 %v1496
    %v3139 = vpop.f32.mrf.mxu0
    %v3140 = vadd.f32 %v3031, %v3139
    %v3141 = vpop.f32.mrf.mxu0
    %v3142 = vadd.f32 %v3033, %v3141
    %3143 = vmatmul.bf16.gmra.mxu0 %v1499
    %v3144 = vpop.f32.mrf.mxu0
    %v3145 = vadd.f32 %v3036, %v3144
    %v3146 = vpop.f32.mrf.mxu0
    %v3147 = vadd.f32 %v3038, %v3146
    %3148 = vdwg.mxu0
    %3149 = vmatpush.bf16.msra.mxu0 %v1211
    %3150 = vmatpush.bf16.msra.mxu0 %v1207
    %3151 = vmatpush.bf16.msra.mxu0 %v1203
    %3152 = vmatpush.bf16.msra.mxu0 %v1199
    %3153 = vmatpush.bf16.msra.mxu0 %v1195
    %3154 = vmatpush.bf16.msra.mxu0 %v1191
    %3155 = vmatpush.bf16.msra.mxu0 %v1187
    %3156 = vmatpush.bf16.msra.mxu0 %v1183
    %3157 = vmatmul.bf16.gmra.mxu0 %v604
    %v3158 = vpop.f32.mrf.mxu0
    %v3159 = vadd.f32 %v279, %v3158
    %v3160 = vpop.f32.mrf.mxu0
    %v3161 = vadd.f32 %v279, %v3160
    %3162 = vmatmul.bf16.gmra.mxu0 %v609
    %v3163 = vpop.f32.mrf.mxu0
    %v3164 = vadd.f32 %v279, %v3163
    %v3165 = vpop.f32.mrf.mxu0
    %v3166 = vadd.f32 %v279, %v3165
    %3167 = vmatmul.bf16.gmra.mxu0 %v614
    %v3168 = vpop.f32.mrf.mxu0
    %v3169 = vadd.f32 %v279, %v3168
    %v3170 = vpop.f32.mrf.mxu0
    %v3171 = vadd.f32 %v279, %v3170
    %3172 = vmatmul.bf16.gmra.mxu0 %v619
    %v3173 = vpop.f32.mrf.mxu0
    %v3174 = vadd.f32 %v279, %v3173
    %v3175 = vpop.f32.mrf.mxu0
    %v3176 = vadd.f32 %v279, %v3175
    %3177 = vmatmul.bf16.gmra.mxu0 %v624
    %v3178 = vpop.f32.mrf.mxu0
    %v3179 = vadd.f32 %v279, %v3178
    %v3180 = vpop.f32.mrf.mxu0
    %v3181 = vadd.f32 %v279, %v3180
    %3182 = vmatmul.bf16.gmra.mxu0 %v629
    %v3183 = vpop.f32.mrf.mxu0
    %v3184 = vadd.f32 %v279, %v3183
    %v3185 = vpop.f32.mrf.mxu0
    %v3186 = vadd.f32 %v279, %v3185
    %3187 = vmatmul.bf16.gmra.mxu0 %v634
    %v3188 = vpop.f32.mrf.mxu0
    %v3189 = vadd.f32 %v279, %v3188
    %v3190 = vpop.f32.mrf.mxu0
    %v3191 = vadd.f32 %v279, %v3190
    %3192 = vmatmul.bf16.gmra.mxu0 %v639
    %v3193 = vpop.f32.mrf.mxu0
    %v3194 = vadd.f32 %v279, %v3193
    %v3195 = vpop.f32.mrf.mxu0
    %v3196 = vadd.f32 %v279, %v3195
    %3197 = vmatmul.bf16.gmra.mxu0 %v644
    %v3198 = vpop.f32.mrf.mxu0
    %v3199 = vadd.f32 %v279, %v3198
    %v3200 = vpop.f32.mrf.mxu0
    %v3201 = vadd.f32 %v279, %v3200
    %3202 = vmatmul.bf16.gmra.mxu0 %v649
    %v3203 = vpop.f32.mrf.mxu0
    %v3204 = vadd.f32 %v279, %v3203
    %v3205 = vpop.f32.mrf.mxu0
    %v3206 = vadd.f32 %v279, %v3205
    %3207 = vmatmul.bf16.gmra.mxu0 %v654
    %v3208 = vpop.f32.mrf.mxu0
    %v3209 = vadd.f32 %v279, %v3208
    %v3210 = vpop.f32.mrf.mxu0
    %v3211 = vadd.f32 %v279, %v3210
    %3212 = vmatmul.bf16.gmra.mxu0 %v659
    %v3213 = vpop.f32.mrf.mxu0
    %v3214 = vadd.f32 %v279, %v3213
    %v3215 = vpop.f32.mrf.mxu0
    %v3216 = vadd.f32 %v279, %v3215
    %3217 = vmatmul.bf16.gmra.mxu0 %v664
    %v3218 = vpop.f32.mrf.mxu0
    %v3219 = vadd.f32 %v279, %v3218
    %v3220 = vpop.f32.mrf.mxu0
    %v3221 = vadd.f32 %v279, %v3220
    %3222 = vmatmul.bf16.gmra.mxu0 %v669
    %v3223 = vpop.f32.mrf.mxu0
    %v3224 = vadd.f32 %v279, %v3223
    %v3225 = vpop.f32.mrf.mxu0
    %v3226 = vadd.f32 %v279, %v3225
    %3227 = vmatmul.bf16.gmra.mxu0 %v674
    %v3228 = vpop.f32.mrf.mxu0
    %v3229 = vadd.f32 %v279, %v3228
    %v3230 = vpop.f32.mrf.mxu0
    %v3231 = vadd.f32 %v279, %v3230
    %3232 = vmatmul.bf16.gmra.mxu0 %v679
    %v3233 = vpop.f32.mrf.mxu0
    %v3234 = vadd.f32 %v279, %v3233
    %v3235 = vpop.f32.mrf.mxu0
    %v3236 = vadd.f32 %v279, %v3235
    %3237 = vmatmul.bf16.gmra.mxu0 %v684
    %v3238 = vpop.f32.mrf.mxu0
    %v3239 = vadd.f32 %v279, %v3238
    %v3240 = vpop.f32.mrf.mxu0
    %v3241 = vadd.f32 %v279, %v3240
    %3242 = vmatmul.bf16.gmra.mxu0 %v689
    %v3243 = vpop.f32.mrf.mxu0
    %v3244 = vadd.f32 %v279, %v3243
    %v3245 = vpop.f32.mrf.mxu0
    %v3246 = vadd.f32 %v279, %v3245
    %3247 = vmatmul.bf16.gmra.mxu0 %v694
    %v3248 = vpop.f32.mrf.mxu0
    %v3249 = vadd.f32 %v279, %v3248
    %v3250 = vpop.f32.mrf.mxu0
    %v3251 = vadd.f32 %v279, %v3250
    %3252 = vmatmul.bf16.gmra.mxu0 %v699
    %v3253 = vpop.f32.mrf.mxu0
    %v3254 = vadd.f32 %v279, %v3253
    %v3255 = vpop.f32.mrf.mxu0
    %v3256 = vadd.f32 %v279, %v3255
    %3257 = vdwg.mxu0
    %3258 = vmatpush.bf16.msra.mxu0 %v1243
    %3259 = vmatpush.bf16.msra.mxu0 %v1239
    %3260 = vmatpush.bf16.msra.mxu0 %v1235
    %3261 = vmatpush.bf16.msra.mxu0 %v1231
    %3262 = vmatpush.bf16.msra.mxu0 %v1227
    %3263 = vmatpush.bf16.msra.mxu0 %v1223
    %3264 = vmatpush.bf16.msra.mxu0 %v1219
    %3265 = vmatpush.bf16.msra.mxu0 %v1215
    %3266 = vmatmul.bf16.gmra.mxu0 %v605
    %v3267 = vpop.f32.mrf.mxu0
    %v3268 = vadd.f32 %v3159, %v3267
    %v3269 = vpop.f32.mrf.mxu0
    %v3270 = vadd.f32 %v3161, %v3269
    %3271 = vmatmul.bf16.gmra.mxu0 %v610
    %v3272 = vpop.f32.mrf.mxu0
    %v3273 = vadd.f32 %v3164, %v3272
    %v3274 = vpop.f32.mrf.mxu0
    %v3275 = vadd.f32 %v3166, %v3274
    %3276 = vmatmul.bf16.gmra.mxu0 %v615
    %v3277 = vpop.f32.mrf.mxu0
    %v3278 = vadd.f32 %v3169, %v3277
    %v3279 = vpop.f32.mrf.mxu0
    %v3280 = vadd.f32 %v3171, %v3279
    %3281 = vmatmul.bf16.gmra.mxu0 %v620
    %v3282 = vpop.f32.mrf.mxu0
    %v3283 = vadd.f32 %v3174, %v3282
    %v3284 = vpop.f32.mrf.mxu0
    %v3285 = vadd.f32 %v3176, %v3284
    %3286 = vmatmul.bf16.gmra.mxu0 %v625
    %v3287 = vpop.f32.mrf.mxu0
    %v3288 = vadd.f32 %v3179, %v3287
    %v3289 = vpop.f32.mrf.mxu0
    %v3290 = vadd.f32 %v3181, %v3289
    %3291 = vmatmul.bf16.gmra.mxu0 %v630
    %v3292 = vpop.f32.mrf.mxu0
    %v3293 = vadd.f32 %v3184, %v3292
    %v3294 = vpop.f32.mrf.mxu0
    %v3295 = vadd.f32 %v3186, %v3294
    %3296 = vmatmul.bf16.gmra.mxu0 %v635
    %v3297 = vpop.f32.mrf.mxu0
    %v3298 = vadd.f32 %v3189, %v3297
    %v3299 = vpop.f32.mrf.mxu0
    %v3300 = vadd.f32 %v3191, %v3299
    %3301 = vmatmul.bf16.gmra.mxu0 %v640
    %v3302 = vpop.f32.mrf.mxu0
    %v3303 = vadd.f32 %v3194, %v3302
    %v3304 = vpop.f32.mrf.mxu0
    %v3305 = vadd.f32 %v3196, %v3304
    %3306 = vmatmul.bf16.gmra.mxu0 %v645
    %v3307 = vpop.f32.mrf.mxu0
    %v3308 = vadd.f32 %v3199, %v3307
    %v3309 = vpop.f32.mrf.mxu0
    %v3310 = vadd.f32 %v3201, %v3309
    %3311 = vmatmul.bf16.gmra.mxu0 %v650
    %v3312 = vpop.f32.mrf.mxu0
    %v3313 = vadd.f32 %v3204, %v3312
    %v3314 = vpop.f32.mrf.mxu0
    %v3315 = vadd.f32 %v3206, %v3314
    %3316 = vmatmul.bf16.gmra.mxu0 %v655
    %v3317 = vpop.f32.mrf.mxu0
    %v3318 = vadd.f32 %v3209, %v3317
    %v3319 = vpop.f32.mrf.mxu0
    %v3320 = vadd.f32 %v3211, %v3319
    %3321 = vmatmul.bf16.gmra.mxu0 %v660
    %v3322 = vpop.f32.mrf.mxu0
    %v3323 = vadd.f32 %v3214, %v3322
    %v3324 = vpop.f32.mrf.mxu0
    %v3325 = vadd.f32 %v3216, %v3324
    %3326 = vmatmul.bf16.gmra.mxu0 %v665
    %v3327 = vpop.f32.mrf.mxu0
    %v3328 = vadd.f32 %v3219, %v3327
    %v3329 = vpop.f32.mrf.mxu0
    %v3330 = vadd.f32 %v3221, %v3329
    %3331 = vmatmul.bf16.gmra.mxu0 %v670
    %v3332 = vpop.f32.mrf.mxu0
    %v3333 = vadd.f32 %v3224, %v3332
    %v3334 = vpop.f32.mrf.mxu0
    %v3335 = vadd.f32 %v3226, %v3334
    %3336 = vmatmul.bf16.gmra.mxu0 %v675
    %v3337 = vpop.f32.mrf.mxu0
    %v3338 = vadd.f32 %v3229, %v3337
    %v3339 = vpop.f32.mrf.mxu0
    %v3340 = vadd.f32 %v3231, %v3339
    %3341 = vmatmul.bf16.gmra.mxu0 %v680
    %v3342 = vpop.f32.mrf.mxu0
    %v3343 = vadd.f32 %v3234, %v3342
    %v3344 = vpop.f32.mrf.mxu0
    %v3345 = vadd.f32 %v3236, %v3344
    %3346 = vmatmul.bf16.gmra.mxu0 %v685
    %v3347 = vpop.f32.mrf.mxu0
    %v3348 = vadd.f32 %v3239, %v3347
    %v3349 = vpop.f32.mrf.mxu0
    %v3350 = vadd.f32 %v3241, %v3349
    %3351 = vmatmul.bf16.gmra.mxu0 %v690
    %v3352 = vpop.f32.mrf.mxu0
    %v3353 = vadd.f32 %v3244, %v3352
    %v3354 = vpop.f32.mrf.mxu0
    %v3355 = vadd.f32 %v3246, %v3354
    %3356 = vmatmul.bf16.gmra.mxu0 %v695
    %v3357 = vpop.f32.mrf.mxu0
    %v3358 = vadd.f32 %v3249, %v3357
    %v3359 = vpop.f32.mrf.mxu0
    %v3360 = vadd.f32 %v3251, %v3359
    %3361 = vmatmul.bf16.gmra.mxu0 %v700
    %v3362 = vpop.f32.mrf.mxu0
    %v3363 = vadd.f32 %v3254, %v3362
    %v3364 = vpop.f32.mrf.mxu0
    %v3365 = vadd.f32 %v3256, %v3364
    %3366 = vdwg.mxu0
    %3367 = vmatpush.bf16.msra.mxu0 %v1275
    %3368 = vmatpush.bf16.msra.mxu0 %v1271
    %3369 = vmatpush.bf16.msra.mxu0 %v1267
    %3370 = vmatpush.bf16.msra.mxu0 %v1263
    %3371 = vmatpush.bf16.msra.mxu0 %v1259
    %3372 = vmatpush.bf16.msra.mxu0 %v1255
    %3373 = vmatpush.bf16.msra.mxu0 %v1251
    %3374 = vmatpush.bf16.msra.mxu0 %v1247
    %3375 = vmatmul.bf16.gmra.mxu0 %v606
    %v3376 = vpop.f32.mrf.mxu0
    %v3377 = vadd.f32 %v3268, %v3376
    %v3378 = vpop.f32.mrf.mxu0
    %v3379 = vadd.f32 %v3270, %v3378
    %3380 = vmatmul.bf16.gmra.mxu0 %v611
    %v3381 = vpop.f32.mrf.mxu0
    %v3382 = vadd.f32 %v3273, %v3381
    %v3383 = vpop.f32.mrf.mxu0
    %v3384 = vadd.f32 %v3275, %v3383
    %3385 = vmatmul.bf16.gmra.mxu0 %v616
    %v3386 = vpop.f32.mrf.mxu0
    %v3387 = vadd.f32 %v3278, %v3386
    %v3388 = vpop.f32.mrf.mxu0
    %v3389 = vadd.f32 %v3280, %v3388
    %3390 = vmatmul.bf16.gmra.mxu0 %v621
    %v3391 = vpop.f32.mrf.mxu0
    %v3392 = vadd.f32 %v3283, %v3391
    %v3393 = vpop.f32.mrf.mxu0
    %v3394 = vadd.f32 %v3285, %v3393
    %3395 = vmatmul.bf16.gmra.mxu0 %v626
    %v3396 = vpop.f32.mrf.mxu0
    %v3397 = vadd.f32 %v3288, %v3396
    %v3398 = vpop.f32.mrf.mxu0
    %v3399 = vadd.f32 %v3290, %v3398
    %3400 = vmatmul.bf16.gmra.mxu0 %v631
    %v3401 = vpop.f32.mrf.mxu0
    %v3402 = vadd.f32 %v3293, %v3401
    %v3403 = vpop.f32.mrf.mxu0
    %v3404 = vadd.f32 %v3295, %v3403
    %3405 = vmatmul.bf16.gmra.mxu0 %v636
    %v3406 = vpop.f32.mrf.mxu0
    %v3407 = vadd.f32 %v3298, %v3406
    %v3408 = vpop.f32.mrf.mxu0
    %v3409 = vadd.f32 %v3300, %v3408
    %3410 = vmatmul.bf16.gmra.mxu0 %v641
    %v3411 = vpop.f32.mrf.mxu0
    %v3412 = vadd.f32 %v3303, %v3411
    %v3413 = vpop.f32.mrf.mxu0
    %v3414 = vadd.f32 %v3305, %v3413
    %3415 = vmatmul.bf16.gmra.mxu0 %v646
    %v3416 = vpop.f32.mrf.mxu0
    %v3417 = vadd.f32 %v3308, %v3416
    %v3418 = vpop.f32.mrf.mxu0
    %v3419 = vadd.f32 %v3310, %v3418
    %3420 = vmatmul.bf16.gmra.mxu0 %v651
    %v3421 = vpop.f32.mrf.mxu0
    %v3422 = vadd.f32 %v3313, %v3421
    %v3423 = vpop.f32.mrf.mxu0
    %v3424 = vadd.f32 %v3315, %v3423
    %3425 = vmatmul.bf16.gmra.mxu0 %v656
    %v3426 = vpop.f32.mrf.mxu0
    %v3427 = vadd.f32 %v3318, %v3426
    %v3428 = vpop.f32.mrf.mxu0
    %v3429 = vadd.f32 %v3320, %v3428
    %3430 = vmatmul.bf16.gmra.mxu0 %v661
    %v3431 = vpop.f32.mrf.mxu0
    %v3432 = vadd.f32 %v3323, %v3431
    %v3433 = vpop.f32.mrf.mxu0
    %v3434 = vadd.f32 %v3325, %v3433
    %3435 = vmatmul.bf16.gmra.mxu0 %v666
    %v3436 = vpop.f32.mrf.mxu0
    %v3437 = vadd.f32 %v3328, %v3436
    %v3438 = vpop.f32.mrf.mxu0
    %v3439 = vadd.f32 %v3330, %v3438
    %3440 = vmatmul.bf16.gmra.mxu0 %v671
    %v3441 = vpop.f32.mrf.mxu0
    %v3442 = vadd.f32 %v3333, %v3441
    %v3443 = vpop.f32.mrf.mxu0
    %v3444 = vadd.f32 %v3335, %v3443
    %3445 = vmatmul.bf16.gmra.mxu0 %v676
    %v3446 = vpop.f32.mrf.mxu0
    %v3447 = vadd.f32 %v3338, %v3446
    %v3448 = vpop.f32.mrf.mxu0
    %v3449 = vadd.f32 %v3340, %v3448
    %3450 = vmatmul.bf16.gmra.mxu0 %v681
    %v3451 = vpop.f32.mrf.mxu0
    %v3452 = vadd.f32 %v3343, %v3451
    %v3453 = vpop.f32.mrf.mxu0
    %v3454 = vadd.f32 %v3345, %v3453
    %3455 = vmatmul.bf16.gmra.mxu0 %v686
    %v3456 = vpop.f32.mrf.mxu0
    %v3457 = vadd.f32 %v3348, %v3456
    %v3458 = vpop.f32.mrf.mxu0
    %v3459 = vadd.f32 %v3350, %v3458
    %3460 = vmatmul.bf16.gmra.mxu0 %v691
    %v3461 = vpop.f32.mrf.mxu0
    %v3462 = vadd.f32 %v3353, %v3461
    %v3463 = vpop.f32.mrf.mxu0
    %v3464 = vadd.f32 %v3355, %v3463
    %3465 = vmatmul.bf16.gmra.mxu0 %v696
    %v3466 = vpop.f32.mrf.mxu0
    %v3467 = vadd.f32 %v3358, %v3466
    %v3468 = vpop.f32.mrf.mxu0
    %v3469 = vadd.f32 %v3360, %v3468
    %3470 = vmatmul.bf16.gmra.mxu0 %v701
    %v3471 = vpop.f32.mrf.mxu0
    %v3472 = vadd.f32 %v3363, %v3471
    %v3473 = vpop.f32.mrf.mxu0
    %v3474 = vadd.f32 %v3365, %v3473
    %3475 = vdwg.mxu0
    %3476 = vmatpush.bf16.msra.mxu0 %v1307
    %3477 = vmatpush.bf16.msra.mxu0 %v1303
    %3478 = vmatpush.bf16.msra.mxu0 %v1299
    %3479 = vmatpush.bf16.msra.mxu0 %v1295
    %3480 = vmatpush.bf16.msra.mxu0 %v1291
    %3481 = vmatpush.bf16.msra.mxu0 %v1287
    %3482 = vmatpush.bf16.msra.mxu0 %v1283
    %3483 = vmatpush.bf16.msra.mxu0 %v1279
    %3484 = vmatmul.bf16.gmra.mxu0 %v607
    %v3485 = vpop.f32.mrf.mxu0
    %v3486 = vadd.f32 %v3377, %v3485
    %v3487 = vpop.f32.mrf.mxu0
    %v3488 = vadd.f32 %v3379, %v3487
    %3489 = vmatmul.bf16.gmra.mxu0 %v612
    %v3490 = vpop.f32.mrf.mxu0
    %v3491 = vadd.f32 %v3382, %v3490
    %v3492 = vpop.f32.mrf.mxu0
    %v3493 = vadd.f32 %v3384, %v3492
    %3494 = vmatmul.bf16.gmra.mxu0 %v617
    %v3495 = vpop.f32.mrf.mxu0
    %v3496 = vadd.f32 %v3387, %v3495
    %v3497 = vpop.f32.mrf.mxu0
    %v3498 = vadd.f32 %v3389, %v3497
    %3499 = vmatmul.bf16.gmra.mxu0 %v622
    %v3500 = vpop.f32.mrf.mxu0
    %v3501 = vadd.f32 %v3392, %v3500
    %v3502 = vpop.f32.mrf.mxu0
    %v3503 = vadd.f32 %v3394, %v3502
    %3504 = vmatmul.bf16.gmra.mxu0 %v627
    %v3505 = vpop.f32.mrf.mxu0
    %v3506 = vadd.f32 %v3397, %v3505
    %v3507 = vpop.f32.mrf.mxu0
    %v3508 = vadd.f32 %v3399, %v3507
    %3509 = vmatmul.bf16.gmra.mxu0 %v632
    %v3510 = vpop.f32.mrf.mxu0
    %v3511 = vadd.f32 %v3402, %v3510
    %v3512 = vpop.f32.mrf.mxu0
    %v3513 = vadd.f32 %v3404, %v3512
    %3514 = vmatmul.bf16.gmra.mxu0 %v637
    %v3515 = vpop.f32.mrf.mxu0
    %v3516 = vadd.f32 %v3407, %v3515
    %v3517 = vpop.f32.mrf.mxu0
    %v3518 = vadd.f32 %v3409, %v3517
    %3519 = vmatmul.bf16.gmra.mxu0 %v642
    %v3520 = vpop.f32.mrf.mxu0
    %v3521 = vadd.f32 %v3412, %v3520
    %v3522 = vpop.f32.mrf.mxu0
    %v3523 = vadd.f32 %v3414, %v3522
    %3524 = vmatmul.bf16.gmra.mxu0 %v647
    %v3525 = vpop.f32.mrf.mxu0
    %v3526 = vadd.f32 %v3417, %v3525
    %v3527 = vpop.f32.mrf.mxu0
    %v3528 = vadd.f32 %v3419, %v3527
    %3529 = vmatmul.bf16.gmra.mxu0 %v652
    %v3530 = vpop.f32.mrf.mxu0
    %v3531 = vadd.f32 %v3422, %v3530
    %v3532 = vpop.f32.mrf.mxu0
    %v3533 = vadd.f32 %v3424, %v3532
    %3534 = vmatmul.bf16.gmra.mxu0 %v657
    %v3535 = vpop.f32.mrf.mxu0
    %v3536 = vadd.f32 %v3427, %v3535
    %v3537 = vpop.f32.mrf.mxu0
    %v3538 = vadd.f32 %v3429, %v3537
    %3539 = vmatmul.bf16.gmra.mxu0 %v662
    %v3540 = vpop.f32.mrf.mxu0
    %v3541 = vadd.f32 %v3432, %v3540
    %v3542 = vpop.f32.mrf.mxu0
    %v3543 = vadd.f32 %v3434, %v3542
    %3544 = vmatmul.bf16.gmra.mxu0 %v667
    %v3545 = vpop.f32.mrf.mxu0
    %v3546 = vadd.f32 %v3437, %v3545
    %v3547 = vpop.f32.mrf.mxu0
    %v3548 = vadd.f32 %v3439, %v3547
    %3549 = vmatmul.bf16.gmra.mxu0 %v672
    %v3550 = vpop.f32.mrf.mxu0
    %v3551 = vadd.f32 %v3442, %v3550
    %v3552 = vpop.f32.mrf.mxu0
    %v3553 = vadd.f32 %v3444, %v3552
    %3554 = vmatmul.bf16.gmra.mxu0 %v677
    %v3555 = vpop.f32.mrf.mxu0
    %v3556 = vadd.f32 %v3447, %v3555
    %v3557 = vpop.f32.mrf.mxu0
    %v3558 = vadd.f32 %v3449, %v3557
    %3559 = vmatmul.bf16.gmra.mxu0 %v682
    %v3560 = vpop.f32.mrf.mxu0
    %v3561 = vadd.f32 %v3452, %v3560
    %v3562 = vpop.f32.mrf.mxu0
    %v3563 = vadd.f32 %v3454, %v3562
    %3564 = vmatmul.bf16.gmra.mxu0 %v687
    %v3565 = vpop.f32.mrf.mxu0
    %v3566 = vadd.f32 %v3457, %v3565
    %v3567 = vpop.f32.mrf.mxu0
    %v3568 = vadd.f32 %v3459, %v3567
    %3569 = vmatmul.bf16.gmra.mxu0 %v692
    %v3570 = vpop.f32.mrf.mxu0
    %v3571 = vadd.f32 %v3462, %v3570
    %v3572 = vpop.f32.mrf.mxu0
    %v3573 = vadd.f32 %v3464, %v3572
    %3574 = vmatmul.bf16.gmra.mxu0 %v697
    %v3575 = vpop.f32.mrf.mxu0
    %v3576 = vadd.f32 %v3467, %v3575
    %v3577 = vpop.f32.mrf.mxu0
    %v3578 = vadd.f32 %v3469, %v3577
    %3579 = vmatmul.bf16.gmra.mxu0 %v702
    %v3580 = vpop.f32.mrf.mxu0
    %v3581 = vadd.f32 %v3472, %v3580
    %v3582 = vpop.f32.mrf.mxu0
    %v3583 = vadd.f32 %v3474, %v3582
    %3584 = vdwg.mxu0
    %3585 = vmatpush.bf16.msra.mxu0 0
    %3586 = vmatpush.bf16.msra.mxu0 0
    %3587 = vmatpush.bf16.msra.mxu0 0
    %3588 = vmatpush.bf16.msra.mxu0 0
    %3589 = vmatpush.bf16.msra.mxu0 0
    %3590 = vmatpush.bf16.msra.mxu0 0
    %3591 = vmatpush.bf16.msra.mxu0 0
    %3592 = vmatpush.bf16.msra.mxu0 %v1512
    %3593 = vmatmul.bf16.gmra.mxu0 %v1442
    %v3594 = vpop.f32.mrf.mxu0
    %v3595 = vadd.f32 %v3486, %v3594
    %v3596 = vpop.f32.mrf.mxu0
    %v3597 = vadd.f32 %v3488, %v3596
    %3598 = vmatmul.bf16.gmra.mxu0 %v1445
    %v3599 = vpop.f32.mrf.mxu0
    %v3600 = vadd.f32 %v3491, %v3599
    %v3601 = vpop.f32.mrf.mxu0
    %v3602 = vadd.f32 %v3493, %v3601
    %3603 = vmatmul.bf16.gmra.mxu0 %v1448
    %v3604 = vpop.f32.mrf.mxu0
    %v3605 = vadd.f32 %v3496, %v3604
    %v3606 = vpop.f32.mrf.mxu0
    %v3607 = vadd.f32 %v3498, %v3606
    %3608 = vmatmul.bf16.gmra.mxu0 %v1451
    %v3609 = vpop.f32.mrf.mxu0
    %v3610 = vadd.f32 %v3501, %v3609
    %v3611 = vpop.f32.mrf.mxu0
    %v3612 = vadd.f32 %v3503, %v3611
    %3613 = vmatmul.bf16.gmra.mxu0 %v1454
    %v3614 = vpop.f32.mrf.mxu0
    %v3615 = vadd.f32 %v3506, %v3614
    %v3616 = vpop.f32.mrf.mxu0
    %v3617 = vadd.f32 %v3508, %v3616
    %3618 = vmatmul.bf16.gmra.mxu0 %v1457
    %v3619 = vpop.f32.mrf.mxu0
    %v3620 = vadd.f32 %v3511, %v3619
    %v3621 = vpop.f32.mrf.mxu0
    %v3622 = vadd.f32 %v3513, %v3621
    %3623 = vmatmul.bf16.gmra.mxu0 %v1460
    %v3624 = vpop.f32.mrf.mxu0
    %v3625 = vadd.f32 %v3516, %v3624
    %v3626 = vpop.f32.mrf.mxu0
    %v3627 = vadd.f32 %v3518, %v3626
    %3628 = vmatmul.bf16.gmra.mxu0 %v1463
    %v3629 = vpop.f32.mrf.mxu0
    %v3630 = vadd.f32 %v3521, %v3629
    %v3631 = vpop.f32.mrf.mxu0
    %v3632 = vadd.f32 %v3523, %v3631
    %3633 = vmatmul.bf16.gmra.mxu0 %v1466
    %v3634 = vpop.f32.mrf.mxu0
    %v3635 = vadd.f32 %v3526, %v3634
    %v3636 = vpop.f32.mrf.mxu0
    %v3637 = vadd.f32 %v3528, %v3636
    %3638 = vmatmul.bf16.gmra.mxu0 %v1469
    %v3639 = vpop.f32.mrf.mxu0
    %v3640 = vadd.f32 %v3531, %v3639
    %v3641 = vpop.f32.mrf.mxu0
    %v3642 = vadd.f32 %v3533, %v3641
    %3643 = vmatmul.bf16.gmra.mxu0 %v1472
    %v3644 = vpop.f32.mrf.mxu0
    %v3645 = vadd.f32 %v3536, %v3644
    %v3646 = vpop.f32.mrf.mxu0
    %v3647 = vadd.f32 %v3538, %v3646
    %3648 = vmatmul.bf16.gmra.mxu0 %v1475
    %v3649 = vpop.f32.mrf.mxu0
    %v3650 = vadd.f32 %v3541, %v3649
    %v3651 = vpop.f32.mrf.mxu0
    %v3652 = vadd.f32 %v3543, %v3651
    %3653 = vmatmul.bf16.gmra.mxu0 %v1478
    %v3654 = vpop.f32.mrf.mxu0
    %v3655 = vadd.f32 %v3546, %v3654
    %v3656 = vpop.f32.mrf.mxu0
    %v3657 = vadd.f32 %v3548, %v3656
    %3658 = vmatmul.bf16.gmra.mxu0 %v1481
    %v3659 = vpop.f32.mrf.mxu0
    %v3660 = vadd.f32 %v3551, %v3659
    %v3661 = vpop.f32.mrf.mxu0
    %v3662 = vadd.f32 %v3553, %v3661
    %3663 = vmatmul.bf16.gmra.mxu0 %v1484
    %v3664 = vpop.f32.mrf.mxu0
    %v3665 = vadd.f32 %v3556, %v3664
    %v3666 = vpop.f32.mrf.mxu0
    %v3667 = vadd.f32 %v3558, %v3666
    %3668 = vmatmul.bf16.gmra.mxu0 %v1487
    %v3669 = vpop.f32.mrf.mxu0
    %v3670 = vadd.f32 %v3561, %v3669
    %v3671 = vpop.f32.mrf.mxu0
    %v3672 = vadd.f32 %v3563, %v3671
    %3673 = vmatmul.bf16.gmra.mxu0 %v1490
    %v3674 = vpop.f32.mrf.mxu0
    %v3675 = vadd.f32 %v3566, %v3674
    %v3676 = vpop.f32.mrf.mxu0
    %v3677 = vadd.f32 %v3568, %v3676
    %3678 = vmatmul.bf16.gmra.mxu0 %v1493
    %v3679 = vpop.f32.mrf.mxu0
    %v3680 = vadd.f32 %v3571, %v3679
    %v3681 = vpop.f32.mrf.mxu0
    %v3682 = vadd.f32 %v3573, %v3681
    %3683 = vmatmul.bf16.gmra.mxu0 %v1496
    %v3684 = vpop.f32.mrf.mxu0
    %v3685 = vadd.f32 %v3576, %v3684
    %v3686 = vpop.f32.mrf.mxu0
    %v3687 = vadd.f32 %v3578, %v3686
    %3688 = vmatmul.bf16.gmra.mxu0 %v1499
    %v3689 = vpop.f32.mrf.mxu0
    %v3690 = vadd.f32 %v3581, %v3689
    %v3691 = vpop.f32.mrf.mxu0
    %v3692 = vadd.f32 %v3583, %v3691
    %3693 = vdwg.mxu0
    %v3694 = vmax.f32 %v1960, 0.0
    %v3695 = vmax.f32 %v2505, 0.0
    %v3696 = vmax.f32 %v3050, 0.0
    %v3697 = vmax.f32 %v3595, 0.0
    %v3698 = vmax.f32 %v1962, 0.0
    %v3699 = vmax.f32 %v2507, 0.0
    %v3700 = vmax.f32 %v3052, 0.0
    %v3701 = vmax.f32 %v3597, 0.0
    %v3702 = vmax.f32 %v1965, 0.0
    %v3703 = vmax.f32 %v2510, 0.0
    %v3704 = vmax.f32 %v3055, 0.0
    %v3705 = vmax.f32 %v3600, 0.0
    %v3706 = vmax.f32 %v1967, 0.0
    %v3707 = vmax.f32 %v2512, 0.0
    %v3708 = vmax.f32 %v3057, 0.0
    %v3709 = vmax.f32 %v3602, 0.0
    %v3710 = vmax.f32 %v1970, 0.0
    %v3711 = vmax.f32 %v2515, 0.0
    %v3712 = vmax.f32 %v3060, 0.0
    %v3713 = vmax.f32 %v3605, 0.0
    %v3714 = vmax.f32 %v1972, 0.0
    %v3715 = vmax.f32 %v2517, 0.0
    %v3716 = vmax.f32 %v3062, 0.0
    %v3717 = vmax.f32 %v3607, 0.0
    %v3718 = vmax.f32 %v1975, 0.0
    %v3719 = vmax.f32 %v2520, 0.0
    %v3720 = vmax.f32 %v3065, 0.0
    %v3721 = vmax.f32 %v3610, 0.0
    %v3722 = vmax.f32 %v1977, 0.0
    %v3723 = vmax.f32 %v2522, 0.0
    %v3724 = vmax.f32 %v3067, 0.0
    %v3725 = vmax.f32 %v3612, 0.0
    %v3726 = vmax.f32 %v1980, 0.0
    %v3727 = vmax.f32 %v2525, 0.0
    %v3728 = vmax.f32 %v3070, 0.0
    %v3729 = vmax.f32 %v3615, 0.0
    %v3730 = vmax.f32 %v1982, 0.0
    %v3731 = vmax.f32 %v2527, 0.0
    %v3732 = vmax.f32 %v3072, 0.0
    %v3733 = vmax.f32 %v3617, 0.0
    %v3734 = vmax.f32 %v1985, 0.0
    %v3735 = vmax.f32 %v2530, 0.0
    %v3736 = vmax.f32 %v3075, 0.0
    %v3737 = vmax.f32 %v3620, 0.0
    %v3738 = vmax.f32 %v1987, 0.0
    %v3739 = vmax.f32 %v2532, 0.0
    %v3740 = vmax.f32 %v3077, 0.0
    %v3741 = vmax.f32 %v3622, 0.0
    %v3742 = vmax.f32 %v1990, 0.0
    %v3743 = vmax.f32 %v2535, 0.0
    %v3744 = vmax.f32 %v3080, 0.0
    %v3745 = vmax.f32 %v3625, 0.0
    %v3746 = vmax.f32 %v1992, 0.0
    %v3747 = vmax.f32 %v2537, 0.0
    %v3748 = vmax.f32 %v3082, 0.0
    %v3749 = vmax.f32 %v3627, 0.0
    %v3750 = vmax.f32 %v1995, 0.0
    %v3751 = vmax.f32 %v2540, 0.0
    %v3752 = vmax.f32 %v3085, 0.0
    %v3753 = vmax.f32 %v3630, 0.0
    %v3754 = vmax.f32 %v1997, 0.0
    %v3755 = vmax.f32 %v2542, 0.0
    %v3756 = vmax.f32 %v3087, 0.0
    %v3757 = vmax.f32 %v3632, 0.0
    %v3758 = vmax.f32 %v2000, 0.0
    %v3759 = vmax.f32 %v2545, 0.0
    %v3760 = vmax.f32 %v3090, 0.0
    %v3761 = vmax.f32 %v3635, 0.0
    %v3762 = vmax.f32 %v2002, 0.0
    %v3763 = vmax.f32 %v2547, 0.0
    %v3764 = vmax.f32 %v3092, 0.0
    %v3765 = vmax.f32 %v3637, 0.0
    %v3766 = vmax.f32 %v2005, 0.0
    %v3767 = vmax.f32 %v2550, 0.0
    %v3768 = vmax.f32 %v3095, 0.0
    %v3769 = vmax.f32 %v3640, 0.0
    %v3770 = vmax.f32 %v2007, 0.0
    %v3771 = vmax.f32 %v2552, 0.0
    %v3772 = vmax.f32 %v3097, 0.0
    %v3773 = vmax.f32 %v3642, 0.0
    %v3774 = vmax.f32 %v2010, 0.0
    %v3775 = vmax.f32 %v2555, 0.0
    %v3776 = vmax.f32 %v3100, 0.0
    %v3777 = vmax.f32 %v3645, 0.0
    %v3778 = vmax.f32 %v2012, 0.0
    %v3779 = vmax.f32 %v2557, 0.0
    %v3780 = vmax.f32 %v3102, 0.0
    %v3781 = vmax.f32 %v3647, 0.0
    %v3782 = vmax.f32 %v2015, 0.0
    %v3783 = vmax.f32 %v2560, 0.0
    %v3784 = vmax.f32 %v3105, 0.0
    %v3785 = vmax.f32 %v3650, 0.0
    %v3786 = vmax.f32 %v2017, 0.0
    %v3787 = vmax.f32 %v2562, 0.0
    %v3788 = vmax.f32 %v3107, 0.0
    %v3789 = vmax.f32 %v3652, 0.0
    %v3790 = vmax.f32 %v2020, 0.0
    %v3791 = vmax.f32 %v2565, 0.0
    %v3792 = vmax.f32 %v3110, 0.0
    %v3793 = vmax.f32 %v3655, 0.0
    %v3794 = vmax.f32 %v2022, 0.0
    %v3795 = vmax.f32 %v2567, 0.0
    %v3796 = vmax.f32 %v3112, 0.0
    %v3797 = vmax.f32 %v3657, 0.0
    %v3798 = vmax.f32 %v2025, 0.0
    %v3799 = vmax.f32 %v2570, 0.0
    %v3800 = vmax.f32 %v3115, 0.0
    %v3801 = vmax.f32 %v3660, 0.0
    %v3802 = vmax.f32 %v2027, 0.0
    %v3803 = vmax.f32 %v2572, 0.0
    %v3804 = vmax.f32 %v3117, 0.0
    %v3805 = vmax.f32 %v3662, 0.0
    %v3806 = vmax.f32 %v2030, 0.0
    %v3807 = vmax.f32 %v2575, 0.0
    %v3808 = vmax.f32 %v3120, 0.0
    %v3809 = vmax.f32 %v3665, 0.0
    %v3810 = vmax.f32 %v2032, 0.0
    %v3811 = vmax.f32 %v2577, 0.0
    %v3812 = vmax.f32 %v3122, 0.0
    %v3813 = vmax.f32 %v3667, 0.0
    %v3814 = vmax.f32 %v2035, 0.0
    %v3815 = vmax.f32 %v2580, 0.0
    %v3816 = vmax.f32 %v3125, 0.0
    %v3817 = vmax.f32 %v3670, 0.0
    %v3818 = vmax.f32 %v2037, 0.0
    %v3819 = vmax.f32 %v2582, 0.0
    %v3820 = vmax.f32 %v3127, 0.0
    %v3821 = vmax.f32 %v3672, 0.0
    %v3822 = vmax.f32 %v2040, 0.0
    %v3823 = vmax.f32 %v2585, 0.0
    %v3824 = vmax.f32 %v3130, 0.0
    %v3825 = vmax.f32 %v3675, 0.0
    %v3826 = vmax.f32 %v2042, 0.0
    %v3827 = vmax.f32 %v2587, 0.0
    %v3828 = vmax.f32 %v3132, 0.0
    %v3829 = vmax.f32 %v3677, 0.0
    %v3830 = vmax.f32 %v2045, 0.0
    %v3831 = vmax.f32 %v2590, 0.0
    %v3832 = vmax.f32 %v3135, 0.0
    %v3833 = vmax.f32 %v3680, 0.0
    %v3834 = vmax.f32 %v2047, 0.0
    %v3835 = vmax.f32 %v2592, 0.0
    %v3836 = vmax.f32 %v3137, 0.0
    %v3837 = vmax.f32 %v3682, 0.0
    %v3838 = vmax.f32 %v2050, 0.0
    %v3839 = vmax.f32 %v2595, 0.0
    %v3840 = vmax.f32 %v3140, 0.0
    %v3841 = vmax.f32 %v3685, 0.0
    %v3842 = vmax.f32 %v2052, 0.0
    %v3843 = vmax.f32 %v2597, 0.0
    %v3844 = vmax.f32 %v3142, 0.0
    %v3845 = vmax.f32 %v3687, 0.0
    %v3846 = vmax.f32 %v2055, 0.0
    %v3847 = vmax.f32 %v2600, 0.0
    %v3848 = vmax.f32 %v3145, 0.0
    %v3849 = vmax.f32 %v3690, 0.0
    %v3850 = vmax.f32 %v2057, 0.0
    %v3851 = vmax.f32 %v2602, 0.0
    %v3852 = vmax.f32 %v3147, 0.0
    %v3853 = vmax.f32 %v3692, 0.0
    %v3854 = vpack.c.bf16 %v3698, %v3694
    %v3855 = vpack.c.bf16 %v3699, %v3695
    %v3856 = vpack.c.bf16 %v3700, %v3696
    %v3857 = vpack.c.bf16 %v3701, %v3697
    %v3858 = vpack.c.bf16 %v3706, %v3702
    %v3859 = vpack.c.bf16 %v3707, %v3703
    %v3860 = vpack.c.bf16 %v3708, %v3704
    %v3861 = vpack.c.bf16 %v3709, %v3705
    %v3862 = vpack.c.bf16 %v3714, %v3710
    %v3863 = vpack.c.bf16 %v3715, %v3711
    %v3864 = vpack.c.bf16 %v3716, %v3712
    %v3865 = vpack.c.bf16 %v3717, %v3713
    %v3866 = vpack.c.bf16 %v3722, %v3718
    %v3867 = vpack.c.bf16 %v3723, %v3719
    %v3868 = vpack.c.bf16 %v3724, %v3720
    %v3869 = vpack.c.bf16 %v3725, %v3721
    %v3870 = vpack.c.bf16 %v3730, %v3726
    %v3871 = vpack.c.bf16 %v3731, %v3727
    %v3872 = vpack.c.bf16 %v3732, %v3728
    %v3873 = vpack.c.bf16 %v3733, %v3729
    %v3874 = vpack.c.bf16 %v3738, %v3734
    %v3875 = vpack.c.bf16 %v3739, %v3735
    %v3876 = vpack.c.bf16 %v3740, %v3736
    %v3877 = vpack.c.bf16 %v3741, %v3737
    %v3878 = vpack.c.bf16 %v3746, %v3742
    %v3879 = vpack.c.bf16 %v3747, %v3743
    %v3880 = vpack.c.bf16 %v3748, %v3744
    %v3881 = vpack.c.bf16 %v3749, %v3745
    %v3882 = vpack.c.bf16 %v3754, %v3750
    %v3883 = vpack.c.bf16 %v3755, %v3751
    %v3884 = vpack.c.bf16 %v3756, %v3752
    %v3885 = vpack.c.bf16 %v3757, %v3753
    %v3886 = vpack.c.bf16 %v3762, %v3758
    %v3887 = vpack.c.bf16 %v3763, %v3759
    %v3888 = vpack.c.bf16 %v3764, %v3760
    %v3889 = vpack.c.bf16 %v3765, %v3761
    %v3890 = vpack.c.bf16 %v3770, %v3766
    %v3891 = vpack.c.bf16 %v3771, %v3767
    %v3892 = vpack.c.bf16 %v3772, %v3768
    %v3893 = vpack.c.bf16 %v3773, %v3769
    %v3894 = vpack.c.bf16 %v3778, %v3774
    %v3895 = vpack.c.bf16 %v3779, %v3775
    %v3896 = vpack.c.bf16 %v3780, %v3776
    %v3897 = vpack.c.bf16 %v3781, %v3777
    %v3898 = vpack.c.bf16 %v3786, %v3782
    %v3899 = vpack.c.bf16 %v3787, %v3783
    %v3900 = vpack.c.bf16 %v3788, %v3784
    %v3901 = vpack.c.bf16 %v3789, %v3785
    %v3902 = vpack.c.bf16 %v3794, %v3790
    %v3903 = vpack.c.bf16 %v3795, %v3791
    %v3904 = vpack.c.bf16 %v3796, %v3792
    %v3905 = vpack.c.bf16 %v3797, %v3793
    %v3906 = vpack.c.bf16 %v3802, %v3798
    %v3907 = vpack.c.bf16 %v3803, %v3799
    %v3908 = vpack.c.bf16 %v3804, %v3800
    %v3909 = vpack.c.bf16 %v3805, %v3801
    %v3910 = vpack.c.bf16 %v3810, %v3806
    %v3911 = vpack.c.bf16 %v3811, %v3807
    %v3912 = vpack.c.bf16 %v3812, %v3808
    %v3913 = vpack.c.bf16 %v3813, %v3809
    %v3914 = vpack.c.bf16 %v3818, %v3814
    %v3915 = vpack.c.bf16 %v3819, %v3815
    %v3916 = vpack.c.bf16 %v3820, %v3816
    %v3917 = vpack.c.bf16 %v3821, %v3817
    %v3918 = vpack.c.bf16 %v3826, %v3822
    %v3919 = vpack.c.bf16 %v3827, %v3823
    %v3920 = vpack.c.bf16 %v3828, %v3824
    %v3921 = vpack.c.bf16 %v3829, %v3825
    %v3922 = vpack.c.bf16 %v3834, %v3830
    %v3923 = vpack.c.bf16 %v3835, %v3831
    %v3924 = vpack.c.bf16 %v3836, %v3832
    %v3925 = vpack.c.bf16 %v3837, %v3833
    %v3926 = vpack.c.bf16 %v3842, %v3838
    %v3927 = vpack.c.bf16 %v3843, %v3839
    %v3928 = vpack.c.bf16 %v3844, %v3840
    %v3929 = vpack.c.bf16 %v3845, %v3841
    %v3930 = vpack.c.bf16 %v3850, %v3846
    %v3931 = vpack.c.bf16 %v3851, %v3847
    %v3932 = vpack.c.bf16 %v3852, %v3848
    %v3933 = vpack.c.bf16 %v3853, %v3849
    %v3934 = vld [vmem:[%s3] sm:$0xff]
    %v3935 = vld [vmem:[%s3 + $0x8] sm:$0xff]
    %v3936 = vld [vmem:[%s3 + $0x10] sm:$0xff]
    %v3937 = vld [vmem:[%s3 + $0x18] sm:$0xff]
    %v3938 = vld [vmem:[%s3 + $0x20] sm:$0xff]
    %v3939 = vld [vmem:[%s3 + $0x28] sm:$0xff]
    %v3940 = vld [vmem:[%s3 + $0x30] sm:$0xff]
    %v3941 = vld [vmem:[%s3 + $0x38] sm:$0xff]
    %v3942 = vld [vmem:[%s3 + $0x40] sm:$0xff]
    %v3943 = vld [vmem:[%s3 + $0x48] sm:$0xff]
    %v3944 = vld [vmem:[%s3 + $0x50] sm:$0xff]
    %v3945 = vld [vmem:[%s3 + $0x58] sm:$0xff]
    %v3946 = vld [vmem:[%s3 + $0x60] sm:$0xff]
    %v3947 = vld [vmem:[%s3 + $0x68] sm:$0xff]
    %v3948 = vld [vmem:[%s3 + $0x70] sm:$0xff]
    %v3949 = vld [vmem:[%s3 + $0x78] sm:$0xff]
    %v3950 = vld [vmem:[%s3 + $0x80] sm:$0xff]
    %v3951 = vld [vmem:[%s3 + $0x88] sm:$0xff]
    %v3952 = vld [vmem:[%s3 + $0x90] sm:$0xff]
    %v3953 = vld [vmem:[%s3 + $0x98] sm:$0xff]
    %v3954 = vld [vmem:[%s3 + $0xa0] sm:$0xff]
    %v3955 = vld [vmem:[%s3 + $0xa8] sm:$0xff]
    %v3956 = vld [vmem:[%s3 + $0xb0] sm:$0xff]
    %v3957 = vld [vmem:[%s3 + $0xb8] sm:$0xff]
    %v3958 = vld [vmem:[%s3 + $0xc0] sm:$0xff]
    %v3959 = vld [vmem:[%s3 + $0xc8] sm:$0xff]
    %v3960 = vld [vmem:[%s3 + $0xd0] sm:$0xff]
    %v3961 = vld [vmem:[%s3 + $0xd8] sm:$0xff]
    %v3962 = vld [vmem:[%s3 + $0xe0] sm:$0xff]
    %v3963 = vld [vmem:[%s3 + $0xe8] sm:$0xff]
    %v3964 = vld [vmem:[%s3 + $0xf0] sm:$0xff]
    %v3965 = vld [vmem:[%s3 + $0xf8] sm:$0xff]
    %v3966 = vld [vmem:[%s3 + $0x100] sm:$0xff]
    %v3967 = vld [vmem:[%s3 + $0x108] sm:$0xff]
    %v3968 = vld [vmem:[%s3 + $0x110] sm:$0xff]
    %v3969 = vld [vmem:[%s3 + $0x118] sm:$0xff]
    %v3970 = vld [vmem:[%s3 + $0x120] sm:$0xff]
    %v3971 = vld [vmem:[%s3 + $0x128] sm:$0xff]
    %v3972 = vld [vmem:[%s3 + $0x130] sm:$0xff]
    %v3973 = vld [vmem:[%s3 + $0x138] sm:$0xff]
    %v3974 = vld [vmem:[%s3 + $0x140] sm:$0xff]
    %v3975 = vld [vmem:[%s3 + $0x148] sm:$0xff]
    %v3976 = vld [vmem:[%s3 + $0x150] sm:$0xff]
    %v3977 = vld [vmem:[%s3 + $0x158] sm:$0xff]
    %v3978 = vld [vmem:[%s3 + $0x160] sm:$0xff]
    %v3979 = vld [vmem:[%s3 + $0x168] sm:$0xff]
    %v3980 = vld [vmem:[%s3 + $0x170] sm:$0xff]
    %v3981 = vld [vmem:[%s3 + $0x178] sm:$0xff]
    %v3982 = vld [vmem:[%s3 + $0x180] sm:$0xff]
    %v3983 = vld [vmem:[%s3 + $0x188] sm:$0xff]
    %v3984 = vld [vmem:[%s3 + $0x190] sm:$0xff]
    %v3985 = vld [vmem:[%s3 + $0x198] sm:$0xff]
    %v3986 = vld [vmem:[%s3 + $0x1a0] sm:$0xff]
    %v3987 = vld [vmem:[%s3 + $0x1a8] sm:$0xff]
    %v3988 = vld [vmem:[%s3 + $0x1b0] sm:$0xff]
    %v3989 = vld [vmem:[%s3 + $0x1b8] sm:$0xff]
    %v3990 = vld [vmem:[%s3 + $0x1c0] sm:$0xff]
    %v3991 = vld [vmem:[%s3 + $0x1c8] sm:$0xff]
    %v3992 = vld [vmem:[%s3 + $0x1d0] sm:$0xff]
    %v3993 = vld [vmem:[%s3 + $0x1d8] sm:$0xff]
    %v3994 = vld [vmem:[%s3 + $0x1e0] sm:$0xff]
    %v3995 = vld [vmem:[%s3 + $0x1e8] sm:$0xff]
    %v3996 = vld [vmem:[%s3 + $0x1f0] sm:$0xff]
    %v3997 = vld [vmem:[%s3 + $0x1f8] sm:$0xff]
    %v3998 = vld [vmem:[%s4] sm:$0x3]
    %v4000 = vperm.slane %v3998, 0
    %v4001 = vperm.slane %v3998, 1
    %v4068 = vunpack.c.l.b16 %v3934
    %v4069 = vunpack.c.h.b16 %v3934
    %v4070 = vunpack.c.l.b16 %v3935
    %v4071 = vunpack.c.h.b16 %v3935
    %v4072 = vunpack.c.l.b16 %v3936
    %v4073 = vunpack.c.h.b16 %v3936
    %v4074 = vunpack.c.l.b16 %v3937
    %v4075 = vunpack.c.h.b16 %v3937
    %v4076 = vunpack.c.l.b16 %v3938
    %v4077 = vunpack.c.h.b16 %v3938
    %v4078 = vunpack.c.l.b16 %v3939
    %v4079 = vunpack.c.h.b16 %v3939
    %v4080 = vunpack.c.l.b16 %v3940
    %v4081 = vunpack.c.h.b16 %v3940
    %v4082 = vunpack.c.l.b16 %v3941
    %v4083 = vunpack.c.h.b16 %v3941
    %v4084 = vunpack.c.l.b16 %v3942
    %v4085 = vunpack.c.h.b16 %v3942
    %v4086 = vunpack.c.l.b16 %v3943
    %v4087 = vunpack.c.h.b16 %v3943
    %v4088 = vunpack.c.l.b16 %v3944
    %v4089 = vunpack.c.h.b16 %v3944
    %v4090 = vunpack.c.l.b16 %v3945
    %v4091 = vunpack.c.h.b16 %v3945
    %v4092 = vunpack.c.l.b16 %v3946
    %v4093 = vunpack.c.h.b16 %v3946
    %v4094 = vunpack.c.l.b16 %v3947
    %v4095 = vunpack.c.h.b16 %v3947
    %v4096 = vunpack.c.l.b16 %v3948
    %v4097 = vunpack.c.h.b16 %v3948
    %v4098 = vunpack.c.l.b16 %v3949
    %v4099 = vunpack.c.h.b16 %v3949
    %v4100 = vunpack.c.l.b16 %v3950
    %v4101 = vunpack.c.h.b16 %v3950
    %v4102 = vunpack.c.l.b16 %v3951
    %v4103 = vunpack.c.h.b16 %v3951
    %v4104 = vunpack.c.l.b16 %v3952
    %v4105 = vunpack.c.h.b16 %v3952
    %v4106 = vunpack.c.l.b16 %v3953
    %v4107 = vunpack.c.h.b16 %v3953
    %v4108 = vunpack.c.l.b16 %v3954
    %v4109 = vunpack.c.h.b16 %v3954
    %v4110 = vunpack.c.l.b16 %v3955
    %v4111 = vunpack.c.h.b16 %v3955
    %v4112 = vunpack.c.l.b16 %v3956
    %v4113 = vunpack.c.h.b16 %v3956
    %v4114 = vunpack.c.l.b16 %v3957
    %v4115 = vunpack.c.h.b16 %v3957
    %v4116 = vunpack.c.l.b16 %v3958
    %v4117 = vunpack.c.h.b16 %v3958
    %v4118 = vunpack.c.l.b16 %v3959
    %v4119 = vunpack.c.h.b16 %v3959
    %v4120 = vunpack.c.l.b16 %v3960
    %v4121 = vunpack.c.h.b16 %v3960
    %v4122 = vunpack.c.l.b16 %v3961
    %v4123 = vunpack.c.h.b16 %v3961
    %v4124 = vunpack.c.l.b16 %v3962
    %v4125 = vunpack.c.h.b16 %v3962
    %v4126 = vunpack.c.l.b16 %v3963
    %v4127 = vunpack.c.h.b16 %v3963
    %v4128 = vunpack.c.l.b16 %v3964
    %v4129 = vunpack.c.h.b16 %v3964
    %v4130 = vunpack.c.l.b16 %v3965
    %v4131 = vunpack.c.h.b16 %v3965
    %v4132 = vunpack.c.l.b16 %v3966
    %v4133 = vunpack.c.h.b16 %v3966
    %v4134 = vunpack.c.l.b16 %v3967
    %v4135 = vunpack.c.h.b16 %v3967
    %v4136 = vunpack.c.l.b16 %v3968
    %v4137 = vunpack.c.h.b16 %v3968
    %v4138 = vunpack.c.l.b16 %v3969
    %v4139 = vunpack.c.h.b16 %v3969
    %v4140 = vunpack.c.l.b16 %v3970
    %v4141 = vunpack.c.h.b16 %v3970
    %v4142 = vunpack.c.l.b16 %v3971
    %v4143 = vunpack.c.h.b16 %v3971
    %v4144 = vunpack.c.l.b16 %v3972
    %v4145 = vunpack.c.h.b16 %v3972
    %v4146 = vunpack.c.l.b16 %v3973
    %v4147 = vunpack.c.h.b16 %v3973
    %v4148 = vunpack.c.l.b16 %v3974
    %v4149 = vunpack.c.h.b16 %v3974
    %v4150 = vunpack.c.l.b16 %v3975
    %v4151 = vunpack.c.h.b16 %v3975
    %v4152 = vunpack.c.l.b16 %v3976
    %v4153 = vunpack.c.h.b16 %v3976
    %v4154 = vunpack.c.l.b16 %v3977
    %v4155 = vunpack.c.h.b16 %v3977
    %v4156 = vunpack.c.l.b16 %v3978
    %v4157 = vunpack.c.h.b16 %v3978
    %v4158 = vunpack.c.l.b16 %v3979
    %v4159 = vunpack.c.h.b16 %v3979
    %v4160 = vunpack.c.l.b16 %v3980
    %v4161 = vunpack.c.h.b16 %v3980
    %v4162 = vunpack.c.l.b16 %v3981
    %v4163 = vunpack.c.h.b16 %v3981
    %v4164 = vunpack.c.l.b16 %v3982
    %v4165 = vunpack.c.h.b16 %v3982
    %v4166 = vunpack.c.l.b16 %v3983
    %v4167 = vunpack.c.h.b16 %v3983
    %v4168 = vunpack.c.l.b16 %v3984
    %v4169 = vunpack.c.h.b16 %v3984
    %v4170 = vunpack.c.l.b16 %v3985
    %v4171 = vunpack.c.h.b16 %v3985
    %v4172 = vunpack.c.l.b16 %v3986
    %v4173 = vunpack.c.h.b16 %v3986
    %v4174 = vunpack.c.l.b16 %v3987
    %v4175 = vunpack.c.h.b16 %v3987
    %v4176 = vunpack.c.l.b16 %v3988
    %v4177 = vunpack.c.h.b16 %v3988
    %v4178 = vunpack.c.l.b16 %v3989
    %v4179 = vunpack.c.h.b16 %v3989
    %v4180 = vunpack.c.l.b16 %v3990
    %v4181 = vunpack.c.h.b16 %v3990
    %v4182 = vunpack.c.l.b16 %v3991
    %v4183 = vunpack.c.h.b16 %v3991
    %v4184 = vunpack.c.l.b16 %v3992
    %v4185 = vunpack.c.h.b16 %v3992
    %v4186 = vunpack.c.l.b16 %v3993
    %v4187 = vunpack.c.h.b16 %v3993
    %v4188 = vunpack.c.l.b16 %v3994
    %v4189 = vunpack.c.h.b16 %v3994
    %v4190 = vunpack.c.l.b16 %v3995
    %v4191 = vunpack.c.h.b16 %v3995
    %v4192 = vunpack.c.l.b16 %v3996
    %v4193 = vunpack.c.h.b16 %v3996
    %v4194 = vunpack.c.l.b16 %v3997
    %v4195 = vunpack.c.h.b16 %v3997
    %v4196 = vpack.c.b16 %v4070, %v4068
    %v4197 = vpack.c.b16 %v4071, %v4069
    %v4198 = vpack.c.b16 %v4074, %v4072
    %v4199 = vpack.c.b16 %v4075, %v4073
    %v4200 = vpack.c.b16 %v4078, %v4076
    %v4201 = vpack.c.b16 %v4079, %v4077
    %v4202 = vpack.c.b16 %v4082, %v4080
    %v4203 = vpack.c.b16 %v4083, %v4081
    %v4204 = vpack.c.b16 %v4086, %v4084
    %v4205 = vpack.c.b16 %v4087, %v4085
    %v4206 = vpack.c.b16 %v4090, %v4088
    %v4207 = vpack.c.b16 %v4091, %v4089
    %v4208 = vpack.c.b16 %v4094, %v4092
    %v4209 = vpack.c.b16 %v4095, %v4093
    %v4210 = vpack.c.b16 %v4098, %v4096
    %v4211 = vpack.c.b16 %v4099, %v4097
    %v4212 = vpack.c.b16 %v4102, %v4100
    %v4213 = vpack.c.b16 %v4103, %v4101
    %v4214 = vpack.c.b16 %v4106, %v4104
    %v4215 = vpack.c.b16 %v4107, %v4105
    %v4216 = vpack.c.b16 %v4110, %v4108
    %v4217 = vpack.c.b16 %v4111, %v4109
    %v4218 = vpack.c.b16 %v4114, %v4112
    %v4219 = vpack.c.b16 %v4115, %v4113
    %v4220 = vpack.c.b16 %v4118, %v4116
    %v4221 = vpack.c.b16 %v4119, %v4117
    %v4222 = vpack.c.b16 %v4122, %v4120
    %v4223 = vpack.c.b16 %v4123, %v4121
    %v4224 = vpack.c.b16 %v4126, %v4124
    %v4225 = vpack.c.b16 %v4127, %v4125
    %v4226 = vpack.c.b16 %v4130, %v4128
    %v4227 = vpack.c.b16 %v4131, %v4129
    %v4228 = vpack.c.b16 %v4134, %v4132
    %v4229 = vpack.c.b16 %v4135, %v4133
    %v4230 = vpack.c.b16 %v4138, %v4136
    %v4231 = vpack.c.b16 %v4139, %v4137
    %v4232 = vpack.c.b16 %v4142, %v4140
    %v4233 = vpack.c.b16 %v4143, %v4141
    %v4234 = vpack.c.b16 %v4146, %v4144
    %v4235 = vpack.c.b16 %v4147, %v4145
    %v4236 = vpack.c.b16 %v4150, %v4148
    %v4237 = vpack.c.b16 %v4151, %v4149
    %v4238 = vpack.c.b16 %v4154, %v4152
    %v4239 = vpack.c.b16 %v4155, %v4153
    %v4240 = vpack.c.b16 %v4158, %v4156
    %v4241 = vpack.c.b16 %v4159, %v4157
    %v4242 = vpack.c.b16 %v4162, %v4160
    %v4243 = vpack.c.b16 %v4163, %v4161
    %v4244 = vpack.c.b16 %v4166, %v4164
    %v4245 = vpack.c.b16 %v4167, %v4165
    %v4246 = vpack.c.b16 %v4170, %v4168
    %v4247 = vpack.c.b16 %v4171, %v4169
    %v4248 = vpack.c.b16 %v4174, %v4172
    %v4249 = vpack.c.b16 %v4175, %v4173
    %v4250 = vpack.c.b16 %v4178, %v4176
    %v4251 = vpack.c.b16 %v4179, %v4177
    %v4252 = vpack.c.b16 %v4182, %v4180
    %v4253 = vpack.c.b16 %v4183, %v4181
    %v4254 = vpack.c.b16 %v4186, %v4184
    %v4255 = vpack.c.b16 %v4187, %v4185
    %v4256 = vpack.c.b16 %v4190, %v4188
    %v4257 = vpack.c.b16 %v4191, %v4189
    %v4258 = vpack.c.b16 %v4194, %v4192
    %v4259 = vpack.c.b16 %v4195, %v4193
    %4324 = vmatpush.bf16.msra.mxu0 %v4210
    %4325 = vmatpush.bf16.msra.mxu0 %v4208
    %4326 = vmatpush.bf16.msra.mxu0 %v4206
    %4327 = vmatpush.bf16.msra.mxu0 %v4204
    %4328 = vmatpush.bf16.msra.mxu0 %v4202
    %4329 = vmatpush.bf16.msra.mxu0 %v4200
    %4330 = vmatpush.bf16.msra.mxu0 %v4198
    %4331 = vmatpush.bf16.msra.mxu0 %v4196
    %4332 = vmatmul.bf16.gmra.mxu0 %v3854
    %v4333 = vpop.f32.mrf.mxu0
    %v4334 = vadd.f32 %v4000, %v4333
    %v4335 = vpop.f32.mrf.mxu0
    %v4336 = vadd.f32 %v4000, %v4335
    %4337 = vmatmul.bf16.gmra.mxu0 %v3858
    %v4338 = vpop.f32.mrf.mxu0
    %v4339 = vadd.f32 %v4000, %v4338
    %v4340 = vpop.f32.mrf.mxu0
    %v4341 = vadd.f32 %v4000, %v4340
    %4342 = vmatmul.bf16.gmra.mxu0 %v3862
    %v4343 = vpop.f32.mrf.mxu0
    %v4344 = vadd.f32 %v4000, %v4343
    %v4345 = vpop.f32.mrf.mxu0
    %v4346 = vadd.f32 %v4000, %v4345
    %4347 = vmatmul.bf16.gmra.mxu0 %v3866
    %v4348 = vpop.f32.mrf.mxu0
    %v4349 = vadd.f32 %v4000, %v4348
    %v4350 = vpop.f32.mrf.mxu0
    %v4351 = vadd.f32 %v4000, %v4350
    %4352 = vmatmul.bf16.gmra.mxu0 %v3870
    %v4353 = vpop.f32.mrf.mxu0
    %v4354 = vadd.f32 %v4000, %v4353
    %v4355 = vpop.f32.mrf.mxu0
    %v4356 = vadd.f32 %v4000, %v4355
    %4357 = vmatmul.bf16.gmra.mxu0 %v3874
    %v4358 = vpop.f32.mrf.mxu0
    %v4359 = vadd.f32 %v4000, %v4358
    %v4360 = vpop.f32.mrf.mxu0
    %v4361 = vadd.f32 %v4000, %v4360
    %4362 = vmatmul.bf16.gmra.mxu0 %v3878
    %v4363 = vpop.f32.mrf.mxu0
    %v4364 = vadd.f32 %v4000, %v4363
    %v4365 = vpop.f32.mrf.mxu0
    %v4366 = vadd.f32 %v4000, %v4365
    %4367 = vmatmul.bf16.gmra.mxu0 %v3882
    %v4368 = vpop.f32.mrf.mxu0
    %v4369 = vadd.f32 %v4000, %v4368
    %v4370 = vpop.f32.mrf.mxu0
    %v4371 = vadd.f32 %v4000, %v4370
    %4372 = vmatmul.bf16.gmra.mxu0 %v3886
    %v4373 = vpop.f32.mrf.mxu0
    %v4374 = vadd.f32 %v4000, %v4373
    %v4375 = vpop.f32.mrf.mxu0
    %v4376 = vadd.f32 %v4000, %v4375
    %4377 = vmatmul.bf16.gmra.mxu0 %v3890
    %v4378 = vpop.f32.mrf.mxu0
    %v4379 = vadd.f32 %v4000, %v4378
    %v4380 = vpop.f32.mrf.mxu0
    %v4381 = vadd.f32 %v4000, %v4380
    %4382 = vmatmul.bf16.gmra.mxu0 %v3894
    %v4383 = vpop.f32.mrf.mxu0
    %v4384 = vadd.f32 %v4000, %v4383
    %v4385 = vpop.f32.mrf.mxu0
    %v4386 = vadd.f32 %v4000, %v4385
    %4387 = vmatmul.bf16.gmra.mxu0 %v3898
    %v4388 = vpop.f32.mrf.mxu0
    %v4389 = vadd.f32 %v4000, %v4388
    %v4390 = vpop.f32.mrf.mxu0
    %v4391 = vadd.f32 %v4000, %v4390
    %4392 = vmatmul.bf16.gmra.mxu0 %v3902
    %v4393 = vpop.f32.mrf.mxu0
    %v4394 = vadd.f32 %v4000, %v4393
    %v4395 = vpop.f32.mrf.mxu0
    %v4396 = vadd.f32 %v4000, %v4395
    %4397 = vmatmul.bf16.gmra.mxu0 %v3906
    %v4398 = vpop.f32.mrf.mxu0
    %v4399 = vadd.f32 %v4000, %v4398
    %v4400 = vpop.f32.mrf.mxu0
    %v4401 = vadd.f32 %v4000, %v4400
    %4402 = vmatmul.bf16.gmra.mxu0 %v3910
    %v4403 = vpop.f32.mrf.mxu0
    %v4404 = vadd.f32 %v4000, %v4403
    %v4405 = vpop.f32.mrf.mxu0
    %v4406 = vadd.f32 %v4000, %v4405
    %4407 = vmatmul.bf16.gmra.mxu0 %v3914
    %v4408 = vpop.f32.mrf.mxu0
    %v4409 = vadd.f32 %v4000, %v4408
    %v4410 = vpop.f32.mrf.mxu0
    %v4411 = vadd.f32 %v4000, %v4410
    %4412 = vmatmul.bf16.gmra.mxu0 %v3918
    %v4413 = vpop.f32.mrf.mxu0
    %v4414 = vadd.f32 %v4000, %v4413
    %v4415 = vpop.f32.mrf.mxu0
    %v4416 = vadd.f32 %v4000, %v4415
    %4417 = vmatmul.bf16.gmra.mxu0 %v3922
    %v4418 = vpop.f32.mrf.mxu0
    %v4419 = vadd.f32 %v4000, %v4418
    %v4420 = vpop.f32.mrf.mxu0
    %v4421 = vadd.f32 %v4000, %v4420
    %4422 = vmatmul.bf16.gmra.mxu0 %v3926
    %v4423 = vpop.f32.mrf.mxu0
    %v4424 = vadd.f32 %v4000, %v4423
    %v4425 = vpop.f32.mrf.mxu0
    %v4426 = vadd.f32 %v4000, %v4425
    %4427 = vmatmul.bf16.gmra.mxu0 %v3930
    %v4428 = vpop.f32.mrf.mxu0
    %v4429 = vadd.f32 %v4000, %v4428
    %v4430 = vpop.f32.mrf.mxu0
    %v4431 = vadd.f32 %v4000, %v4430
    %4432 = vdwg.mxu0
    %4433 = vmatpush.bf16.msra.mxu0 %v4226
    %4434 = vmatpush.bf16.msra.mxu0 %v4224
    %4435 = vmatpush.bf16.msra.mxu0 %v4222
    %4436 = vmatpush.bf16.msra.mxu0 %v4220
    %4437 = vmatpush.bf16.msra.mxu0 %v4218
    %4438 = vmatpush.bf16.msra.mxu0 %v4216
    %4439 = vmatpush.bf16.msra.mxu0 %v4214
    %4440 = vmatpush.bf16.msra.mxu0 %v4212
    %4441 = vmatmul.bf16.gmra.mxu0 %v3855
    %v4442 = vpop.f32.mrf.mxu0
    %v4443 = vadd.f32 %v4334, %v4442
    %v4444 = vpop.f32.mrf.mxu0
    %v4445 = vadd.f32 %v4336, %v4444
    %4446 = vmatmul.bf16.gmra.mxu0 %v3859
    %v4447 = vpop.f32.mrf.mxu0
    %v4448 = vadd.f32 %v4339, %v4447
    %v4449 = vpop.f32.mrf.mxu0
    %v4450 = vadd.f32 %v4341, %v4449
    %4451 = vmatmul.bf16.gmra.mxu0 %v3863
    %v4452 = vpop.f32.mrf.mxu0
    %v4453 = vadd.f32 %v4344, %v4452
    %v4454 = vpop.f32.mrf.mxu0
    %v4455 = vadd.f32 %v4346, %v4454
    %4456 = vmatmul.bf16.gmra.mxu0 %v3867
    %v4457 = vpop.f32.mrf.mxu0
    %v4458 = vadd.f32 %v4349, %v4457
    %v4459 = vpop.f32.mrf.mxu0
    %v4460 = vadd.f32 %v4351, %v4459
    %4461 = vmatmul.bf16.gmra.mxu0 %v3871
    %v4462 = vpop.f32.mrf.mxu0
    %v4463 = vadd.f32 %v4354, %v4462
    %v4464 = vpop.f32.mrf.mxu0
    %v4465 = vadd.f32 %v4356, %v4464
    %4466 = vmatmul.bf16.gmra.mxu0 %v3875
    %v4467 = vpop.f32.mrf.mxu0
    %v4468 = vadd.f32 %v4359, %v4467
    %v4469 = vpop.f32.mrf.mxu0
    %v4470 = vadd.f32 %v4361, %v4469
    %4471 = vmatmul.bf16.gmra.mxu0 %v3879
    %v4472 = vpop.f32.mrf.mxu0
    %v4473 = vadd.f32 %v4364, %v4472
    %v4474 = vpop.f32.mrf.mxu0
    %v4475 = vadd.f32 %v4366, %v4474
    %4476 = vmatmul.bf16.gmra.mxu0 %v3883
    %v4477 = vpop.f32.mrf.mxu0
    %v4478 = vadd.f32 %v4369, %v4477
    %v4479 = vpop.f32.mrf.mxu0
    %v4480 = vadd.f32 %v4371, %v4479
    %4481 = vmatmul.bf16.gmra.mxu0 %v3887
    %v4482 = vpop.f32.mrf.mxu0
    %v4483 = vadd.f32 %v4374, %v4482
    %v4484 = vpop.f32.mrf.mxu0
    %v4485 = vadd.f32 %v4376, %v4484
    %4486 = vmatmul.bf16.gmra.mxu0 %v3891
    %v4487 = vpop.f32.mrf.mxu0
    %v4488 = vadd.f32 %v4379, %v4487
    %v4489 = vpop.f32.mrf.mxu0
    %v4490 = vadd.f32 %v4381, %v4489
    %4491 = vmatmul.bf16.gmra.mxu0 %v3895
    %v4492 = vpop.f32.mrf.mxu0
    %v4493 = vadd.f32 %v4384, %v4492
    %v4494 = vpop.f32.mrf.mxu0
    %v4495 = vadd.f32 %v4386, %v4494
    %4496 = vmatmul.bf16.gmra.mxu0 %v3899
    %v4497 = vpop.f32.mrf.mxu0
    %v4498 = vadd.f32 %v4389, %v4497
    %v4499 = vpop.f32.mrf.mxu0
    %v4500 = vadd.f32 %v4391, %v4499
    %4501 = vmatmul.bf16.gmra.mxu0 %v3903
    %v4502 = vpop.f32.mrf.mxu0
    %v4503 = vadd.f32 %v4394, %v4502
    %v4504 = vpop.f32.mrf.mxu0
    %v4505 = vadd.f32 %v4396, %v4504
    %4506 = vmatmul.bf16.gmra.mxu0 %v3907
    %v4507 = vpop.f32.mrf.mxu0
    %v4508 = vadd.f32 %v4399, %v4507
    %v4509 = vpop.f32.mrf.mxu0
    %v4510 = vadd.f32 %v4401, %v4509
    %4511 = vmatmul.bf16.gmra.mxu0 %v3911
    %v4512 = vpop.f32.mrf.mxu0
    %v4513 = vadd.f32 %v4404, %v4512
    %v4514 = vpop.f32.mrf.mxu0
    %v4515 = vadd.f32 %v4406, %v4514
    %4516 = vmatmul.bf16.gmra.mxu0 %v3915
    %v4517 = vpop.f32.mrf.mxu0
    %v4518 = vadd.f32 %v4409, %v4517
    %v4519 = vpop.f32.mrf.mxu0
    %v4520 = vadd.f32 %v4411, %v4519
    %4521 = vmatmul.bf16.gmra.mxu0 %v3919
    %v4522 = vpop.f32.mrf.mxu0
    %v4523 = vadd.f32 %v4414, %v4522
    %v4524 = vpop.f32.mrf.mxu0
    %v4525 = vadd.f32 %v4416, %v4524
    %4526 = vmatmul.bf16.gmra.mxu0 %v3923
    %v4527 = vpop.f32.mrf.mxu0
    %v4528 = vadd.f32 %v4419, %v4527
    %v4529 = vpop.f32.mrf.mxu0
    %v4530 = vadd.f32 %v4421, %v4529
    %4531 = vmatmul.bf16.gmra.mxu0 %v3927
    %v4532 = vpop.f32.mrf.mxu0
    %v4533 = vadd.f32 %v4424, %v4532
    %v4534 = vpop.f32.mrf.mxu0
    %v4535 = vadd.f32 %v4426, %v4534
    %4536 = vmatmul.bf16.gmra.mxu0 %v3931
    %v4537 = vpop.f32.mrf.mxu0
    %v4538 = vadd.f32 %v4429, %v4537
    %v4539 = vpop.f32.mrf.mxu0
    %v4540 = vadd.f32 %v4431, %v4539
    %4541 = vdwg.mxu0
    %4542 = vmatpush.bf16.msra.mxu0 %v4242
    %4543 = vmatpush.bf16.msra.mxu0 %v4240
    %4544 = vmatpush.bf16.msra.mxu0 %v4238
    %4545 = vmatpush.bf16.msra.mxu0 %v4236
    %4546 = vmatpush.bf16.msra.mxu0 %v4234
    %4547 = vmatpush.bf16.msra.mxu0 %v4232
    %4548 = vmatpush.bf16.msra.mxu0 %v4230
    %4549 = vmatpush.bf16.msra.mxu0 %v4228
    %4550 = vmatmul.bf16.gmra.mxu0 %v3856
    %v4551 = vpop.f32.mrf.mxu0
    %v4552 = vadd.f32 %v4443, %v4551
    %v4553 = vpop.f32.mrf.mxu0
    %v4554 = vadd.f32 %v4445, %v4553
    %4555 = vmatmul.bf16.gmra.mxu0 %v3860
    %v4556 = vpop.f32.mrf.mxu0
    %v4557 = vadd.f32 %v4448, %v4556
    %v4558 = vpop.f32.mrf.mxu0
    %v4559 = vadd.f32 %v4450, %v4558
    %4560 = vmatmul.bf16.gmra.mxu0 %v3864
    %v4561 = vpop.f32.mrf.mxu0
    %v4562 = vadd.f32 %v4453, %v4561
    %v4563 = vpop.f32.mrf.mxu0
    %v4564 = vadd.f32 %v4455, %v4563
    %4565 = vmatmul.bf16.gmra.mxu0 %v3868
    %v4566 = vpop.f32.mrf.mxu0
    %v4567 = vadd.f32 %v4458, %v4566
    %v4568 = vpop.f32.mrf.mxu0
    %v4569 = vadd.f32 %v4460, %v4568
    %4570 = vmatmul.bf16.gmra.mxu0 %v3872
    %v4571 = vpop.f32.mrf.mxu0
    %v4572 = vadd.f32 %v4463, %v4571
    %v4573 = vpop.f32.mrf.mxu0
    %v4574 = vadd.f32 %v4465, %v4573
    %4575 = vmatmul.bf16.gmra.mxu0 %v3876
    %v4576 = vpop.f32.mrf.mxu0
    %v4577 = vadd.f32 %v4468, %v4576
    %v4578 = vpop.f32.mrf.mxu0
    %v4579 = vadd.f32 %v4470, %v4578
    %4580 = vmatmul.bf16.gmra.mxu0 %v3880
    %v4581 = vpop.f32.mrf.mxu0
    %v4582 = vadd.f32 %v4473, %v4581
    %v4583 = vpop.f32.mrf.mxu0
    %v4584 = vadd.f32 %v4475, %v4583
    %4585 = vmatmul.bf16.gmra.mxu0 %v3884
    %v4586 = vpop.f32.mrf.mxu0
    %v4587 = vadd.f32 %v4478, %v4586
    %v4588 = vpop.f32.mrf.mxu0
    %v4589 = vadd.f32 %v4480, %v4588
    %4590 = vmatmul.bf16.gmra.mxu0 %v3888
    %v4591 = vpop.f32.mrf.mxu0
    %v4592 = vadd.f32 %v4483, %v4591
    %v4593 = vpop.f32.mrf.mxu0
    %v4594 = vadd.f32 %v4485, %v4593
    %4595 = vmatmul.bf16.gmra.mxu0 %v3892
    %v4596 = vpop.f32.mrf.mxu0
    %v4597 = vadd.f32 %v4488, %v4596
    %v4598 = vpop.f32.mrf.mxu0
    %v4599 = vadd.f32 %v4490, %v4598
    %4600 = vmatmul.bf16.gmra.mxu0 %v3896
    %v4601 = vpop.f32.mrf.mxu0
    %v4602 = vadd.f32 %v4493, %v4601
    %v4603 = vpop.f32.mrf.mxu0
    %v4604 = vadd.f32 %v4495, %v4603
    %4605 = vmatmul.bf16.gmra.mxu0 %v3900
    %v4606 = vpop.f32.mrf.mxu0
    %v4607 = vadd.f32 %v4498, %v4606
    %v4608 = vpop.f32.mrf.mxu0
    %v4609 = vadd.f32 %v4500, %v4608
    %4610 = vmatmul.bf16.gmra.mxu0 %v3904
    %v4611 = vpop.f32.mrf.mxu0
    %v4612 = vadd.f32 %v4503, %v4611
    %v4613 = vpop.f32.mrf.mxu0
    %v4614 = vadd.f32 %v4505, %v4613
    %4615 = vmatmul.bf16.gmra.mxu0 %v3908
    %v4616 = vpop.f32.mrf.mxu0
    %v4617 = vadd.f32 %v4508, %v4616
    %v4618 = vpop.f32.mrf.mxu0
    %v4619 = vadd.f32 %v4510, %v4618
    %4620 = vmatmul.bf16.gmra.mxu0 %v3912
    %v4621 = vpop.f32.mrf.mxu0
    %v4622 = vadd.f32 %v4513, %v4621
    %v4623 = vpop.f32.mrf.mxu0
    %v4624 = vadd.f32 %v4515, %v4623
    %4625 = vmatmul.bf16.gmra.mxu0 %v3916
    %v4626 = vpop.f32.mrf.mxu0
    %v4627 = vadd.f32 %v4518, %v4626
    %v4628 = vpop.f32.mrf.mxu0
    %v4629 = vadd.f32 %v4520, %v4628
    %4630 = vmatmul.bf16.gmra.mxu0 %v3920
    %v4631 = vpop.f32.mrf.mxu0
    %v4632 = vadd.f32 %v4523, %v4631
    %v4633 = vpop.f32.mrf.mxu0
    %v4634 = vadd.f32 %v4525, %v4633
    %4635 = vmatmul.bf16.gmra.mxu0 %v3924
    %v4636 = vpop.f32.mrf.mxu0
    %v4637 = vadd.f32 %v4528, %v4636
    %v4638 = vpop.f32.mrf.mxu0
    %v4639 = vadd.f32 %v4530, %v4638
    %4640 = vmatmul.bf16.gmra.mxu0 %v3928
    %v4641 = vpop.f32.mrf.mxu0
    %v4642 = vadd.f32 %v4533, %v4641
    %v4643 = vpop.f32.mrf.mxu0
    %v4644 = vadd.f32 %v4535, %v4643
    %4645 = vmatmul.bf16.gmra.mxu0 %v3932
    %v4646 = vpop.f32.mrf.mxu0
    %v4647 = vadd.f32 %v4538, %v4646
    %v4648 = vpop.f32.mrf.mxu0
    %v4649 = vadd.f32 %v4540, %v4648
    %4650 = vdwg.mxu0
    %4651 = vmatpush.bf16.msra.mxu0 %v4258
    %4652 = vmatpush.bf16.msra.mxu0 %v4256
    %4653 = vmatpush.bf16.msra.mxu0 %v4254
    %4654 = vmatpush.bf16.msra.mxu0 %v4252
    %4655 = vmatpush.bf16.msra.mxu0 %v4250
    %4656 = vmatpush.bf16.msra.mxu0 %v4248
    %4657 = vmatpush.bf16.msra.mxu0 %v4246
    %4658 = vmatpush.bf16.msra.mxu0 %v4244
    %4659 = vmatmul.bf16.gmra.mxu0 %v3857
    %v4660 = vpop.f32.mrf.mxu0
    %v4661 = vadd.f32 %v4552, %v4660
    %v4662 = vpop.f32.mrf.mxu0
    %v4663 = vadd.f32 %v4554, %v4662
    %4664 = vmatmul.bf16.gmra.mxu0 %v3861
    %v4665 = vpop.f32.mrf.mxu0
    %v4666 = vadd.f32 %v4557, %v4665
    %v4667 = vpop.f32.mrf.mxu0
    %v4668 = vadd.f32 %v4559, %v4667
    %4669 = vmatmul.bf16.gmra.mxu0 %v3865
    %v4670 = vpop.f32.mrf.mxu0
    %v4671 = vadd.f32 %v4562, %v4670
    %v4672 = vpop.f32.mrf.mxu0
    %v4673 = vadd.f32 %v4564, %v4672
    %4674 = vmatmul.bf16.gmra.mxu0 %v3869
    %v4675 = vpop.f32.mrf.mxu0
    %v4676 = vadd.f32 %v4567, %v4675
    %v4677 = vpop.f32.mrf.mxu0
    %v4678 = vadd.f32 %v4569, %v4677
    %4679 = vmatmul.bf16.gmra.mxu0 %v3873
    %v4680 = vpop.f32.mrf.mxu0
    %v4681 = vadd.f32 %v4572, %v4680
    %v4682 = vpop.f32.mrf.mxu0
    %v4683 = vadd.f32 %v4574, %v4682
    %4684 = vmatmul.bf16.gmra.mxu0 %v3877
    %v4685 = vpop.f32.mrf.mxu0
    %v4686 = vadd.f32 %v4577, %v4685
    %v4687 = vpop.f32.mrf.mxu0
    %v4688 = vadd.f32 %v4579, %v4687
    %4689 = vmatmul.bf16.gmra.mxu0 %v3881
    %v4690 = vpop.f32.mrf.mxu0
    %v4691 = vadd.f32 %v4582, %v4690
    %v4692 = vpop.f32.mrf.mxu0
    %v4693 = vadd.f32 %v4584, %v4692
    %4694 = vmatmul.bf16.gmra.mxu0 %v3885
    %v4695 = vpop.f32.mrf.mxu0
    %v4696 = vadd.f32 %v4587, %v4695
    %v4697 = vpop.f32.mrf.mxu0
    %v4698 = vadd.f32 %v4589, %v4697
    %4699 = vmatmul.bf16.gmra.mxu0 %v3889
    %v4700 = vpop.f32.mrf.mxu0
    %v4701 = vadd.f32 %v4592, %v4700
    %v4702 = vpop.f32.mrf.mxu0
    %v4703 = vadd.f32 %v4594, %v4702
    %4704 = vmatmul.bf16.gmra.mxu0 %v3893
    %v4705 = vpop.f32.mrf.mxu0
    %v4706 = vadd.f32 %v4597, %v4705
    %v4707 = vpop.f32.mrf.mxu0
    %v4708 = vadd.f32 %v4599, %v4707
    %4709 = vmatmul.bf16.gmra.mxu0 %v3897
    %v4710 = vpop.f32.mrf.mxu0
    %v4711 = vadd.f32 %v4602, %v4710
    %v4712 = vpop.f32.mrf.mxu0
    %v4713 = vadd.f32 %v4604, %v4712
    %4714 = vmatmul.bf16.gmra.mxu0 %v3901
    %v4715 = vpop.f32.mrf.mxu0
    %v4716 = vadd.f32 %v4607, %v4715
    %v4717 = vpop.f32.mrf.mxu0
    %v4718 = vadd.f32 %v4609, %v4717
    %4719 = vmatmul.bf16.gmra.mxu0 %v3905
    %v4720 = vpop.f32.mrf.mxu0
    %v4721 = vadd.f32 %v4612, %v4720
    %v4722 = vpop.f32.mrf.mxu0
    %v4723 = vadd.f32 %v4614, %v4722
    %4724 = vmatmul.bf16.gmra.mxu0 %v3909
    %v4725 = vpop.f32.mrf.mxu0
    %v4726 = vadd.f32 %v4617, %v4725
    %v4727 = vpop.f32.mrf.mxu0
    %v4728 = vadd.f32 %v4619, %v4727
    %4729 = vmatmul.bf16.gmra.mxu0 %v3913
    %v4730 = vpop.f32.mrf.mxu0
    %v4731 = vadd.f32 %v4622, %v4730
    %v4732 = vpop.f32.mrf.mxu0
    %v4733 = vadd.f32 %v4624, %v4732
    %4734 = vmatmul.bf16.gmra.mxu0 %v3917
    %v4735 = vpop.f32.mrf.mxu0
    %v4736 = vadd.f32 %v4627, %v4735
    %v4737 = vpop.f32.mrf.mxu0
    %v4738 = vadd.f32 %v4629, %v4737
    %4739 = vmatmul.bf16.gmra.mxu0 %v3921
    %v4740 = vpop.f32.mrf.mxu0
    %v4741 = vadd.f32 %v4632, %v4740
    %v4742 = vpop.f32.mrf.mxu0
    %v4743 = vadd.f32 %v4634, %v4742
    %4744 = vmatmul.bf16.gmra.mxu0 %v3925
    %v4745 = vpop.f32.mrf.mxu0
    %v4746 = vadd.f32 %v4637, %v4745
    %v4747 = vpop.f32.mrf.mxu0
    %v4748 = vadd.f32 %v4639, %v4747
    %4749 = vmatmul.bf16.gmra.mxu0 %v3929
    %v4750 = vpop.f32.mrf.mxu0
    %v4751 = vadd.f32 %v4642, %v4750
    %v4752 = vpop.f32.mrf.mxu0
    %v4753 = vadd.f32 %v4644, %v4752
    %4754 = vmatmul.bf16.gmra.mxu0 %v3933
    %v4755 = vpop.f32.mrf.mxu0
    %v4756 = vadd.f32 %v4647, %v4755
    %v4757 = vpop.f32.mrf.mxu0
    %v4758 = vadd.f32 %v4649, %v4757
    %4759 = vdwg.mxu0
    %4760 = vmatpush.bf16.msra.mxu0 %v4211
    %4761 = vmatpush.bf16.msra.mxu0 %v4209
    %4762 = vmatpush.bf16.msra.mxu0 %v4207
    %4763 = vmatpush.bf16.msra.mxu0 %v4205
    %4764 = vmatpush.bf16.msra.mxu0 %v4203
    %4765 = vmatpush.bf16.msra.mxu0 %v4201
    %4766 = vmatpush.bf16.msra.mxu0 %v4199
    %4767 = vmatpush.bf16.msra.mxu0 %v4197
    %4768 = vmatmul.bf16.gmra.mxu0 %v3854
    %v4769 = vpop.f32.mrf.mxu0
    %v4770 = vadd.f32 %v4001, %v4769
    %v4771 = vpop.f32.mrf.mxu0
    %v4772 = vadd.f32 %v4001, %v4771
    %4773 = vmatmul.bf16.gmra.mxu0 %v3858
    %v4774 = vpop.f32.mrf.mxu0
    %v4775 = vadd.f32 %v4001, %v4774
    %v4776 = vpop.f32.mrf.mxu0
    %v4777 = vadd.f32 %v4001, %v4776
    %4778 = vmatmul.bf16.gmra.mxu0 %v3862
    %v4779 = vpop.f32.mrf.mxu0
    %v4780 = vadd.f32 %v4001, %v4779
    %v4781 = vpop.f32.mrf.mxu0
    %v4782 = vadd.f32 %v4001, %v4781
    %4783 = vmatmul.bf16.gmra.mxu0 %v3866
    %v4784 = vpop.f32.mrf.mxu0
    %v4785 = vadd.f32 %v4001, %v4784
    %v4786 = vpop.f32.mrf.mxu0
    %v4787 = vadd.f32 %v4001, %v4786
    %4788 = vmatmul.bf16.gmra.mxu0 %v3870
    %v4789 = vpop.f32.mrf.mxu0
    %v4790 = vadd.f32 %v4001, %v4789
    %v4791 = vpop.f32.mrf.mxu0
    %v4792 = vadd.f32 %v4001, %v4791
    %4793 = vmatmul.bf16.gmra.mxu0 %v3874
    %v4794 = vpop.f32.mrf.mxu0
    %v4795 = vadd.f32 %v4001, %v4794
    %v4796 = vpop.f32.mrf.mxu0
    %v4797 = vadd.f32 %v4001, %v4796
    %4798 = vmatmul.bf16.gmra.mxu0 %v3878
    %v4799 = vpop.f32.mrf.mxu0
    %v4800 = vadd.f32 %v4001, %v4799
    %v4801 = vpop.f32.mrf.mxu0
    %v4802 = vadd.f32 %v4001, %v4801
    %4803 = vmatmul.bf16.gmra.mxu0 %v3882
    %v4804 = vpop.f32.mrf.mxu0
    %v4805 = vadd.f32 %v4001, %v4804
    %v4806 = vpop.f32.mrf.mxu0
    %v4807 = vadd.f32 %v4001, %v4806
    %4808 = vmatmul.bf16.gmra.mxu0 %v3886
    %v4809 = vpop.f32.mrf.mxu0
    %v4810 = vadd.f32 %v4001, %v4809
    %v4811 = vpop.f32.mrf.mxu0
    %v4812 = vadd.f32 %v4001, %v4811
    %4813 = vmatmul.bf16.gmra.mxu0 %v3890
    %v4814 = vpop.f32.mrf.mxu0
    %v4815 = vadd.f32 %v4001, %v4814
    %v4816 = vpop.f32.mrf.mxu0
    %v4817 = vadd.f32 %v4001, %v4816
    %4818 = vmatmul.bf16.gmra.mxu0 %v3894
    %v4819 = vpop.f32.mrf.mxu0
    %v4820 = vadd.f32 %v4001, %v4819
    %v4821 = vpop.f32.mrf.mxu0
    %v4822 = vadd.f32 %v4001, %v4821
    %4823 = vmatmul.bf16.gmra.mxu0 %v3898
    %v4824 = vpop.f32.mrf.mxu0
    %v4825 = vadd.f32 %v4001, %v4824
    %v4826 = vpop.f32.mrf.mxu0
    %v4827 = vadd.f32 %v4001, %v4826
    %4828 = vmatmul.bf16.gmra.mxu0 %v3902
    %v4829 = vpop.f32.mrf.mxu0
    %v4830 = vadd.f32 %v4001, %v4829
    %v4831 = vpop.f32.mrf.mxu0
    %v4832 = vadd.f32 %v4001, %v4831
    %4833 = vmatmul.bf16.gmra.mxu0 %v3906
    %v4834 = vpop.f32.mrf.mxu0
    %v4835 = vadd.f32 %v4001, %v4834
    %v4836 = vpop.f32.mrf.mxu0
    %v4837 = vadd.f32 %v4001, %v4836
    %4838 = vmatmul.bf16.gmra.mxu0 %v3910
    %v4839 = vpop.f32.mrf.mxu0
    %v4840 = vadd.f32 %v4001, %v4839
    %v4841 = vpop.f32.mrf.mxu0
    %v4842 = vadd.f32 %v4001, %v4841
    %4843 = vmatmul.bf16.gmra.mxu0 %v3914
    %v4844 = vpop.f32.mrf.mxu0
    %v4845 = vadd.f32 %v4001, %v4844
    %v4846 = vpop.f32.mrf.mxu0
    %v4847 = vadd.f32 %v4001, %v4846
    %4848 = vmatmul.bf16.gmra.mxu0 %v3918
    %v4849 = vpop.f32.mrf.mxu0
    %v4850 = vadd.f32 %v4001, %v4849
    %v4851 = vpop.f32.mrf.mxu0
    %v4852 = vadd.f32 %v4001, %v4851
    %4853 = vmatmul.bf16.gmra.mxu0 %v3922
    %v4854 = vpop.f32.mrf.mxu0
    %v4855 = vadd.f32 %v4001, %v4854
    %v4856 = vpop.f32.mrf.mxu0
    %v4857 = vadd.f32 %v4001, %v4856
    %4858 = vmatmul.bf16.gmra.mxu0 %v3926
    %v4859 = vpop.f32.mrf.mxu0
    %v4860 = vadd.f32 %v4001, %v4859
    %v4861 = vpop.f32.mrf.mxu0
    %v4862 = vadd.f32 %v4001, %v4861
    %4863 = vmatmul.bf16.gmra.mxu0 %v3930
    %v4864 = vpop.f32.mrf.mxu0
    %v4865 = vadd.f32 %v4001, %v4864
    %v4866 = vpop.f32.mrf.mxu0
    %v4867 = vadd.f32 %v4001, %v4866
    %4868 = vdwg.mxu0
    %4869 = vmatpush.bf16.msra.mxu0 %v4227
    %4870 = vmatpush.bf16.msra.mxu0 %v4225
    %4871 = vmatpush.bf16.msra.mxu0 %v4223
    %4872 = vmatpush.bf16.msra.mxu0 %v4221
    %4873 = vmatpush.bf16.msra.mxu0 %v4219
    %4874 = vmatpush.bf16.msra.mxu0 %v4217
    %4875 = vmatpush.bf16.msra.mxu0 %v4215
    %4876 = vmatpush.bf16.msra.mxu0 %v4213
    %4877 = vmatmul.bf16.gmra.mxu0 %v3855
    %v4878 = vpop.f32.mrf.mxu0
    %v4879 = vadd.f32 %v4770, %v4878
    %v4880 = vpop.f32.mrf.mxu0
    %v4881 = vadd.f32 %v4772, %v4880
    %4882 = vmatmul.bf16.gmra.mxu0 %v3859
    %v4883 = vpop.f32.mrf.mxu0
    %v4884 = vadd.f32 %v4775, %v4883
    %v4885 = vpop.f32.mrf.mxu0
    %v4886 = vadd.f32 %v4777, %v4885
    %4887 = vmatmul.bf16.gmra.mxu0 %v3863
    %v4888 = vpop.f32.mrf.mxu0
    %v4889 = vadd.f32 %v4780, %v4888
    %v4890 = vpop.f32.mrf.mxu0
    %v4891 = vadd.f32 %v4782, %v4890
    %4892 = vmatmul.bf16.gmra.mxu0 %v3867
    %v4893 = vpop.f32.mrf.mxu0
    %v4894 = vadd.f32 %v4785, %v4893
    %v4895 = vpop.f32.mrf.mxu0
    %v4896 = vadd.f32 %v4787, %v4895
    %4897 = vmatmul.bf16.gmra.mxu0 %v3871
    %v4898 = vpop.f32.mrf.mxu0
    %v4899 = vadd.f32 %v4790, %v4898
    %v4900 = vpop.f32.mrf.mxu0
    %v4901 = vadd.f32 %v4792, %v4900
    %4902 = vmatmul.bf16.gmra.mxu0 %v3875
    %v4903 = vpop.f32.mrf.mxu0
    %v4904 = vadd.f32 %v4795, %v4903
    %v4905 = vpop.f32.mrf.mxu0
    %v4906 = vadd.f32 %v4797, %v4905
    %4907 = vmatmul.bf16.gmra.mxu0 %v3879
    %v4908 = vpop.f32.mrf.mxu0
    %v4909 = vadd.f32 %v4800, %v4908
    %v4910 = vpop.f32.mrf.mxu0
    %v4911 = vadd.f32 %v4802, %v4910
    %4912 = vmatmul.bf16.gmra.mxu0 %v3883
    %v4913 = vpop.f32.mrf.mxu0
    %v4914 = vadd.f32 %v4805, %v4913
    %v4915 = vpop.f32.mrf.mxu0
    %v4916 = vadd.f32 %v4807, %v4915
    %4917 = vmatmul.bf16.gmra.mxu0 %v3887
    %v4918 = vpop.f32.mrf.mxu0
    %v4919 = vadd.f32 %v4810, %v4918
    %v4920 = vpop.f32.mrf.mxu0
    %v4921 = vadd.f32 %v4812, %v4920
    %4922 = vmatmul.bf16.gmra.mxu0 %v3891
    %v4923 = vpop.f32.mrf.mxu0
    %v4924 = vadd.f32 %v4815, %v4923
    %v4925 = vpop.f32.mrf.mxu0
    %v4926 = vadd.f32 %v4817, %v4925
    %4927 = vmatmul.bf16.gmra.mxu0 %v3895
    %v4928 = vpop.f32.mrf.mxu0
    %v4929 = vadd.f32 %v4820, %v4928
    %v4930 = vpop.f32.mrf.mxu0
    %v4931 = vadd.f32 %v4822, %v4930
    %4932 = vmatmul.bf16.gmra.mxu0 %v3899
    %v4933 = vpop.f32.mrf.mxu0
    %v4934 = vadd.f32 %v4825, %v4933
    %v4935 = vpop.f32.mrf.mxu0
    %v4936 = vadd.f32 %v4827, %v4935
    %4937 = vmatmul.bf16.gmra.mxu0 %v3903
    %v4938 = vpop.f32.mrf.mxu0
    %v4939 = vadd.f32 %v4830, %v4938
    %v4940 = vpop.f32.mrf.mxu0
    %v4941 = vadd.f32 %v4832, %v4940
    %4942 = vmatmul.bf16.gmra.mxu0 %v3907
    %v4943 = vpop.f32.mrf.mxu0
    %v4944 = vadd.f32 %v4835, %v4943
    %v4945 = vpop.f32.mrf.mxu0
    %v4946 = vadd.f32 %v4837, %v4945
    %4947 = vmatmul.bf16.gmra.mxu0 %v3911
    %v4948 = vpop.f32.mrf.mxu0
    %v4949 = vadd.f32 %v4840, %v4948
    %v4950 = vpop.f32.mrf.mxu0
    %v4951 = vadd.f32 %v4842, %v4950
    %4952 = vmatmul.bf16.gmra.mxu0 %v3915
    %v4953 = vpop.f32.mrf.mxu0
    %v4954 = vadd.f32 %v4845, %v4953
    %v4955 = vpop.f32.mrf.mxu0
    %v4956 = vadd.f32 %v4847, %v4955
    %4957 = vmatmul.bf16.gmra.mxu0 %v3919
    %v4958 = vpop.f32.mrf.mxu0
    %v4959 = vadd.f32 %v4850, %v4958
    %v4960 = vpop.f32.mrf.mxu0
    %v4961 = vadd.f32 %v4852, %v4960
    %4962 = vmatmul.bf16.gmra.mxu0 %v3923
    %v4963 = vpop.f32.mrf.mxu0
    %v4964 = vadd.f32 %v4855, %v4963
    %v4965 = vpop.f32.mrf.mxu0
    %v4966 = vadd.f32 %v4857, %v4965
    %4967 = vmatmul.bf16.gmra.mxu0 %v3927
    %v4968 = vpop.f32.mrf.mxu0
    %v4969 = vadd.f32 %v4860, %v4968
    %v4970 = vpop.f32.mrf.mxu0
    %v4971 = vadd.f32 %v4862, %v4970
    %4972 = vmatmul.bf16.gmra.mxu0 %v3931
    %v4973 = vpop.f32.mrf.mxu0
    %v4974 = vadd.f32 %v4865, %v4973
    %v4975 = vpop.f32.mrf.mxu0
    %v4976 = vadd.f32 %v4867, %v4975
    %4977 = vdwg.mxu0
    %4978 = vmatpush.bf16.msra.mxu0 %v4243
    %4979 = vmatpush.bf16.msra.mxu0 %v4241
    %4980 = vmatpush.bf16.msra.mxu0 %v4239
    %4981 = vmatpush.bf16.msra.mxu0 %v4237
    %4982 = vmatpush.bf16.msra.mxu0 %v4235
    %4983 = vmatpush.bf16.msra.mxu0 %v4233
    %4984 = vmatpush.bf16.msra.mxu0 %v4231
    %4985 = vmatpush.bf16.msra.mxu0 %v4229
    %4986 = vmatmul.bf16.gmra.mxu0 %v3856
    %v4987 = vpop.f32.mrf.mxu0
    %v4988 = vadd.f32 %v4879, %v4987
    %v4989 = vpop.f32.mrf.mxu0
    %v4990 = vadd.f32 %v4881, %v4989
    %4991 = vmatmul.bf16.gmra.mxu0 %v3860
    %v4992 = vpop.f32.mrf.mxu0
    %v4993 = vadd.f32 %v4884, %v4992
    %v4994 = vpop.f32.mrf.mxu0
    %v4995 = vadd.f32 %v4886, %v4994
    %4996 = vmatmul.bf16.gmra.mxu0 %v3864
    %v4997 = vpop.f32.mrf.mxu0
    %v4998 = vadd.f32 %v4889, %v4997
    %v4999 = vpop.f32.mrf.mxu0
    %v5000 = vadd.f32 %v4891, %v4999
    %5001 = vmatmul.bf16.gmra.mxu0 %v3868
    %v5002 = vpop.f32.mrf.mxu0
    %v5003 = vadd.f32 %v4894, %v5002
    %v5004 = vpop.f32.mrf.mxu0
    %v5005 = vadd.f32 %v4896, %v5004
    %5006 = vmatmul.bf16.gmra.mxu0 %v3872
    %v5007 = vpop.f32.mrf.mxu0
    %v5008 = vadd.f32 %v4899, %v5007
    %v5009 = vpop.f32.mrf.mxu0
    %v5010 = vadd.f32 %v4901, %v5009
    %5011 = vmatmul.bf16.gmra.mxu0 %v3876
    %v5012 = vpop.f32.mrf.mxu0
    %v5013 = vadd.f32 %v4904, %v5012
    %v5014 = vpop.f32.mrf.mxu0
    %v5015 = vadd.f32 %v4906, %v5014
    %5016 = vmatmul.bf16.gmra.mxu0 %v3880
    %v5017 = vpop.f32.mrf.mxu0
    %v5018 = vadd.f32 %v4909, %v5017
    %v5019 = vpop.f32.mrf.mxu0
    %v5020 = vadd.f32 %v4911, %v5019
    %5021 = vmatmul.bf16.gmra.mxu0 %v3884
    %v5022 = vpop.f32.mrf.mxu0
    %v5023 = vadd.f32 %v4914, %v5022
    %v5024 = vpop.f32.mrf.mxu0
    %v5025 = vadd.f32 %v4916, %v5024
    %5026 = vmatmul.bf16.gmra.mxu0 %v3888
    %v5027 = vpop.f32.mrf.mxu0
    %v5028 = vadd.f32 %v4919, %v5027
    %v5029 = vpop.f32.mrf.mxu0
    %v5030 = vadd.f32 %v4921, %v5029
    %5031 = vmatmul.bf16.gmra.mxu0 %v3892
    %v5032 = vpop.f32.mrf.mxu0
    %v5033 = vadd.f32 %v4924, %v5032
    %v5034 = vpop.f32.mrf.mxu0
    %v5035 = vadd.f32 %v4926, %v5034
    %5036 = vmatmul.bf16.gmra.mxu0 %v3896
    %v5037 = vpop.f32.mrf.mxu0
    %v5038 = vadd.f32 %v4929, %v5037
    %v5039 = vpop.f32.mrf.mxu0
    %v5040 = vadd.f32 %v4931, %v5039
    %5041 = vmatmul.bf16.gmra.mxu0 %v3900
    %v5042 = vpop.f32.mrf.mxu0
    %v5043 = vadd.f32 %v4934, %v5042
    %v5044 = vpop.f32.mrf.mxu0
    %v5045 = vadd.f32 %v4936, %v5044
    %5046 = vmatmul.bf16.gmra.mxu0 %v3904
    %v5047 = vpop.f32.mrf.mxu0
    %v5048 = vadd.f32 %v4939, %v5047
    %v5049 = vpop.f32.mrf.mxu0
    %v5050 = vadd.f32 %v4941, %v5049
    %5051 = vmatmul.bf16.gmra.mxu0 %v3908
    %v5052 = vpop.f32.mrf.mxu0
    %v5053 = vadd.f32 %v4944, %v5052
    %v5054 = vpop.f32.mrf.mxu0
    %v5055 = vadd.f32 %v4946, %v5054
    %5056 = vmatmul.bf16.gmra.mxu0 %v3912
    %v5057 = vpop.f32.mrf.mxu0
    %v5058 = vadd.f32 %v4949, %v5057
    %v5059 = vpop.f32.mrf.mxu0
    %v5060 = vadd.f32 %v4951, %v5059
    %5061 = vmatmul.bf16.gmra.mxu0 %v3916
    %v5062 = vpop.f32.mrf.mxu0
    %v5063 = vadd.f32 %v4954, %v5062
    %v5064 = vpop.f32.mrf.mxu0
    %v5065 = vadd.f32 %v4956, %v5064
    %5066 = vmatmul.bf16.gmra.mxu0 %v3920
    %v5067 = vpop.f32.mrf.mxu0
    %v5068 = vadd.f32 %v4959, %v5067
    %v5069 = vpop.f32.mrf.mxu0
    %v5070 = vadd.f32 %v4961, %v5069
    %5071 = vmatmul.bf16.gmra.mxu0 %v3924
    %v5072 = vpop.f32.mrf.mxu0
    %v5073 = vadd.f32 %v4964, %v5072
    %v5074 = vpop.f32.mrf.mxu0
    %v5075 = vadd.f32 %v4966, %v5074
    %5076 = vmatmul.bf16.gmra.mxu0 %v3928
    %v5077 = vpop.f32.mrf.mxu0
    %v5078 = vadd.f32 %v4969, %v5077
    %v5079 = vpop.f32.mrf.mxu0
    %v5080 = vadd.f32 %v4971, %v5079
    %5081 = vmatmul.bf16.gmra.mxu0 %v3932
    %v5082 = vpop.f32.mrf.mxu0
    %v5083 = vadd.f32 %v4974, %v5082
    %v5084 = vpop.f32.mrf.mxu0
    %v5085 = vadd.f32 %v4976, %v5084
    %5086 = vdwg.mxu0
    %5087 = vmatpush.bf16.msra.mxu0 %v4259
    %5088 = vmatpush.bf16.msra.mxu0 %v4257
    %5089 = vmatpush.bf16.msra.mxu0 %v4255
    %5090 = vmatpush.bf16.msra.mxu0 %v4253
    %5091 = vmatpush.bf16.msra.mxu0 %v4251
    %5092 = vmatpush.bf16.msra.mxu0 %v4249
    %5093 = vmatpush.bf16.msra.mxu0 %v4247
    %5094 = vmatpush.bf16.msra.mxu0 %v4245
    %5095 = vmatmul.bf16.gmra.mxu0 %v3857
    %v5096 = vpop.f32.mrf.mxu0
    %v5097 = vadd.f32 %v4988, %v5096
    %v5098 = vpop.f32.mrf.mxu0
    %v5099 = vadd.f32 %v4990, %v5098
    %5100 = vmatmul.bf16.gmra.mxu0 %v3861
    %v5101 = vpop.f32.mrf.mxu0
    %v5102 = vadd.f32 %v4993, %v5101
    %v5103 = vpop.f32.mrf.mxu0
    %v5104 = vadd.f32 %v4995, %v5103
    %5105 = vmatmul.bf16.gmra.mxu0 %v3865
    %v5106 = vpop.f32.mrf.mxu0
    %v5107 = vadd.f32 %v4998, %v5106
    %v5108 = vpop.f32.mrf.mxu0
    %v5109 = vadd.f32 %v5000, %v5108
    %5110 = vmatmul.bf16.gmra.mxu0 %v3869
    %v5111 = vpop.f32.mrf.mxu0
    %v5112 = vadd.f32 %v5003, %v5111
    %v5113 = vpop.f32.mrf.mxu0
    %v5114 = vadd.f32 %v5005, %v5113
    %5115 = vmatmul.bf16.gmra.mxu0 %v3873
    %v5116 = vpop.f32.mrf.mxu0
    %v5117 = vadd.f32 %v5008, %v5116
    %v5118 = vpop.f32.mrf.mxu0
    %v5119 = vadd.f32 %v5010, %v5118
    %5120 = vmatmul.bf16.gmra.mxu0 %v3877
    %v5121 = vpop.f32.mrf.mxu0
    %v5122 = vadd.f32 %v5013, %v5121
    %v5123 = vpop.f32.mrf.mxu0
    %v5124 = vadd.f32 %v5015, %v5123
    %5125 = vmatmul.bf16.gmra.mxu0 %v3881
    %v5126 = vpop.f32.mrf.mxu0
    %v5127 = vadd.f32 %v5018, %v5126
    %v5128 = vpop.f32.mrf.mxu0
    %v5129 = vadd.f32 %v5020, %v5128
    %5130 = vmatmul.bf16.gmra.mxu0 %v3885
    %v5131 = vpop.f32.mrf.mxu0
    %v5132 = vadd.f32 %v5023, %v5131
    %v5133 = vpop.f32.mrf.mxu0
    %v5134 = vadd.f32 %v5025, %v5133
    %5135 = vmatmul.bf16.gmra.mxu0 %v3889
    %v5136 = vpop.f32.mrf.mxu0
    %v5137 = vadd.f32 %v5028, %v5136
    %v5138 = vpop.f32.mrf.mxu0
    %v5139 = vadd.f32 %v5030, %v5138
    %5140 = vmatmul.bf16.gmra.mxu0 %v3893
    %v5141 = vpop.f32.mrf.mxu0
    %v5142 = vadd.f32 %v5033, %v5141
    %v5143 = vpop.f32.mrf.mxu0
    %v5144 = vadd.f32 %v5035, %v5143
    %5145 = vmatmul.bf16.gmra.mxu0 %v3897
    %v5146 = vpop.f32.mrf.mxu0
    %v5147 = vadd.f32 %v5038, %v5146
    %v5148 = vpop.f32.mrf.mxu0
    %v5149 = vadd.f32 %v5040, %v5148
    %5150 = vmatmul.bf16.gmra.mxu0 %v3901
    %v5151 = vpop.f32.mrf.mxu0
    %v5152 = vadd.f32 %v5043, %v5151
    %v5153 = vpop.f32.mrf.mxu0
    %v5154 = vadd.f32 %v5045, %v5153
    %5155 = vmatmul.bf16.gmra.mxu0 %v3905
    %v5156 = vpop.f32.mrf.mxu0
    %v5157 = vadd.f32 %v5048, %v5156
    %v5158 = vpop.f32.mrf.mxu0
    %v5159 = vadd.f32 %v5050, %v5158
    %5160 = vmatmul.bf16.gmra.mxu0 %v3909
    %v5161 = vpop.f32.mrf.mxu0
    %v5162 = vadd.f32 %v5053, %v5161
    %v5163 = vpop.f32.mrf.mxu0
    %v5164 = vadd.f32 %v5055, %v5163
    %5165 = vmatmul.bf16.gmra.mxu0 %v3913
    %v5166 = vpop.f32.mrf.mxu0
    %v5167 = vadd.f32 %v5058, %v5166
    %v5168 = vpop.f32.mrf.mxu0
    %v5169 = vadd.f32 %v5060, %v5168
    %5170 = vmatmul.bf16.gmra.mxu0 %v3917
    %v5171 = vpop.f32.mrf.mxu0
    %v5172 = vadd.f32 %v5063, %v5171
    %v5173 = vpop.f32.mrf.mxu0
    %v5174 = vadd.f32 %v5065, %v5173
    %5175 = vmatmul.bf16.gmra.mxu0 %v3921
    %v5176 = vpop.f32.mrf.mxu0
    %v5177 = vadd.f32 %v5068, %v5176
    %v5178 = vpop.f32.mrf.mxu0
    %v5179 = vadd.f32 %v5070, %v5178
    %5180 = vmatmul.bf16.gmra.mxu0 %v3925
    %v5181 = vpop.f32.mrf.mxu0
    %v5182 = vadd.f32 %v5073, %v5181
    %v5183 = vpop.f32.mrf.mxu0
    %v5184 = vadd.f32 %v5075, %v5183
    %5185 = vmatmul.bf16.gmra.mxu0 %v3929
    %v5186 = vpop.f32.mrf.mxu0
    %v5187 = vadd.f32 %v5078, %v5186
    %v5188 = vpop.f32.mrf.mxu0
    %v5189 = vadd.f32 %v5080, %v5188
    %5190 = vmatmul.bf16.gmra.mxu0 %v3933
    %v5191 = vpop.f32.mrf.mxu0
    %v5192 = vadd.f32 %v5083, %v5191
    %v5193 = vpop.f32.mrf.mxu0
    %v5194 = vadd.f32 %v5085, %v5193
    %5195 = vdwg.mxu0
    %5196 = vst [vmem:[#allocation2] sm:$0xff] %v4661
    %5197 = vst [vmem:[#allocation2 + $0x8] sm:$0xff] %v5097
    %5198 = vst [vmem:[#allocation2 + $0x10] sm:$0xff] %v4663
    %5199 = vst [vmem:[#allocation2 + $0x18] sm:$0xff] %v5099
    %5200 = vst [vmem:[#allocation2 + $0x20] sm:$0xff] %v4666
    %5201 = vst [vmem:[#allocation2 + $0x28] sm:$0xff] %v5102
    %5202 = vst [vmem:[#allocation2 + $0x30] sm:$0xff] %v4668
    %5203 = vst [vmem:[#allocation2 + $0x38] sm:$0xff] %v5104
    %5204 = vst [vmem:[#allocation2 + $0x40] sm:$0xff] %v4671
    %5205 = vst [vmem:[#allocation2 + $0x48] sm:$0xff] %v5107
    %5206 = vst [vmem:[#allocation2 + $0x50] sm:$0xff] %v4673
    %5207 = vst [vmem:[#allocation2 + $0x58] sm:$0xff] %v5109
    %5208 = vst [vmem:[#allocation2 + $0x60] sm:$0xff] %v4676
    %5209 = vst [vmem:[#allocation2 + $0x68] sm:$0xff] %v5112
    %5210 = vst [vmem:[#allocation2 + $0x70] sm:$0xff] %v4678
    %5211 = vst [vmem:[#allocation2 + $0x78] sm:$0xff] %v5114
    %5212 = vst [vmem:[#allocation2 + $0x80] sm:$0xff] %v4681
    %5213 = vst [vmem:[#allocation2 + $0x88] sm:$0xff] %v5117
    %5214 = vst [vmem:[#allocation2 + $0x90] sm:$0xff] %v4683
    %5215 = vst [vmem:[#allocation2 + $0x98] sm:$0xff] %v5119
    %5216 = vst [vmem:[#allocation2 + $0xa0] sm:$0xff] %v4686
    %5217 = vst [vmem:[#allocation2 + $0xa8] sm:$0xff] %v5122
    %5218 = vst [vmem:[#allocation2 + $0xb0] sm:$0xff] %v4688
    %5219 = vst [vmem:[#allocation2 + $0xb8] sm:$0xff] %v5124
    %5220 = vst [vmem:[#allocation2 + $0xc0] sm:$0xff] %v4691
    %5221 = vst [vmem:[#allocation2 + $0xc8] sm:$0xff] %v5127
    %5222 = vst [vmem:[#allocation2 + $0xd0] sm:$0xff] %v4693
    %5223 = vst [vmem:[#allocation2 + $0xd8] sm:$0xff] %v5129
    %5224 = vst [vmem:[#allocation2 + $0xe0] sm:$0xff] %v4696
    %5225 = vst [vmem:[#allocation2 + $0xe8] sm:$0xff] %v5132
    %5226 = vst [vmem:[#allocation2 + $0xf0] sm:$0xff] %v4698
    %5227 = vst [vmem:[#allocation2 + $0xf8] sm:$0xff] %v5134
    %5228 = vst [vmem:[#allocation2 + $0x100] sm:$0xff] %v4701
    %5229 = vst [vmem:[#allocation2 + $0x108] sm:$0xff] %v5137
    %5230 = vst [vmem:[#allocation2 + $0x110] sm:$0xff] %v4703
    %5231 = vst [vmem:[#allocation2 + $0x118] sm:$0xff] %v5139
    %5232 = vst [vmem:[#allocation2 + $0x120] sm:$0xff] %v4706
    %5233 = vst [vmem:[#allocation2 + $0x128] sm:$0xff] %v5142
    %5234 = vst [vmem:[#allocation2 + $0x130] sm:$0xff] %v4708
    %5235 = vst [vmem:[#allocation2 + $0x138] sm:$0xff] %v5144
    %5236 = vst [vmem:[#allocation2 + $0x140] sm:$0xff] %v4711
    %5237 = vst [vmem:[#allocation2 + $0x148] sm:$0xff] %v5147
    %5238 = vst [vmem:[#allocation2 + $0x150] sm:$0xff] %v4713
    %5239 = vst [vmem:[#allocation2 + $0x158] sm:$0xff] %v5149
    %5240 = vst [vmem:[#allocation2 + $0x160] sm:$0xff] %v4716
    %5241 = vst [vmem:[#allocation2 + $0x168] sm:$0xff] %v5152
    %5242 = vst [vmem:[#allocation2 + $0x170] sm:$0xff] %v4718
    %5243 = vst [vmem:[#allocation2 + $0x178] sm:$0xff] %v5154
    %5244 = vst [vmem:[#allocation2 + $0x180] sm:$0xff] %v4721
    %5245 = vst [vmem:[#allocation2 + $0x188] sm:$0xff] %v5157
    %5246 = vst [vmem:[#allocation2 + $0x190] sm:$0xff] %v4723
    %5247 = vst [vmem:[#allocation2 + $0x198] sm:$0xff] %v5159
    %5248 = vst [vmem:[#allocation2 + $0x1a0] sm:$0xff] %v4726
    %5249 = vst [vmem:[#allocation2 + $0x1a8] sm:$0xff] %v5162
    %5250 = vst [vmem:[#allocation2 + $0x1b0] sm:$0xff] %v4728
    %5251 = vst [vmem:[#allocation2 + $0x1b8] sm:$0xff] %v5164
    %5252 = vst [vmem:[#allocation2 + $0x1c0] sm:$0xff] %v4731
    %5253 = vst [vmem:[#allocation2 + $0x1c8] sm:$0xff] %v5167
    %5254 = vst [vmem:[#allocation2 + $0x1d0] sm:$0xff] %v4733
    %5255 = vst [vmem:[#allocation2 + $0x1d8] sm:$0xff] %v5169
    %5256 = vst [vmem:[#allocation2 + $0x1e0] sm:$0xff] %v4736
    %5257 = vst [vmem:[#allocation2 + $0x1e8] sm:$0xff] %v5172
    %5258 = vst [vmem:[#allocation2 + $0x1f0] sm:$0xff] %v4738
    %5259 = vst [vmem:[#allocation2 + $0x1f8] sm:$0xff] %v5174
    %5260 = vst [vmem:[#allocation2 + $0x200] sm:$0xff] %v4741
    %5261 = vst [vmem:[#allocation2 + $0x208] sm:$0xff] %v5177
    %5262 = vst [vmem:[#allocation2 + $0x210] sm:$0xff] %v4743
    %5263 = vst [vmem:[#allocation2 + $0x218] sm:$0xff] %v5179
    %5264 = vst [vmem:[#allocation2 + $0x220] sm:$0xff] %v4746
    %5265 = vst [vmem:[#allocation2 + $0x228] sm:$0xff] %v5182
    %5266 = vst [vmem:[#allocation2 + $0x230] sm:$0xff] %v4748
    %5267 = vst [vmem:[#allocation2 + $0x238] sm:$0xff] %v5184
    %5268 = vst [vmem:[#allocation2 + $0x240] sm:$0xff] %v4751
    %5269 = vst [vmem:[#allocation2 + $0x248] sm:$0xff] %v5187
    %5270 = vst [vmem:[#allocation2 + $0x250] sm:$0xff] %v4753
    %5271 = vst [vmem:[#allocation2 + $0x258] sm:$0xff] %v5189
    %5272 = vst [vmem:[#allocation2 + $0x260] sm:$0xff] %v4756
    %5273 = vst [vmem:[#allocation2 + $0x268] sm:$0xff] %v5192
    %5274 = vst [vmem:[#allocation2 + $0x270] sm:$0xff] %v4758
    %5275 = vst [vmem:[#allocation2 + $0x278] sm:$0xff] %v5194
    // Predicated region
    $region22: #{tpu_custom_call.1} parent=1 // pred_check
      _
    $region23: #{tpu_custom_call.1} parent=1 // pred_check_branch
      %5277 = sbr.rel (0) target = $region25
    $region24: #{tpu_custom_call.1} parent=1 // pred_region
      %5279 = vsyncadd [#allocation3], 0
      %s5280 = sshll.u32 [#allocation2], 4
      %s5281 = int_to_ptr.vmem [resolvable:$true] %s5280
      %s5282 = sshll.u32 %s5, 4
      %s5283 = int_to_ptr.hbm [resolvable:$true] %s5282
      %5288 = dma.vmem_to_hbm [thread:$0]  %s5281, 10240, %s5283, [#allocation3], 256, 256, 16
    $region25: #{tpu_custom_call.1} parent=1 // pred_fallthru
      _
    // Predicated region
    $region26: #{tpu_custom_call.1} parent=1 // pred_check
      _
    $region27: #{tpu_custom_call.1} parent=1 // pred_check_branch
      %5290 = sbr.rel (0) target = $region29
    $region28: #{tpu_custom_call.1} parent=1 // pred_region
      %5292 = dma.done [#allocation3], 10240
    $region29: #{tpu_custom_call.1} parent=1 // pred_fallthru
      _
    %5293 = vsyncpa [#allocation3], 1

</llo_original>
